<compile_context>
chip_gen: v7x
topology: tpu7x:2x2x1
jax: 0.10.0
libtpu: 0.0.40
codegen_flags: <defaults>
</compile_context>

<pallas_src>
import math

import jax
import jax.numpy as jnp
from jax.experimental import pallas as pl
from jax.experimental.pallas import tpu as pltpu

BN_EPS = 1e-5  # nn.BatchNorm2d default


def _tile(dim, pref=1024):
    """Largest tile <= pref that divides dim (full dim if dim <= pref)."""
    if dim <= pref:
        return dim
    t = pref
    while t >= 8:
        if dim % t == 0:
            return t
        t //= 2
    return dim


# ----------------------------------------------------------------------------
# Kernel 1: per-channel sum / sum-of-squares of a (M, C) tensor.
# Accumulates into an (8, C) VMEM scratch across the (arbitrary) M grid axis,
# reduces to (1, C) on the last step.
# ----------------------------------------------------------------------------
def _stats_kernel(x_ref, sum_ref, sq_ref, sacc, qacc):
    @pl.when(pl.program_id(0) == 0)
    def _():
        sacc[...] = jnp.zeros_like(sacc)
        qacc[...] = jnp.zeros_like(qacc)

    x = x_ref[...]
    xg = x.reshape(-1, 8, x.shape[-1])
    sacc[...] += jnp.sum(xg, axis=0)
    qacc[...] += jnp.sum(xg * xg, axis=0)

    @pl.when(pl.program_id(0) == pl.num_programs(0) - 1)
    def _():
        sum_ref[...] = jnp.sum(sacc[...], axis=0, keepdims=True)
        sq_ref[...] = jnp.sum(qacc[...], axis=0, keepdims=True)


def channel_stats(x2d):
    M, C = x2d.shape
    tm = _tile(M)
    assert M % tm == 0 and tm % 8 == 0
    return pl.pallas_call(
        _stats_kernel,
        out_shape=(jax.ShapeDtypeStruct((1, C), jnp.float32),
                   jax.ShapeDtypeStruct((1, C), jnp.float32)),
        grid=(M // tm,),
        in_specs=[pl.BlockSpec((tm, C), lambda i: (i, 0))],
        out_specs=(pl.BlockSpec((1, C), lambda i: (0, 0)),
                   pl.BlockSpec((1, C), lambda i: (0, 0))),
        scratch_shapes=[pltpu.VMEM((8, C), jnp.float32),
                        pltpu.VMEM((8, C), jnp.float32)],
        compiler_params=pltpu.CompilerParams(
            dimension_semantics=("arbitrary",)),
    )(x2d)


# ----------------------------------------------------------------------------
# Kernel 2: fused  relu(x*scale+bias) @ W1  (1x1 conv)  + per-channel stats of
# the conv output (needed by bn2).  Matmul operands are bf16, f32 accumulation.
# ----------------------------------------------------------------------------
def _bn_relu_mm_stats_kernel(x_ref, s_ref, b_ref, w_ref,
                             y_ref, sum_ref, sq_ref, sacc, qacc):
    @pl.when(pl.program_id(0) == 0)
    def _():
        sacc[...] = jnp.zeros_like(sacc)
        qacc[...] = jnp.zeros_like(qacc)

    a = jnp.maximum(x_ref[...] * s_ref[...] + b_ref[...], 0.0)      # f32 BN+ReLU
    y = jnp.dot(a.astype(jnp.bfloat16), w_ref[...],
                preferred_element_type=jnp.float32)                 # MXU, f32 acc
    y_ref[...] = y

    yg = y.reshape(-1, 8, y.shape[-1])
    sacc[...] += jnp.sum(yg, axis=0)
    qacc[...] += jnp.sum(yg * yg, axis=0)

    @pl.when(pl.program_id(0) == pl.num_programs(0) - 1)
    def _():
        sum_ref[...] = jnp.sum(sacc[...], axis=0, keepdims=True)
        sq_ref[...] = jnp.sum(qacc[...], axis=0, keepdims=True)


def bn_relu_conv1x1_stats(x2d, scale, bias, w_bf16):
    M, Cin = x2d.shape
    Cmid = w_bf16.shape[1]
    tm = _tile(M)
    assert M % tm == 0 and tm % 8 == 0
    return pl.pallas_call(
        _bn_relu_mm_stats_kernel,
        out_shape=(jax.ShapeDtypeStruct((M, Cmid), jnp.float32),
                   jax.ShapeDtypeStruct((1, Cmid), jnp.float32),
                   jax.ShapeDtypeStruct((1, Cmid), jnp.float32)),
        grid=(M // tm,),
        in_specs=[pl.BlockSpec((tm, Cin), lambda i: (i, 0)),
                  pl.BlockSpec((1, Cin), lambda i: (0, 0)),
                  pl.BlockSpec((1, Cin), lambda i: (0, 0)),
                  pl.BlockSpec((Cin, Cmid), lambda i: (0, 0))],
        out_specs=(pl.BlockSpec((tm, Cmid), lambda i: (i, 0)),
                   pl.BlockSpec((1, Cmid), lambda i: (0, 0)),
                   pl.BlockSpec((1, Cmid), lambda i: (0, 0))),
        scratch_shapes=[pltpu.VMEM((8, Cmid), jnp.float32),
                        pltpu.VMEM((8, Cmid), jnp.float32)],
        compiler_params=pltpu.CompilerParams(
            dimension_semantics=("arbitrary",)),
    )(x2d, scale, bias, w_bf16)


# ----------------------------------------------------------------------------
# Kernel 3: fused  conv3x3(relu(y*scale+bias), pad=1)  done directly:
# the activated image is written into a zero-bordered VMEM scratch (zero
# padding of the *activated* tensor, as PyTorch does) and the conv is 9
# accumulating bf16 matmuls over static tap windows — no im2col in HBM.
# ----------------------------------------------------------------------------
def _bn_relu_conv3x3_kernel(x_ref, s_ref, b_ref, w_ref, o_ref, pad_ref):
    H, W, Cout = o_ref.shape[1], o_ref.shape[2], o_ref.shape[3]
    Cmid = x_ref.shape[3]

    # Zero the whole padded scratch every step (keeps grid steps independent
    # so the grid axis can stay "parallel" on multi-TC chips).
    pad_ref[...] = jnp.zeros_like(pad_ref)

    act = jnp.maximum(x_ref[0] * s_ref[...] + b_ref[...], 0.0)   # (H, W, Cmid)
    pad_ref[1:1 + H, 1:1 + W, :] = act

    acc = jnp.zeros((H * W, Cout), jnp.float32)
    for di in range(3):
        for dj in range(3):
            a = pad_ref[di:di + H, dj:dj + W, :].reshape(H * W, Cmid)
            acc = acc + jnp.dot(a.astype(jnp.bfloat16), w_ref[di, dj],
                                preferred_element_type=jnp.float32)
    o_ref[0] = acc.reshape(H, W, Cout)


def bn_relu_conv3x3(y_nhwc, scale, bias, w_bf16):
    N, H, W, Cmid = y_nhwc.shape
    Cout = w_bf16.shape[-1]
    return pl.pallas_call(
        _bn_relu_conv3x3_kernel,
        out_shape=jax.ShapeDtypeStruct((N, H, W, Cout), jnp.float32),
        grid=(N,),
        in_specs=[pl.BlockSpec((1, H, W, Cmid), lambda n: (n, 0, 0, 0)),
                  pl.BlockSpec((1, Cmid), lambda n: (0, 0)),
                  pl.BlockSpec((1, Cmid), lambda n: (0, 0)),
                  pl.BlockSpec((3, 3, Cmid, Cout), lambda n: (0, 0, 0, 0))],
        out_specs=pl.BlockSpec((1, H, W, Cout), lambda n: (n, 0, 0, 0)),
        scratch_shapes=[pltpu.VMEM((H + 2, W + 2, Cmid), jnp.float32)],
        compiler_params=pltpu.CompilerParams(
            dimension_semantics=("parallel",)),
    )(y_nhwc, scale, bias, w_bf16)


# ----------------------------------------------------------------------------
# Glue (inside the single jit): BN-statistics folding, weight layout, concat.
# ----------------------------------------------------------------------------
def _fold_bn(sums, sqs, count, gamma, beta, eps=BN_EPS):
    mean = sums / count
    var = jnp.maximum(sqs / count - mean * mean, 0.0)   # biased (training-mode)
    inv = jax.lax.rsqrt(var + eps)
    scale = gamma.reshape(1, -1) * inv
    bias = beta.reshape(1, -1) - mean * scale
    return scale, bias


@jax.jit
def bottleneck_forward(params, x_nchw):
    x = jnp.transpose(x_nchw, (0, 2, 3, 1)).astype(jnp.float32)     # NHWC
    N, H, W, Cin = x.shape
    M = N * H * W
    x2d = x.reshape(M, Cin)

    # PyTorch weight layouts -> matmul layouts, bf16 MXU operands.
    w1 = jnp.transpose(params["conv1_w"][:, :, 0, 0], (1, 0)).astype(jnp.bfloat16)   # (Cin, 4g)
    w2 = jnp.transpose(params["conv2_w"], (2, 3, 1, 0)).astype(jnp.bfloat16)         # (3,3,4g,g)

    # bn1 (batch stats) folded to per-channel scale/bias.
    s1sum, s1sq = channel_stats(x2d)
    scale1, bias1 = _fold_bn(s1sum, s1sq, M, params["bn1_g"], params["bn1_b"])

    # conv1(relu(bn1(x)))  + stats of the conv output (for bn2), in one kernel.
    y1, s2sum, s2sq = bn_relu_conv1x1_stats(x2d, scale1, bias1, w1)
    scale2, bias2 = _fold_bn(s2sum, s2sq, M, params["bn2_g"], params["bn2_b"])

    # conv2(relu(bn2(y1))), 3x3 pad=1, direct (no materialized im2col).
    Cmid = y1.shape[1]
    out = bn_relu_conv3x3(y1.reshape(N, H, W, Cmid), scale2, bias2, w2)

    # torch.cat([out, x], dim=1)  ==  channel concat (out first), back to NCHW.
    cat = jnp.concatenate([out, x], axis=-1)
    return jnp.transpose(cat, (0, 3, 1, 2))


# ----------------------------------------------------------------------------
# Deterministic parameter init (PyTorch-default BN: gamma=1, beta=0; convs
# kaiming-normal, bias=False).
# ----------------------------------------------------------------------------
def init_params(key, in_planes, growth_rate):
    k1, k2 = jax.random.split(key)
    cmid = 4 * growth_rate

    def kaiming(k, shape):
        fan_in = shape[1] * shape[2] * shape[3]
        return jax.random.normal(k, shape, jnp.float32) * math.sqrt(2.0 / fan_in)

    return {
        "bn1_g": jnp.ones((in_planes,), jnp.float32),
        "bn1_b": jnp.zeros((in_planes,), jnp.float32),
        "conv1_w": kaiming(k1, (cmid, in_planes, 1, 1)),
        "bn2_g": jnp.ones((cmid,), jnp.float32),
        "bn2_b": jnp.zeros((cmid,), jnp.float32),
        "conv2_w": kaiming(k2, (growth_rate, cmid, 3, 3)),
    }


if __name__ == "__main__":
    key = jax.random.PRNGKey(0)
    pkey, xkey = jax.random.split(key)

    in_planes, growth_rate = 64, 32        # 1x1: 64 -> 128, 3x3: 128 -> 32
    N, H, W = 2, 16, 16
    params = init_params(pkey, in_planes, growth_rate)
    x = jax.random.normal(xkey, (N, in_planes, H, W), jnp.float32)

    out = bottleneck_forward(params, x)
    out = jax.block_until_ready(out)
    assert out.shape == (N, growth_rate + in_planes, H, W)
    assert out.dtype == jnp.float32
    print("KERNEL_OK")
</pallas_src>

<mosaic_0001>
module attributes {stable_mosaic.version = 11 : i64} {
  func.func @_stats_kernel(%arg0: i32, %arg1: memref<512x64xf32, #tpu.memory_space<vmem>>, %arg2: memref<1x64xf32, #tpu.memory_space<vmem>>, %arg3: memref<1x64xf32, #tpu.memory_space<vmem>>, %arg4: memref<8x64xf32, #tpu.memory_space<vmem>>, %arg5: memref<8x64xf32, #tpu.memory_space<vmem>>) attributes {dimension_semantics = [#tpu.dimension_semantics<arbitrary>], iteration_bounds = array<i64: 1>, scalar_prefetch = 0 : i64, scratch_operands = 2 : i64, tpu.core_type = #tpu.core_type<tc>, window_params = [{transform_indices = @transform_0, window_bounds = array<i64: 512, 64>}, {pipeline_mode = #tpu.pipeline_mode<synchronous>, transform_indices = @transform_1, window_bounds = array<i64: 1, 64>}, {pipeline_mode = #tpu.pipeline_mode<synchronous>, transform_indices = @transform_2, window_bounds = array<i64: 1, 64>}]} {
    %c0_i32 = arith.constant 0 : i32
    %0 = arith.cmpi eq, %arg0, %c0_i32 : i32
    %1 = arith.extui %0 : i1 to i32
    %c0_i32_0 = arith.constant 0 : i32
    %2 = arith.cmpi ne, %1, %c0_i32_0 : i32
    scf.if %2 {
      %cst_13 = arith.constant 0.000000e+00 : f32
      %17 = vector.broadcast %cst_13 : f32 to vector<8x64xf32>
      %c0_14 = arith.constant 0 : index
      %c0_15 = arith.constant 0 : index
      %18 = vector.load %arg4[%c0_14, %c0_15] : memref<8x64xf32, #tpu.memory_space<vmem>>, vector<8x64xf32>
      tpu.vector_store %arg4[%c0_14, %c0_15], %17 {strides = array<i32>} : memref<8x64xf32, #tpu.memory_space<vmem>>, vector<8x64xf32>,
      %cst_16 = arith.constant 0.000000e+00 : f32
      %19 = vector.broadcast %cst_16 : f32 to vector<8x64xf32>
      %c0_17 = arith.constant 0 : index
      %c0_18 = arith.constant 0 : index
      %20 = vector.load %arg5[%c0_17, %c0_18] : memref<8x64xf32, #tpu.memory_space<vmem>>, vector<8x64xf32>
      tpu.vector_store %arg5[%c0_17, %c0_18], %19 {strides = array<i32>} : memref<8x64xf32, #tpu.memory_space<vmem>>, vector<8x64xf32>,
    } else {
    }
    %c0 = arith.constant 0 : index
    %c0_1 = arith.constant 0 : index
    %3 = vector.load %arg1[%c0, %c0_1] : memref<512x64xf32, #tpu.memory_space<vmem>>, vector<512x64xf32>
    %4 = vector.shape_cast %3 : vector<512x64xf32> to vector<64x8x64xf32>
    %c0_2 = arith.constant 0 : index
    %c0_3 = arith.constant 0 : index
    %5 = vector.load %arg4[%c0_2, %c0_3] : memref<8x64xf32, #tpu.memory_space<vmem>>, vector<8x64xf32>
    %cst = arith.constant dense<0.000000e+00> : vector<8x64xf32>
    %6 = vector.multi_reduction <add>, %4, %cst [0] : vector<64x8x64xf32> to vector<8x64xf32>
    %7 = arith.addf %5, %6 : vector<8x64xf32>
    %c0_4 = arith.constant 0 : index
    %c0_5 = arith.constant 0 : index
    %8 = vector.load %arg4[%c0_4, %c0_5] : memref<8x64xf32, #tpu.memory_space<vmem>>, vector<8x64xf32>
    tpu.vector_store %arg4[%c0_4, %c0_5], %7 {strides = array<i32>} : memref<8x64xf32, #tpu.memory_space<vmem>>, vector<8x64xf32>,
    %c0_6 = arith.constant 0 : index
    %c0_7 = arith.constant 0 : index
    %9 = vector.load %arg5[%c0_6, %c0_7] : memref<8x64xf32, #tpu.memory_space<vmem>>, vector<8x64xf32>
    %10 = arith.mulf %4, %4 : vector<64x8x64xf32>
    %cst_8 = arith.constant dense<0.000000e+00> : vector<8x64xf32>
    %11 = vector.multi_reduction <add>, %10, %cst_8 [0] : vector<64x8x64xf32> to vector<8x64xf32>
    %12 = arith.addf %9, %11 : vector<8x64xf32>
    %c0_9 = arith.constant 0 : index
    %c0_10 = arith.constant 0 : index
    %13 = vector.load %arg5[%c0_9, %c0_10] : memref<8x64xf32, #tpu.memory_space<vmem>>, vector<8x64xf32>
    tpu.vector_store %arg5[%c0_9, %c0_10], %12 {strides = array<i32>} : memref<8x64xf32, #tpu.memory_space<vmem>>, vector<8x64xf32>,
    %c0_i32_11 = arith.constant 0 : i32
    %14 = arith.cmpi eq, %arg0, %c0_i32_11 : i32
    %15 = arith.extui %14 : i1 to i32
    %c0_i32_12 = arith.constant 0 : i32
    %16 = arith.cmpi ne, %15, %c0_i32_12 : i32
    scf.if %16 {
      %c0_13 = arith.constant 0 : index
      %c0_14 = arith.constant 0 : index
      %17 = vector.load %arg4[%c0_13, %c0_14] : memref<8x64xf32, #tpu.memory_space<vmem>>, vector<8x64xf32>
      %cst_15 = arith.constant dense<0.000000e+00> : vector<64xf32>
      %18 = vector.multi_reduction <add>, %17, %cst_15 [0] : vector<8x64xf32> to vector<64xf32>
      %19 = vector.shape_cast %18 : vector<64xf32> to vector<1x64xf32>
      %c0_16 = arith.constant 0 : index
      %c0_17 = arith.constant 0 : index
      %20 = vector.load %arg2[%c0_16, %c0_17] : memref<1x64xf32, #tpu.memory_space<vmem>>, vector<1x64xf32>
      tpu.vector_store %arg2[%c0_16, %c0_17], %19 {strides = array<i32>} : memref<1x64xf32, #tpu.memory_space<vmem>>, vector<1x64xf32>,
      %c0_18 = arith.constant 0 : index
      %c0_19 = arith.constant 0 : index
      %21 = vector.load %arg5[%c0_18, %c0_19] : memref<8x64xf32, #tpu.memory_space<vmem>>, vector<8x64xf32>
      %cst_20 = arith.constant dense<0.000000e+00> : vector<64xf32>
      %22 = vector.multi_reduction <add>, %21, %cst_20 [0] : vector<8x64xf32> to vector<64xf32>
      %23 = vector.shape_cast %22 : vector<64xf32> to vector<1x64xf32>
      %c0_21 = arith.constant 0 : index
      %c0_22 = arith.constant 0 : index
      %24 = vector.load %arg3[%c0_21, %c0_22] : memref<1x64xf32, #tpu.memory_space<vmem>>, vector<1x64xf32>
      tpu.vector_store %arg3[%c0_21, %c0_22], %23 {strides = array<i32>} : memref<1x64xf32, #tpu.memory_space<vmem>>, vector<1x64xf32>,
    } else {
    }
    return
  }
  func.func @transform_0(%arg0: i32) -> (i32, i32) {
    %c0_i32 = arith.constant 0 : i32
    %c0_i32_0 = arith.constant 0 : i32
    return %arg0, %c0_i32 : i32, i32
  }
  func.func @transform_1(%arg0: i32) -> (i32, i32) {
    %c0_i32 = arith.constant 0 : i32
    %c0_i32_0 = arith.constant 0 : i32
    %c0_i32_1 = arith.constant 0 : i32
    return %c0_i32, %c0_i32_0 : i32, i32
  }
  func.func @transform_2(%arg0: i32) -> (i32, i32) {
    %c0_i32 = arith.constant 0 : i32
    %c0_i32_0 = arith.constant 0 : i32
    %c0_i32_1 = arith.constant 0 : i32
    return %c0_i32, %c0_i32_0 : i32, i32
  }
}

module attributes {stable_mosaic.version = 11 : i64} {
  func.func @_bn_relu_mm_stats_kernel(%arg0: i32, %arg1: memref<512x64xf32, #tpu.memory_space<vmem>>, %arg2: memref<1x64xf32, #tpu.memory_space<vmem>>, %arg3: memref<1x64xf32, #tpu.memory_space<vmem>>, %arg4: memref<64x128xbf16, #tpu.memory_space<vmem>>, %arg5: memref<512x128xf32, #tpu.memory_space<vmem>>, %arg6: memref<1x128xf32, #tpu.memory_space<vmem>>, %arg7: memref<1x128xf32, #tpu.memory_space<vmem>>, %arg8: memref<8x128xf32, #tpu.memory_space<vmem>>, %arg9: memref<8x128xf32, #tpu.memory_space<vmem>>) attributes {dimension_semantics = [#tpu.dimension_semantics<arbitrary>], iteration_bounds = array<i64: 1>, scalar_prefetch = 0 : i64, scratch_operands = 2 : i64, tpu.core_type = #tpu.core_type<tc>, window_params = [{transform_indices = @transform_0, window_bounds = array<i64: 512, 64>}, {pipeline_mode = #tpu.pipeline_mode<synchronous>, transform_indices = @transform_1, window_bounds = array<i64: 1, 64>}, {pipeline_mode = #tpu.pipeline_mode<synchronous>, transform_indices = @transform_2, window_bounds = array<i64: 1, 64>}, {pipeline_mode = #tpu.pipeline_mode<synchronous>, transform_indices = @transform_3, window_bounds = array<i64: 64, 128>}, {transform_indices = @transform_4, window_bounds = array<i64: 512, 128>}, {pipeline_mode = #tpu.pipeline_mode<synchronous>, transform_indices = @transform_5, window_bounds = array<i64: 1, 128>}, {pipeline_mode = #tpu.pipeline_mode<synchronous>, transform_indices = @transform_6, window_bounds = array<i64: 1, 128>}]} {
    %c0_i32 = arith.constant 0 : i32
    %0 = arith.cmpi eq, %arg0, %c0_i32 : i32
    %1 = arith.extui %0 : i1 to i32
    %c0_i32_0 = arith.constant 0 : i32
    %2 = arith.cmpi ne, %1, %c0_i32_0 : i32
    scf.if %2 {
      %cst_23 = arith.constant 0.000000e+00 : f32
      %29 = vector.broadcast %cst_23 : f32 to vector<8x128xf32>
      %c0_24 = arith.constant 0 : index
      %c0_25 = arith.constant 0 : index
      %30 = vector.load %arg8[%c0_24, %c0_25] : memref<8x128xf32, #tpu.memory_space<vmem>>, vector<8x128xf32>
      tpu.vector_store %arg8[%c0_24, %c0_25], %29 {strides = array<i32>} : memref<8x128xf32, #tpu.memory_space<vmem>>, vector<8x128xf32>,
      %cst_26 = arith.constant 0.000000e+00 : f32
      %31 = vector.broadcast %cst_26 : f32 to vector<8x128xf32>
      %c0_27 = arith.constant 0 : index
      %c0_28 = arith.constant 0 : index
      %32 = vector.load %arg9[%c0_27, %c0_28] : memref<8x128xf32, #tpu.memory_space<vmem>>, vector<8x128xf32>
      tpu.vector_store %arg9[%c0_27, %c0_28], %31 {strides = array<i32>} : memref<8x128xf32, #tpu.memory_space<vmem>>, vector<8x128xf32>,
    } else {
    }
    %c0 = arith.constant 0 : index
    %c0_1 = arith.constant 0 : index
    %3 = vector.load %arg1[%c0, %c0_1] : memref<512x64xf32, #tpu.memory_space<vmem>>, vector<512x64xf32>
    %c0_2 = arith.constant 0 : index
    %c0_3 = arith.constant 0 : index
    %4 = vector.load %arg2[%c0_2, %c0_3] : memref<1x64xf32, #tpu.memory_space<vmem>>, vector<1x64xf32>
    %5 = vector.broadcast %4 : vector<1x64xf32> to vector<512x64xf32>
    %6 = arith.mulf %3, %5 : vector<512x64xf32>
    %c0_4 = arith.constant 0 : index
    %c0_5 = arith.constant 0 : index
    %7 = vector.load %arg3[%c0_4, %c0_5] : memref<1x64xf32, #tpu.memory_space<vmem>>, vector<1x64xf32>
    %8 = vector.broadcast %7 : vector<1x64xf32> to vector<512x64xf32>
    %9 = arith.addf %6, %8 : vector<512x64xf32>
    %cst = arith.constant 0.000000e+00 : f32
    %10 = vector.broadcast %cst : f32 to vector<512x64xf32>
    %11 = arith.maximumf %9, %10 : vector<512x64xf32>
    %12 = arith.truncf %11 : vector<512x64xf32> to vector<512x64xbf16>
    %c0_6 = arith.constant 0 : index
    %c0_7 = arith.constant 0 : index
    %13 = vector.load %arg4[%c0_6, %c0_7] : memref<64x128xbf16, #tpu.memory_space<vmem>>, vector<64x128xbf16>
    %cst_8 = arith.constant dense<0.000000e+00> : vector<512x128xf32>
    %14 = tpu.matmul %12, %13, %cst_8 {dimension_numbers = #tpu.dot_dimension_numbers<[1], [0], [0], [1], [0, 0, 1, 1], [], []>} : vector<512x64xbf16>, vector<64x128xbf16>, vector<512x128xf32> -> vector<512x128xf32>
    %c0_9 = arith.constant 0 : index
    %c0_10 = arith.constant 0 : index
    %15 = vector.load %arg5[%c0_9, %c0_10] : memref<512x128xf32, #tpu.memory_space<vmem>>, vector<512x128xf32>
    tpu.vector_store %arg5[%c0_9, %c0_10], %14 {strides = array<i32>} : memref<512x128xf32, #tpu.memory_space<vmem>>, vector<512x128xf32>,
    %16 = vector.shape_cast %14 : vector<512x128xf32> to vector<64x8x128xf32>
    %c0_11 = arith.constant 0 : index
    %c0_12 = arith.constant 0 : index
    %17 = vector.load %arg8[%c0_11, %c0_12] : memref<8x128xf32, #tpu.memory_space<vmem>>, vector<8x128xf32>
    %cst_13 = arith.constant dense<0.000000e+00> : vector<8x128xf32>
    %18 = vector.multi_reduction <add>, %16, %cst_13 [0] : vector<64x8x128xf32> to vector<8x128xf32>
    %19 = arith.addf %17, %18 : vector<8x128xf32>
    %c0_14 = arith.constant 0 : index
    %c0_15 = arith.constant 0 : index
    %20 = vector.load %arg8[%c0_14, %c0_15] : memref<8x128xf32, #tpu.memory_space<vmem>>, vector<8x128xf32>
    tpu.vector_store %arg8[%c0_14, %c0_15], %19 {strides = array<i32>} : memref<8x128xf32, #tpu.memory_space<vmem>>, vector<8x128xf32>,
    %c0_16 = arith.constant 0 : index
    %c0_17 = arith.constant 0 : index
    %21 = vector.load %arg9[%c0_16, %c0_17] : memref<8x128xf32, #tpu.memory_space<vmem>>, vector<8x128xf32>
    %22 = arith.mulf %16, %16 : vector<64x8x128xf32>
    %cst_18 = arith.constant dense<0.000000e+00> : vector<8x128xf32>
    %23 = vector.multi_reduction <add>, %22, %cst_18 [0] : vector<64x8x128xf32> to vector<8x128xf32>
    %24 = arith.addf %21, %23 : vector<8x128xf32>
    %c0_19 = arith.constant 0 : index
    %c0_20 = arith.constant 0 : index
    %25 = vector.load %arg9[%c0_19, %c0_20] : memref<8x128xf32, #tpu.memory_space<vmem>>, vector<8x128xf32>
    tpu.vector_store %arg9[%c0_19, %c0_20], %24 {strides = array<i32>} : memref<8x128xf32, #tpu.memory_space<vmem>>, vector<8x128xf32>,
    %c0_i32_21 = arith.constant 0 : i32
    %26 = arith.cmpi eq, %arg0, %c0_i32_21 : i32
    %27 = arith.extui %26 : i1 to i32
    %c0_i32_22 = arith.constant 0 : i32
    %28 = arith.cmpi ne, %27, %c0_i32_22 : i32
    scf.if %28 {
      %c0_23 = arith.constant 0 : index
      %c0_24 = arith.constant 0 : index
      %29 = vector.load %arg8[%c0_23, %c0_24] : memref<8x128xf32, #tpu.memory_space<vmem>>, vector<8x128xf32>
      %cst_25 = arith.constant dense<0.000000e+00> : vector<128xf32>
      %30 = vector.multi_reduction <add>, %29, %cst_25 [0] : vector<8x128xf32> to vector<128xf32>
      %31 = vector.shape_cast %30 : vector<128xf32> to vector<1x128xf32>
      %c0_26 = arith.constant 0 : index
      %c0_27 = arith.constant 0 : index
      %32 = vector.load %arg6[%c0_26, %c0_27] : memref<1x128xf32, #tpu.memory_space<vmem>>, vector<1x128xf32>
      tpu.vector_store %arg6[%c0_26, %c0_27], %31 {strides = array<i32>} : memref<1x128xf32, #tpu.memory_space<vmem>>, vector<1x128xf32>,
      %c0_28 = arith.constant 0 : index
      %c0_29 = arith.constant 0 : index
      %33 = vector.load %arg9[%c0_28, %c0_29] : memref<8x128xf32, #tpu.memory_space<vmem>>, vector<8x128xf32>
      %cst_30 = arith.constant dense<0.000000e+00> : vector<128xf32>
      %34 = vector.multi_reduction <add>, %33, %cst_30 [0] : vector<8x128xf32> to vector<128xf32>
      %35 = vector.shape_cast %34 : vector<128xf32> to vector<1x128xf32>
      %c0_31 = arith.constant 0 : index
      %c0_32 = arith.constant 0 : index
      %36 = vector.load %arg7[%c0_31, %c0_32] : memref<1x128xf32, #tpu.memory_space<vmem>>, vector<1x128xf32>
      tpu.vector_store %arg7[%c0_31, %c0_32], %35 {strides = array<i32>} : memref<1x128xf32, #tpu.memory_space<vmem>>, vector<1x128xf32>,
    } else {
    }
    return
  }
  func.func @transform_0(%arg0: i32) -> (i32, i32) {
    %c0_i32 = arith.constant 0 : i32
    %c0_i32_0 = arith.constant 0 : i32
    return %arg0, %c0_i32 : i32, i32
  }
  func.func @transform_1(%arg0: i32) -> (i32, i32) {
    %c0_i32 = arith.constant 0 : i32
    %c0_i32_0 = arith.constant 0 : i32
    %c0_i32_1 = arith.constant 0 : i32
    return %c0_i32, %c0_i32_0 : i32, i32
  }
  func.func @transform_2(%arg0: i32) -> (i32, i32) {
    %c0_i32 = arith.constant 0 : i32
    %c0_i32_0 = arith.constant 0 : i32
    %c0_i32_1 = arith.constant 0 : i32
    return %c0_i32, %c0_i32_0 : i32, i32
  }
  func.func @transform_3(%arg0: i32) -> (i32, i32) {
    %c0_i32 = arith.constant 0 : i32
    %c0_i32_0 = arith.constant 0 : i32
    %c0_i32_1 = arith.constant 0 : i32
    return %c0_i32, %c0_i32_0 : i32, i32
  }
  func.func @transform_4(%arg0: i32) -> (i32, i32) {
    %c0_i32 = arith.constant 0 : i32
    %c0_i32_0 = arith.constant 0 : i32
    return %arg0, %c0_i32 : i32, i32
  }
  func.func @transform_5(%arg0: i32) -> (i32, i32) {
    %c0_i32 = arith.constant 0 : i32
    %c0_i32_0 = arith.constant 0 : i32
    %c0_i32_1 = arith.constant 0 : i32
    return %c0_i32, %c0_i32_0 : i32, i32
  }
  func.func @transform_6(%arg0: i32) -> (i32, i32) {
    %c0_i32 = arith.constant 0 : i32
    %c0_i32_0 = arith.constant 0 : i32
    %c0_i32_1 = arith.constant 0 : i32
    return %c0_i32, %c0_i32_0 : i32, i32
  }
}

module attributes {stable_mosaic.version = 11 : i64} {
  func.func @_bn_relu_conv3x3_kernel(%arg0: i32, %arg1: memref<1x16x16x128xf32, #tpu.memory_space<vmem>>, %arg2: memref<1x128xf32, #tpu.memory_space<vmem>>, %arg3: memref<1x128xf32, #tpu.memory_space<vmem>>, %arg4: memref<3x3x128x32xbf16, #tpu.memory_space<vmem>>, %arg5: memref<1x16x16x32xf32, #tpu.memory_space<vmem>>, %arg6: memref<18x18x128xf32, #tpu.memory_space<vmem>>) attributes {dimension_semantics = [#tpu.dimension_semantics<parallel>], iteration_bounds = array<i64: 2>, scalar_prefetch = 0 : i64, scratch_operands = 1 : i64, tpu.core_type = #tpu.core_type<tc>, window_params = [{transform_indices = @transform_0, window_bounds = array<i64: 1, 16, 16, 128>}, {pipeline_mode = #tpu.pipeline_mode<synchronous>, transform_indices = @transform_1, window_bounds = array<i64: 1, 128>}, {pipeline_mode = #tpu.pipeline_mode<synchronous>, transform_indices = @transform_2, window_bounds = array<i64: 1, 128>}, {pipeline_mode = #tpu.pipeline_mode<synchronous>, transform_indices = @transform_3, window_bounds = array<i64: 3, 3, 128, 32>}, {transform_indices = @transform_4, window_bounds = array<i64: 1, 16, 16, 32>}]} {
    %cst = arith.constant 0.000000e+00 : f32
    %0 = vector.broadcast %cst : f32 to vector<18x18x128xf32>
    %c0 = arith.constant 0 : index
    %c0_0 = arith.constant 0 : index
    %c0_1 = arith.constant 0 : index
    %1 = vector.load %arg6[%c0, %c0_0, %c0_1] : memref<18x18x128xf32, #tpu.memory_space<vmem>>, vector<18x18x128xf32>
    tpu.vector_store %arg6[%c0, %c0_0, %c0_1], %0 {strides = array<i32>} : memref<18x18x128xf32, #tpu.memory_space<vmem>>, vector<18x18x128xf32>,
    %c0_2 = arith.constant 0 : index
    %c0_3 = arith.constant 0 : index
    %c0_4 = arith.constant 0 : index
    %c0_5 = arith.constant 0 : index
    %2 = vector.load %arg1[%c0_2, %c0_3, %c0_4, %c0_5] : memref<1x16x16x128xf32, #tpu.memory_space<vmem>>, vector<1x16x16x128xf32>
    %3 = vector.shape_cast %2 : vector<1x16x16x128xf32> to vector<16x16x128xf32>
    %c0_6 = arith.constant 0 : index
    %c0_7 = arith.constant 0 : index
    %4 = vector.load %arg2[%c0_6, %c0_7] : memref<1x128xf32, #tpu.memory_space<vmem>>, vector<1x128xf32>
    %5 = vector.shape_cast %4 : vector<1x128xf32> to vector<1x1x128xf32>
    %6 = vector.broadcast %5 : vector<1x1x128xf32> to vector<16x16x128xf32>
    %7 = arith.mulf %3, %6 : vector<16x16x128xf32>
    %c0_8 = arith.constant 0 : index
    %c0_9 = arith.constant 0 : index
    %8 = vector.load %arg3[%c0_8, %c0_9] : memref<1x128xf32, #tpu.memory_space<vmem>>, vector<1x128xf32>
    %9 = vector.shape_cast %8 : vector<1x128xf32> to vector<1x1x128xf32>
    %10 = vector.broadcast %9 : vector<1x1x128xf32> to vector<16x16x128xf32>
    %11 = arith.addf %7, %10 : vector<16x16x128xf32>
    %cst_10 = arith.constant 0.000000e+00 : f32
    %12 = vector.broadcast %cst_10 : f32 to vector<16x16x128xf32>
    %13 = arith.maximumf %11, %12 : vector<16x16x128xf32>
    %c1 = arith.constant 1 : index
    %c1_11 = arith.constant 1 : index
    %c0_12 = arith.constant 0 : index
    %14 = vector.load %arg6[%c1, %c1_11, %c0_12] : memref<18x18x128xf32, #tpu.memory_space<vmem>>, vector<16x16x128xf32>
    tpu.vector_store %arg6[%c1, %c1_11, %c0_12], %13 {strides = array<i32>} : memref<18x18x128xf32, #tpu.memory_space<vmem>>, vector<16x16x128xf32>,
    %cst_13 = arith.constant 0.000000e+00 : f32
    %15 = vector.broadcast %cst_13 : f32 to vector<256x32xf32>
    %c0_14 = arith.constant 0 : index
    %c0_15 = arith.constant 0 : index
    %c0_16 = arith.constant 0 : index
    %16 = vector.load %arg6[%c0_14, %c0_15, %c0_16] : memref<18x18x128xf32, #tpu.memory_space<vmem>>, vector<16x16x128xf32>
    %17 = vector.shape_cast %16 : vector<16x16x128xf32> to vector<256x128xf32>
    %18 = arith.truncf %17 : vector<256x128xf32> to vector<256x128xbf16>
    %c0_17 = arith.constant 0 : index
    %c0_18 = arith.constant 0 : index
    %c0_19 = arith.constant 0 : index
    %c0_20 = arith.constant 0 : index
    %19 = vector.load %arg4[%c0_17, %c0_18, %c0_19, %c0_20] : memref<3x3x128x32xbf16, #tpu.memory_space<vmem>>, vector<1x1x128x32xbf16>
    %20 = vector.shape_cast %19 : vector<1x1x128x32xbf16> to vector<128x32xbf16>
    %cst_21 = arith.constant dense<0.000000e+00> : vector<256x32xf32>
    %21 = tpu.matmul %18, %20, %cst_21 {dimension_numbers = #tpu.dot_dimension_numbers<[1], [0], [0], [1], [0, 0, 1, 1], [], []>} : vector<256x128xbf16>, vector<128x32xbf16>, vector<256x32xf32> -> vector<256x32xf32>
    %22 = arith.addf %15, %21 : vector<256x32xf32>
    %c0_22 = arith.constant 0 : index
    %c1_23 = arith.constant 1 : index
    %c0_24 = arith.constant 0 : index
    %23 = vector.load %arg6[%c0_22, %c1_23, %c0_24] : memref<18x18x128xf32, #tpu.memory_space<vmem>>, vector<16x16x128xf32>
    %24 = vector.shape_cast %23 : vector<16x16x128xf32> to vector<256x128xf32>
    %25 = arith.truncf %24 : vector<256x128xf32> to vector<256x128xbf16>
    %c0_25 = arith.constant 0 : index
    %c1_26 = arith.constant 1 : index
    %c0_27 = arith.constant 0 : index
    %c0_28 = arith.constant 0 : index
    %26 = vector.load %arg4[%c0_25, %c1_26, %c0_27, %c0_28] : memref<3x3x128x32xbf16, #tpu.memory_space<vmem>>, vector<1x1x128x32xbf16>
    %27 = vector.shape_cast %26 : vector<1x1x128x32xbf16> to vector<128x32xbf16>
    %cst_29 = arith.constant dense<0.000000e+00> : vector<256x32xf32>
    %28 = tpu.matmul %25, %27, %cst_29 {dimension_numbers = #tpu.dot_dimension_numbers<[1], [0], [0], [1], [0, 0, 1, 1], [], []>} : vector<256x128xbf16>, vector<128x32xbf16>, vector<256x32xf32> -> vector<256x32xf32>
    %29 = arith.addf %22, %28 : vector<256x32xf32>
    %c0_30 = arith.constant 0 : index
    %c2 = arith.constant 2 : index
    %c0_31 = arith.constant 0 : index
    %30 = vector.load %arg6[%c0_30, %c2, %c0_31] : memref<18x18x128xf32, #tpu.memory_space<vmem>>, vector<16x16x128xf32>
    %31 = vector.shape_cast %30 : vector<16x16x128xf32> to vector<256x128xf32>
    %32 = arith.truncf %31 : vector<256x128xf32> to vector<256x128xbf16>
    %c0_32 = arith.constant 0 : index
    %c2_33 = arith.constant 2 : index
    %c0_34 = arith.constant 0 : index
    %c0_35 = arith.constant 0 : index
    %33 = vector.load %arg4[%c0_32, %c2_33, %c0_34, %c0_35] : memref<3x3x128x32xbf16, #tpu.memory_space<vmem>>, vector<1x1x128x32xbf16>
    %34 = vector.shape_cast %33 : vector<1x1x128x32xbf16> to vector<128x32xbf16>
    %cst_36 = arith.constant dense<0.000000e+00> : vector<256x32xf32>
    %35 = tpu.matmul %32, %34, %cst_36 {dimension_numbers = #tpu.dot_dimension_numbers<[1], [0], [0], [1], [0, 0, 1, 1], [], []>} : vector<256x128xbf16>, vector<128x32xbf16>, vector<256x32xf32> -> vector<256x32xf32>
    %36 = arith.addf %29, %35 : vector<256x32xf32>
    %c1_37 = arith.constant 1 : index
    %c0_38 = arith.constant 0 : index
    %c0_39 = arith.constant 0 : index
    %37 = vector.load %arg6[%c1_37, %c0_38, %c0_39] : memref<18x18x128xf32, #tpu.memory_space<vmem>>, vector<16x16x128xf32>
    %38 = vector.shape_cast %37 : vector<16x16x128xf32> to vector<256x128xf32>
    %39 = arith.truncf %38 : vector<256x128xf32> to vector<256x128xbf16>
    %c1_40 = arith.constant 1 : index
    %c0_41 = arith.constant 0 : index
    %c0_42 = arith.constant 0 : index
    %c0_43 = arith.constant 0 : index
    %40 = vector.load %arg4[%c1_40, %c0_41, %c0_42, %c0_43] : memref<3x3x128x32xbf16, #tpu.memory_space<vmem>>, vector<1x1x128x32xbf16>
    %41 = vector.shape_cast %40 : vector<1x1x128x32xbf16> to vector<128x32xbf16>
    %cst_44 = arith.constant dense<0.000000e+00> : vector<256x32xf32>
    %42 = tpu.matmul %39, %41, %cst_44 {dimension_numbers = #tpu.dot_dimension_numbers<[1], [0], [0], [1], [0, 0, 1, 1], [], []>} : vector<256x128xbf16>, vector<128x32xbf16>, vector<256x32xf32> -> vector<256x32xf32>
    %43 = arith.addf %36, %42 : vector<256x32xf32>
    %c1_45 = arith.constant 1 : index
    %c1_46 = arith.constant 1 : index
    %c0_47 = arith.constant 0 : index
    %44 = vector.load %arg6[%c1_45, %c1_46, %c0_47] : memref<18x18x128xf32, #tpu.memory_space<vmem>>, vector<16x16x128xf32>
    %45 = vector.shape_cast %44 : vector<16x16x128xf32> to vector<256x128xf32>
    %46 = arith.truncf %45 : vector<256x128xf32> to vector<256x128xbf16>
    %c1_48 = arith.constant 1 : index
    %c1_49 = arith.constant 1 : index
    %c0_50 = arith.constant 0 : index
    %c0_51 = arith.constant 0 : index
    %47 = vector.load %arg4[%c1_48, %c1_49, %c0_50, %c0_51] : memref<3x3x128x32xbf16, #tpu.memory_space<vmem>>, vector<1x1x128x32xbf16>
    %48 = vector.shape_cast %47 : vector<1x1x128x32xbf16> to vector<128x32xbf16>
    %cst_52 = arith.constant dense<0.000000e+00> : vector<256x32xf32>
    %49 = tpu.matmul %46, %48, %cst_52 {dimension_numbers = #tpu.dot_dimension_numbers<[1], [0], [0], [1], [0, 0, 1, 1], [], []>} : vector<256x128xbf16>, vector<128x32xbf16>, vector<256x32xf32> -> vector<256x32xf32>
    %50 = arith.addf %43, %49 : vector<256x32xf32>
    %c1_53 = arith.constant 1 : index
    %c2_54 = arith.constant 2 : index
    %c0_55 = arith.constant 0 : index
    %51 = vector.load %arg6[%c1_53, %c2_54, %c0_55] : memref<18x18x128xf32, #tpu.memory_space<vmem>>, vector<16x16x128xf32>
    %52 = vector.shape_cast %51 : vector<16x16x128xf32> to vector<256x128xf32>
    %53 = arith.truncf %52 : vector<256x128xf32> to vector<256x128xbf16>
    %c1_56 = arith.constant 1 : index
    %c2_57 = arith.constant 2 : index
    %c0_58 = arith.constant 0 : index
    %c0_59 = arith.constant 0 : index
    %54 = vector.load %arg4[%c1_56, %c2_57, %c0_58, %c0_59] : memref<3x3x128x32xbf16, #tpu.memory_space<vmem>>, vector<1x1x128x32xbf16>
    %55 = vector.shape_cast %54 : vector<1x1x128x32xbf16> to vector<128x32xbf16>
    %cst_60 = arith.constant dense<0.000000e+00> : vector<256x32xf32>
    %56 = tpu.matmul %53, %55, %cst_60 {dimension_numbers = #tpu.dot_dimension_numbers<[1], [0], [0], [1], [0, 0, 1, 1], [], []>} : vector<256x128xbf16>, vector<128x32xbf16>, vector<256x32xf32> -> vector<256x32xf32>
    %57 = arith.addf %50, %56 : vector<256x32xf32>
    %c2_61 = arith.constant 2 : index
    %c0_62 = arith.constant 0 : index
    %c0_63 = arith.constant 0 : index
    %58 = vector.load %arg6[%c2_61, %c0_62, %c0_63] : memref<18x18x128xf32, #tpu.memory_space<vmem>>, vector<16x16x128xf32>
    %59 = vector.shape_cast %58 : vector<16x16x128xf32> to vector<256x128xf32>
    %60 = arith.truncf %59 : vector<256x128xf32> to vector<256x128xbf16>
    %c2_64 = arith.constant 2 : index
    %c0_65 = arith.constant 0 : index
    %c0_66 = arith.constant 0 : index
    %c0_67 = arith.constant 0 : index
    %61 = vector.load %arg4[%c2_64, %c0_65, %c0_66, %c0_67] : memref<3x3x128x32xbf16, #tpu.memory_space<vmem>>, vector<1x1x128x32xbf16>
    %62 = vector.shape_cast %61 : vector<1x1x128x32xbf16> to vector<128x32xbf16>
    %cst_68 = arith.constant dense<0.000000e+00> : vector<256x32xf32>
    %63 = tpu.matmul %60, %62, %cst_68 {dimension_numbers = #tpu.dot_dimension_numbers<[1], [0], [0], [1], [0, 0, 1, 1], [], []>} : vector<256x128xbf16>, vector<128x32xbf16>, vector<256x32xf32> -> vector<256x32xf32>
    %64 = arith.addf %57, %63 : vector<256x32xf32>
    %c2_69 = arith.constant 2 : index
    %c1_70 = arith.constant 1 : index
    %c0_71 = arith.constant 0 : index
    %65 = vector.load %arg6[%c2_69, %c1_70, %c0_71] : memref<18x18x128xf32, #tpu.memory_space<vmem>>, vector<16x16x128xf32>
    %66 = vector.shape_cast %65 : vector<16x16x128xf32> to vector<256x128xf32>
    %67 = arith.truncf %66 : vector<256x128xf32> to vector<256x128xbf16>
    %c2_72 = arith.constant 2 : index
    %c1_73 = arith.constant 1 : index
    %c0_74 = arith.constant 0 : index
    %c0_75 = arith.constant 0 : index
    %68 = vector.load %arg4[%c2_72, %c1_73, %c0_74, %c0_75] : memref<3x3x128x32xbf16, #tpu.memory_space<vmem>>, vector<1x1x128x32xbf16>
    %69 = vector.shape_cast %68 : vector<1x1x128x32xbf16> to vector<128x32xbf16>
    %cst_76 = arith.constant dense<0.000000e+00> : vector<256x32xf32>
    %70 = tpu.matmul %67, %69, %cst_76 {dimension_numbers = #tpu.dot_dimension_numbers<[1], [0], [0], [1], [0, 0, 1, 1], [], []>} : vector<256x128xbf16>, vector<128x32xbf16>, vector<256x32xf32> -> vector<256x32xf32>
    %71 = arith.addf %64, %70 : vector<256x32xf32>
    %c2_77 = arith.constant 2 : index
    %c2_78 = arith.constant 2 : index
    %c0_79 = arith.constant 0 : index
    %72 = vector.load %arg6[%c2_77, %c2_78, %c0_79] : memref<18x18x128xf32, #tpu.memory_space<vmem>>, vector<16x16x128xf32>
    %73 = vector.shape_cast %72 : vector<16x16x128xf32> to vector<256x128xf32>
    %74 = arith.truncf %73 : vector<256x128xf32> to vector<256x128xbf16>
    %c2_80 = arith.constant 2 : index
    %c2_81 = arith.constant 2 : index
    %c0_82 = arith.constant 0 : index
    %c0_83 = arith.constant 0 : index
    %75 = vector.load %arg4[%c2_80, %c2_81, %c0_82, %c0_83] : memref<3x3x128x32xbf16, #tpu.memory_space<vmem>>, vector<1x1x128x32xbf16>
    %76 = vector.shape_cast %75 : vector<1x1x128x32xbf16> to vector<128x32xbf16>
    %cst_84 = arith.constant dense<0.000000e+00> : vector<256x32xf32>
    %77 = tpu.matmul %74, %76, %cst_84 {dimension_numbers = #tpu.dot_dimension_numbers<[1], [0], [0], [1], [0, 0, 1, 1], [], []>} : vector<256x128xbf16>, vector<128x32xbf16>, vector<256x32xf32> -> vector<256x32xf32>
    %78 = arith.addf %71, %77 : vector<256x32xf32>
    %79 = vector.shape_cast %78 : vector<256x32xf32> to vector<16x16x32xf32>
    %c0_85 = arith.constant 0 : index
    %c0_86 = arith.constant 0 : index
    %c0_87 = arith.constant 0 : index
    %c0_88 = arith.constant 0 : index
    %80 = vector.load %arg5[%c0_85, %c0_86, %c0_87, %c0_88] : memref<1x16x16x32xf32, #tpu.memory_space<vmem>>, vector<1x16x16x32xf32>
    %81 = vector.shape_cast %80 : vector<1x16x16x32xf32> to vector<16x16x32xf32>
    %82 = vector.shape_cast %79 : vector<16x16x32xf32> to vector<1x16x16x32xf32>
    tpu.vector_store %arg5[%c0_85, %c0_86, %c0_87, %c0_88], %82 {strides = array<i32>} : memref<1x16x16x32xf32, #tpu.memory_space<vmem>>, vector<1x16x16x32xf32>,
    return
  }
  func.func @transform_0(%arg0: i32) -> (i32, i32, i32, i32) {
    %c0_i32 = arith.constant 0 : i32
    %c0_i32_0 = arith.constant 0 : i32
    %c0_i32_1 = arith.constant 0 : i32
    %c0_i32_2 = arith.constant 0 : i32
    return %arg0, %c0_i32, %c0_i32_0, %c0_i32_1 : i32, i32, i32, i32
  }
  func.func @transform_1(%arg0: i32) -> (i32, i32) {
    %c0_i32 = arith.constant 0 : i32
    %c0_i32_0 = arith.constant 0 : i32
    %c0_i32_1 = arith.constant 0 : i32
    return %c0_i32, %c0_i32_0 : i32, i32
  }
  func.func @transform_2(%arg0: i32) -> (i32, i32) {
    %c0_i32 = arith.constant 0 : i32
    %c0_i32_0 = arith.constant 0 : i32
    %c0_i32_1 = arith.constant 0 : i32
    return %c0_i32, %c0_i32_0 : i32, i32
  }
  func.func @transform_3(%arg0: i32) -> (i32, i32, i32, i32) {
    %c0_i32 = arith.constant 0 : i32
    %c0_i32_0 = arith.constant 0 : i32
    %c0_i32_1 = arith.constant 0 : i32
    %c0_i32_2 = arith.constant 0 : i32
    %c0_i32_3 = arith.constant 0 : i32
    return %c0_i32, %c0_i32_0, %c0_i32_1, %c0_i32_2 : i32, i32, i32, i32
  }
  func.func @transform_4(%arg0: i32) -> (i32, i32, i32, i32) {
    %c0_i32 = arith.constant 0 : i32
    %c0_i32_0 = arith.constant 0 : i32
    %c0_i32_1 = arith.constant 0 : i32
    %c0_i32_2 = arith.constant 0 : i32
    return %arg0, %c0_i32, %c0_i32_0, %c0_i32_1 : i32, i32, i32, i32
  }
}

</mosaic_0001>

<llo_original>
// kernel: bottleneck_forward.3
$region0: #{bottleneck_forward.3}
  #allocation0 [shape = 'u32[]', space=smem, size = 0x4, offset = 0x4, fixed_abs, tag = 'smem constant byte address 0x4 - core index']
  #allocation1 [shape = 'u32[144,128]{1,0:T(1,128)}', space=vmem, size = 0x12000, scoped, tag = 'internal scratch']
  #allocation2 [shape = 'f32[8,64]{1,0:T(8,128)}', space=vmem, size = 0x1000, scoped, tag = 'scratch operand']
  #allocation3 [shape = 'f32[8,64]{1,0:T(8,128)}', space=vmem, size = 0x1000, scoped, tag = 'scratch operand']
  %s0 = inlined_call_operand.hbm [shape: f32[512,64], index: 0, kind: input, shape index: {}]
  %s1 = inlined_call_operand.vmem [shape: f32[1,64], index: 1, kind: output, shape index: {0}]
  %s2 = inlined_call_operand.vmem [shape: f32[1,64], index: 2, kind: output, shape index: {1}]
  %3 = xla_tuple %s1, %s2
  %s4 = sld [smem:[#allocation0]]
  $region34: #{bottleneck_forward.3} parent=0
    _
  %s6 = ssub.s32 1, %s4
  %s7 = scalar_select 0, %s6, %s4
  $region1: #{bottleneck_forward.3} parent=0
    #allocation4 [shape = 'u8[262144]{0}', space=vmem, size = 0x40000, scoped, tag = 'input window, operand 0, single buffered']
    #allocation5 [shape = 's32[1]{0}', space=sflag, size = 0x4, scoped, tag = 'scoped memory for bottleneck_forward.3']
    %8 = vsyncpa [#allocation5], 0
    // Predicated region
    $region2: #{bottleneck_forward.3} parent=1 // pred_check
      _
    $region3: #{bottleneck_forward.3} parent=1 // pred_check_branch
      %10 = sbr.rel (0) target = $region5
    $region4: #{bottleneck_forward.3} parent=1 // pred_region
      %s12 = ssub.s32 8192, 8192
      %13 = vsyncadd [#allocation5], %s12
      %s14 = sshll.u32 [#allocation4], 4
      %s15 = int_to_ptr.vmem [resolvable:$true] %s14
      %20 = dma.hbm_to_vmem [thread:$0]  %s0, 8192, %s15, [#allocation5], 128, 128, 8
    $region5: #{bottleneck_forward.3} parent=1 // pred_fallthru
      _
    // Predicated region
    $region6: #{bottleneck_forward.3} parent=1 // pred_check
      _
    $region7: #{bottleneck_forward.3} parent=1 // pred_check_branch
      %22 = sbr.rel (0) target = $region9
    $region8: #{bottleneck_forward.3} parent=1 // pred_region
      %23 = dma.done [#allocation5], 8192
    $region9: #{bottleneck_forward.3} parent=1 // pred_fallthru
      _
    %p24 = scmp.eq.s32.totalorder 0, 0
    // Predicated region
    $region10: #{bottleneck_forward.3} parent=1 // pred_check
      %p25 = pneg %p24
    $region11: #{bottleneck_forward.3} parent=1 // pred_check_branch
      %27 = sbr.rel (%p25) target = $region13
    $region12: #{bottleneck_forward.3} parent=1 // pred_region
      %vm28 = vcmask 523264
      %29 = vst.msk [vmem:[#allocation2] sm:$0xff] %vm28, 0.0
      %30 = vst.msk [vmem:[#allocation3] sm:$0xff] %vm28, 0.0
    $region13: #{bottleneck_forward.3} parent=1 // pred_fallthru
      _
    %v31 = vld [vmem:[#allocation4] sm:$0xff]
    %v32 = vld [vmem:[#allocation4 + $0x8] sm:$0xff]
    %v33 = vld [vmem:[#allocation4 + $0x10] sm:$0xff]
    %v34 = vld [vmem:[#allocation4 + $0x18] sm:$0xff]
    %v35 = vld [vmem:[#allocation4 + $0x20] sm:$0xff]
    %v36 = vld [vmem:[#allocation4 + $0x28] sm:$0xff]
    %v37 = vld [vmem:[#allocation4 + $0x30] sm:$0xff]
    %v38 = vld [vmem:[#allocation4 + $0x38] sm:$0xff]
    %v39 = vld [vmem:[#allocation4 + $0x40] sm:$0xff]
    %v40 = vld [vmem:[#allocation4 + $0x48] sm:$0xff]
    %v41 = vld [vmem:[#allocation4 + $0x50] sm:$0xff]
    %v42 = vld [vmem:[#allocation4 + $0x58] sm:$0xff]
    %v43 = vld [vmem:[#allocation4 + $0x60] sm:$0xff]
    %v44 = vld [vmem:[#allocation4 + $0x68] sm:$0xff]
    %v45 = vld [vmem:[#allocation4 + $0x70] sm:$0xff]
    %v46 = vld [vmem:[#allocation4 + $0x78] sm:$0xff]
    %v47 = vld [vmem:[#allocation4 + $0x80] sm:$0xff]
    %v48 = vld [vmem:[#allocation4 + $0x88] sm:$0xff]
    %v49 = vld [vmem:[#allocation4 + $0x90] sm:$0xff]
    %v50 = vld [vmem:[#allocation4 + $0x98] sm:$0xff]
    %v51 = vld [vmem:[#allocation4 + $0xa0] sm:$0xff]
    %v52 = vld [vmem:[#allocation4 + $0xa8] sm:$0xff]
    %v53 = vld [vmem:[#allocation4 + $0xb0] sm:$0xff]
    %v54 = vld [vmem:[#allocation4 + $0xb8] sm:$0xff]
    %v55 = vld [vmem:[#allocation4 + $0xc0] sm:$0xff]
    %v56 = vld [vmem:[#allocation4 + $0xc8] sm:$0xff]
    %v57 = vld [vmem:[#allocation4 + $0xd0] sm:$0xff]
    %v58 = vld [vmem:[#allocation4 + $0xd8] sm:$0xff]
    %v59 = vld [vmem:[#allocation4 + $0xe0] sm:$0xff]
    %v60 = vld [vmem:[#allocation4 + $0xe8] sm:$0xff]
    %v61 = vld [vmem:[#allocation4 + $0xf0] sm:$0xff]
    %v62 = vld [vmem:[#allocation4 + $0xf8] sm:$0xff]
    %v63 = vld [vmem:[#allocation4 + $0x100] sm:$0xff]
    %v64 = vld [vmem:[#allocation4 + $0x108] sm:$0xff]
    %v65 = vld [vmem:[#allocation4 + $0x110] sm:$0xff]
    %v66 = vld [vmem:[#allocation4 + $0x118] sm:$0xff]
    %v67 = vld [vmem:[#allocation4 + $0x120] sm:$0xff]
    %v68 = vld [vmem:[#allocation4 + $0x128] sm:$0xff]
    %v69 = vld [vmem:[#allocation4 + $0x130] sm:$0xff]
    %v70 = vld [vmem:[#allocation4 + $0x138] sm:$0xff]
    %v71 = vld [vmem:[#allocation4 + $0x140] sm:$0xff]
    %v72 = vld [vmem:[#allocation4 + $0x148] sm:$0xff]
    %v73 = vld [vmem:[#allocation4 + $0x150] sm:$0xff]
    %v74 = vld [vmem:[#allocation4 + $0x158] sm:$0xff]
    %v75 = vld [vmem:[#allocation4 + $0x160] sm:$0xff]
    %v76 = vld [vmem:[#allocation4 + $0x168] sm:$0xff]
    %v77 = vld [vmem:[#allocation4 + $0x170] sm:$0xff]
    %v78 = vld [vmem:[#allocation4 + $0x178] sm:$0xff]
    %v79 = vld [vmem:[#allocation4 + $0x180] sm:$0xff]
    %v80 = vld [vmem:[#allocation4 + $0x188] sm:$0xff]
    %v81 = vld [vmem:[#allocation4 + $0x190] sm:$0xff]
    %v82 = vld [vmem:[#allocation4 + $0x198] sm:$0xff]
    %v83 = vld [vmem:[#allocation4 + $0x1a0] sm:$0xff]
    %v84 = vld [vmem:[#allocation4 + $0x1a8] sm:$0xff]
    %v85 = vld [vmem:[#allocation4 + $0x1b0] sm:$0xff]
    %v86 = vld [vmem:[#allocation4 + $0x1b8] sm:$0xff]
    %v87 = vld [vmem:[#allocation4 + $0x1c0] sm:$0xff]
    %v88 = vld [vmem:[#allocation4 + $0x1c8] sm:$0xff]
    %v89 = vld [vmem:[#allocation4 + $0x1d0] sm:$0xff]
    %v90 = vld [vmem:[#allocation4 + $0x1d8] sm:$0xff]
    %v91 = vld [vmem:[#allocation4 + $0x1e0] sm:$0xff]
    %v92 = vld [vmem:[#allocation4 + $0x1e8] sm:$0xff]
    %v93 = vld [vmem:[#allocation4 + $0x1f0] sm:$0xff]
    %v94 = vld [vmem:[#allocation4 + $0x1f8] sm:$0xff]
    %v95 = vld [vmem:[#allocation2] sm:$0xff]
    %vm96 = vcmask 523264
    %v97 = vsel %vm96, %v31, 0.0
    %v98 = vsel %vm96, %v32, 0.0
    %v99 = vadd.f32 %v97, %v98
    %v100 = vsel %vm96, %v33, 0.0
    %v101 = vadd.f32 %v99, %v100
    %v102 = vsel %vm96, %v34, 0.0
    %v103 = vadd.f32 %v101, %v102
    %v104 = vsel %vm96, %v35, 0.0
    %v105 = vadd.f32 %v103, %v104
    %v106 = vsel %vm96, %v36, 0.0
    %v107 = vadd.f32 %v105, %v106
    %v108 = vsel %vm96, %v37, 0.0
    %v109 = vadd.f32 %v107, %v108
    %v110 = vsel %vm96, %v38, 0.0
    %v111 = vadd.f32 %v109, %v110
    %v112 = vsel %vm96, %v39, 0.0
    %v113 = vadd.f32 %v111, %v112
    %v114 = vsel %vm96, %v40, 0.0
    %v115 = vadd.f32 %v113, %v114
    %v116 = vsel %vm96, %v41, 0.0
    %v117 = vadd.f32 %v115, %v116
    %v118 = vsel %vm96, %v42, 0.0
    %v119 = vadd.f32 %v117, %v118
    %v120 = vsel %vm96, %v43, 0.0
    %v121 = vadd.f32 %v119, %v120
    %v122 = vsel %vm96, %v44, 0.0
    %v123 = vadd.f32 %v121, %v122
    %v124 = vsel %vm96, %v45, 0.0
    %v125 = vadd.f32 %v123, %v124
    %v126 = vsel %vm96, %v46, 0.0
    %v127 = vadd.f32 %v125, %v126
    %v128 = vsel %vm96, %v47, 0.0
    %v129 = vadd.f32 %v127, %v128
    %v130 = vsel %vm96, %v48, 0.0
    %v131 = vadd.f32 %v129, %v130
    %v132 = vsel %vm96, %v49, 0.0
    %v133 = vadd.f32 %v131, %v132
    %v134 = vsel %vm96, %v50, 0.0
    %v135 = vadd.f32 %v133, %v134
    %v136 = vsel %vm96, %v51, 0.0
    %v137 = vadd.f32 %v135, %v136
    %v138 = vsel %vm96, %v52, 0.0
    %v139 = vadd.f32 %v137, %v138
    %v140 = vsel %vm96, %v53, 0.0
    %v141 = vadd.f32 %v139, %v140
    %v142 = vsel %vm96, %v54, 0.0
    %v143 = vadd.f32 %v141, %v142
    %v144 = vsel %vm96, %v55, 0.0
    %v145 = vadd.f32 %v143, %v144
    %v146 = vsel %vm96, %v56, 0.0
    %v147 = vadd.f32 %v145, %v146
    %v148 = vsel %vm96, %v57, 0.0
    %v149 = vadd.f32 %v147, %v148
    %v150 = vsel %vm96, %v58, 0.0
    %v151 = vadd.f32 %v149, %v150
    %v152 = vsel %vm96, %v59, 0.0
    %v153 = vadd.f32 %v151, %v152
    %v154 = vsel %vm96, %v60, 0.0
    %v155 = vadd.f32 %v153, %v154
    %v156 = vsel %vm96, %v61, 0.0
    %v157 = vadd.f32 %v155, %v156
    %v158 = vsel %vm96, %v62, 0.0
    %v159 = vadd.f32 %v157, %v158
    %v160 = vsel %vm96, %v63, 0.0
    %v161 = vadd.f32 %v159, %v160
    %v162 = vsel %vm96, %v64, 0.0
    %v163 = vadd.f32 %v161, %v162
    %v164 = vsel %vm96, %v65, 0.0
    %v165 = vadd.f32 %v163, %v164
    %v166 = vsel %vm96, %v66, 0.0
    %v167 = vadd.f32 %v165, %v166
    %v168 = vsel %vm96, %v67, 0.0
    %v169 = vadd.f32 %v167, %v168
    %v170 = vsel %vm96, %v68, 0.0
    %v171 = vadd.f32 %v169, %v170
    %v172 = vsel %vm96, %v69, 0.0
    %v173 = vadd.f32 %v171, %v172
    %v174 = vsel %vm96, %v70, 0.0
    %v175 = vadd.f32 %v173, %v174
    %v176 = vsel %vm96, %v71, 0.0
    %v177 = vadd.f32 %v175, %v176
    %v178 = vsel %vm96, %v72, 0.0
    %v179 = vadd.f32 %v177, %v178
    %v180 = vsel %vm96, %v73, 0.0
    %v181 = vadd.f32 %v179, %v180
    %v182 = vsel %vm96, %v74, 0.0
    %v183 = vadd.f32 %v181, %v182
    %v184 = vsel %vm96, %v75, 0.0
    %v185 = vadd.f32 %v183, %v184
    %v186 = vsel %vm96, %v76, 0.0
    %v187 = vadd.f32 %v185, %v186
    %v188 = vsel %vm96, %v77, 0.0
    %v189 = vadd.f32 %v187, %v188
    %v190 = vsel %vm96, %v78, 0.0
    %v191 = vadd.f32 %v189, %v190
    %v192 = vsel %vm96, %v79, 0.0
    %v193 = vadd.f32 %v191, %v192
    %v194 = vsel %vm96, %v80, 0.0
    %v195 = vadd.f32 %v193, %v194
    %v196 = vsel %vm96, %v81, 0.0
    %v197 = vadd.f32 %v195, %v196
    %v198 = vsel %vm96, %v82, 0.0
    %v199 = vadd.f32 %v197, %v198
    %v200 = vsel %vm96, %v83, 0.0
    %v201 = vadd.f32 %v199, %v200
    %v202 = vsel %vm96, %v84, 0.0
    %v203 = vadd.f32 %v201, %v202
    %v204 = vsel %vm96, %v85, 0.0
    %v205 = vadd.f32 %v203, %v204
    %v206 = vsel %vm96, %v86, 0.0
    %v207 = vadd.f32 %v205, %v206
    %v208 = vsel %vm96, %v87, 0.0
    %v209 = vadd.f32 %v207, %v208
    %v210 = vsel %vm96, %v88, 0.0
    %v211 = vadd.f32 %v209, %v210
    %v212 = vsel %vm96, %v89, 0.0
    %v213 = vadd.f32 %v211, %v212
    %v214 = vsel %vm96, %v90, 0.0
    %v215 = vadd.f32 %v213, %v214
    %v216 = vsel %vm96, %v91, 0.0
    %v217 = vadd.f32 %v215, %v216
    %v218 = vsel %vm96, %v92, 0.0
    %v219 = vadd.f32 %v217, %v218
    %v220 = vsel %vm96, %v93, 0.0
    %v221 = vadd.f32 %v219, %v220
    %v222 = vsel %vm96, %v94, 0.0
    %v223 = vadd.f32 %v221, %v222
    %v224 = vadd.f32 %v95, %v223
    %225 = vst.msk [vmem:[#allocation2] sm:$0xff] %vm96, %v224
    %v226 = vld [vmem:[#allocation3] sm:$0xff]
    %v227 = vmul.f32 %v31, %v31
    %v228 = vmul.f32 %v32, %v32
    %v229 = vmul.f32 %v33, %v33
    %v230 = vmul.f32 %v34, %v34
    %v231 = vmul.f32 %v35, %v35
    %v232 = vmul.f32 %v36, %v36
    %v233 = vmul.f32 %v37, %v37
    %v234 = vmul.f32 %v38, %v38
    %v235 = vmul.f32 %v39, %v39
    %v236 = vmul.f32 %v40, %v40
    %v237 = vmul.f32 %v41, %v41
    %v238 = vmul.f32 %v42, %v42
    %v239 = vmul.f32 %v43, %v43
    %v240 = vmul.f32 %v44, %v44
    %v241 = vmul.f32 %v45, %v45
    %v242 = vmul.f32 %v46, %v46
    %v243 = vmul.f32 %v47, %v47
    %v244 = vmul.f32 %v48, %v48
    %v245 = vmul.f32 %v49, %v49
    %v246 = vmul.f32 %v50, %v50
    %v247 = vmul.f32 %v51, %v51
    %v248 = vmul.f32 %v52, %v52
    %v249 = vmul.f32 %v53, %v53
    %v250 = vmul.f32 %v54, %v54
    %v251 = vmul.f32 %v55, %v55
    %v252 = vmul.f32 %v56, %v56
    %v253 = vmul.f32 %v57, %v57
    %v254 = vmul.f32 %v58, %v58
    %v255 = vmul.f32 %v59, %v59
    %v256 = vmul.f32 %v60, %v60
    %v257 = vmul.f32 %v61, %v61
    %v258 = vmul.f32 %v62, %v62
    %v259 = vmul.f32 %v63, %v63
    %v260 = vmul.f32 %v64, %v64
    %v261 = vmul.f32 %v65, %v65
    %v262 = vmul.f32 %v66, %v66
    %v263 = vmul.f32 %v67, %v67
    %v264 = vmul.f32 %v68, %v68
    %v265 = vmul.f32 %v69, %v69
    %v266 = vmul.f32 %v70, %v70
    %v267 = vmul.f32 %v71, %v71
    %v268 = vmul.f32 %v72, %v72
    %v269 = vmul.f32 %v73, %v73
    %v270 = vmul.f32 %v74, %v74
    %v271 = vmul.f32 %v75, %v75
    %v272 = vmul.f32 %v76, %v76
    %v273 = vmul.f32 %v77, %v77
    %v274 = vmul.f32 %v78, %v78
    %v275 = vmul.f32 %v79, %v79
    %v276 = vmul.f32 %v80, %v80
    %v277 = vmul.f32 %v81, %v81
    %v278 = vmul.f32 %v82, %v82
    %v279 = vmul.f32 %v83, %v83
    %v280 = vmul.f32 %v84, %v84
    %v281 = vmul.f32 %v85, %v85
    %v282 = vmul.f32 %v86, %v86
    %v283 = vmul.f32 %v87, %v87
    %v284 = vmul.f32 %v88, %v88
    %v285 = vmul.f32 %v89, %v89
    %v286 = vmul.f32 %v90, %v90
    %v287 = vmul.f32 %v91, %v91
    %v288 = vmul.f32 %v92, %v92
    %v289 = vmul.f32 %v93, %v93
    %v290 = vmul.f32 %v94, %v94
    %v291 = vsel %vm96, %v227, 0.0
    %v292 = vsel %vm96, %v228, 0.0
    %v293 = vadd.f32 %v291, %v292
    %v294 = vsel %vm96, %v229, 0.0
    %v295 = vadd.f32 %v293, %v294
    %v296 = vsel %vm96, %v230, 0.0
    %v297 = vadd.f32 %v295, %v296
    %v298 = vsel %vm96, %v231, 0.0
    %v299 = vadd.f32 %v297, %v298
    %v300 = vsel %vm96, %v232, 0.0
    %v301 = vadd.f32 %v299, %v300
    %v302 = vsel %vm96, %v233, 0.0
    %v303 = vadd.f32 %v301, %v302
    %v304 = vsel %vm96, %v234, 0.0
    %v305 = vadd.f32 %v303, %v304
    %v306 = vsel %vm96, %v235, 0.0
    %v307 = vadd.f32 %v305, %v306
    %v308 = vsel %vm96, %v236, 0.0
    %v309 = vadd.f32 %v307, %v308
    %v310 = vsel %vm96, %v237, 0.0
    %v311 = vadd.f32 %v309, %v310
    %v312 = vsel %vm96, %v238, 0.0
    %v313 = vadd.f32 %v311, %v312
    %v314 = vsel %vm96, %v239, 0.0
    %v315 = vadd.f32 %v313, %v314
    %v316 = vsel %vm96, %v240, 0.0
    %v317 = vadd.f32 %v315, %v316
    %v318 = vsel %vm96, %v241, 0.0
    %v319 = vadd.f32 %v317, %v318
    %v320 = vsel %vm96, %v242, 0.0
    %v321 = vadd.f32 %v319, %v320
    %v322 = vsel %vm96, %v243, 0.0
    %v323 = vadd.f32 %v321, %v322
    %v324 = vsel %vm96, %v244, 0.0
    %v325 = vadd.f32 %v323, %v324
    %v326 = vsel %vm96, %v245, 0.0
    %v327 = vadd.f32 %v325, %v326
    %v328 = vsel %vm96, %v246, 0.0
    %v329 = vadd.f32 %v327, %v328
    %v330 = vsel %vm96, %v247, 0.0
    %v331 = vadd.f32 %v329, %v330
    %v332 = vsel %vm96, %v248, 0.0
    %v333 = vadd.f32 %v331, %v332
    %v334 = vsel %vm96, %v249, 0.0
    %v335 = vadd.f32 %v333, %v334
    %v336 = vsel %vm96, %v250, 0.0
    %v337 = vadd.f32 %v335, %v336
    %v338 = vsel %vm96, %v251, 0.0
    %v339 = vadd.f32 %v337, %v338
    %v340 = vsel %vm96, %v252, 0.0
    %v341 = vadd.f32 %v339, %v340
    %v342 = vsel %vm96, %v253, 0.0
    %v343 = vadd.f32 %v341, %v342
    %v344 = vsel %vm96, %v254, 0.0
    %v345 = vadd.f32 %v343, %v344
    %v346 = vsel %vm96, %v255, 0.0
    %v347 = vadd.f32 %v345, %v346
    %v348 = vsel %vm96, %v256, 0.0
    %v349 = vadd.f32 %v347, %v348
    %v350 = vsel %vm96, %v257, 0.0
    %v351 = vadd.f32 %v349, %v350
    %v352 = vsel %vm96, %v258, 0.0
    %v353 = vadd.f32 %v351, %v352
    %v354 = vsel %vm96, %v259, 0.0
    %v355 = vadd.f32 %v353, %v354
    %v356 = vsel %vm96, %v260, 0.0
    %v357 = vadd.f32 %v355, %v356
    %v358 = vsel %vm96, %v261, 0.0
    %v359 = vadd.f32 %v357, %v358
    %v360 = vsel %vm96, %v262, 0.0
    %v361 = vadd.f32 %v359, %v360
    %v362 = vsel %vm96, %v263, 0.0
    %v363 = vadd.f32 %v361, %v362
    %v364 = vsel %vm96, %v264, 0.0
    %v365 = vadd.f32 %v363, %v364
    %v366 = vsel %vm96, %v265, 0.0
    %v367 = vadd.f32 %v365, %v366
    %v368 = vsel %vm96, %v266, 0.0
    %v369 = vadd.f32 %v367, %v368
    %v370 = vsel %vm96, %v267, 0.0
    %v371 = vadd.f32 %v369, %v370
    %v372 = vsel %vm96, %v268, 0.0
    %v373 = vadd.f32 %v371, %v372
    %v374 = vsel %vm96, %v269, 0.0
    %v375 = vadd.f32 %v373, %v374
    %v376 = vsel %vm96, %v270, 0.0
    %v377 = vadd.f32 %v375, %v376
    %v378 = vsel %vm96, %v271, 0.0
    %v379 = vadd.f32 %v377, %v378
    %v380 = vsel %vm96, %v272, 0.0
    %v381 = vadd.f32 %v379, %v380
    %v382 = vsel %vm96, %v273, 0.0
    %v383 = vadd.f32 %v381, %v382
    %v384 = vsel %vm96, %v274, 0.0
    %v385 = vadd.f32 %v383, %v384
    %v386 = vsel %vm96, %v275, 0.0
    %v387 = vadd.f32 %v385, %v386
    %v388 = vsel %vm96, %v276, 0.0
    %v389 = vadd.f32 %v387, %v388
    %v390 = vsel %vm96, %v277, 0.0
    %v391 = vadd.f32 %v389, %v390
    %v392 = vsel %vm96, %v278, 0.0
    %v393 = vadd.f32 %v391, %v392
    %v394 = vsel %vm96, %v279, 0.0
    %v395 = vadd.f32 %v393, %v394
    %v396 = vsel %vm96, %v280, 0.0
    %v397 = vadd.f32 %v395, %v396
    %v398 = vsel %vm96, %v281, 0.0
    %v399 = vadd.f32 %v397, %v398
    %v400 = vsel %vm96, %v282, 0.0
    %v401 = vadd.f32 %v399, %v400
    %v402 = vsel %vm96, %v283, 0.0
    %v403 = vadd.f32 %v401, %v402
    %v404 = vsel %vm96, %v284, 0.0
    %v405 = vadd.f32 %v403, %v404
    %v406 = vsel %vm96, %v285, 0.0
    %v407 = vadd.f32 %v405, %v406
    %v408 = vsel %vm96, %v286, 0.0
    %v409 = vadd.f32 %v407, %v408
    %v410 = vsel %vm96, %v287, 0.0
    %v411 = vadd.f32 %v409, %v410
    %v412 = vsel %vm96, %v288, 0.0
    %v413 = vadd.f32 %v411, %v412
    %v414 = vsel %vm96, %v289, 0.0
    %v415 = vadd.f32 %v413, %v414
    %v416 = vsel %vm96, %v290, 0.0
    %v417 = vadd.f32 %v415, %v416
    %v418 = vadd.f32 %v226, %v417
    %419 = vst.msk [vmem:[#allocation3] sm:$0xff] %vm96, %v418
    // Predicated region
    $region14: #{bottleneck_forward.3} parent=1 // pred_check
      %p420 = pneg %p24
    $region15: #{bottleneck_forward.3} parent=1 // pred_check_branch
      %422 = sbr.rel (%p420) target = $region17
    $region16: #{bottleneck_forward.3} parent=1 // pred_region
      %v423 = vld [vmem:[#allocation2] sm:$0xff]
      %v424 = vsel %vm96, %v423, 0.0
      %v425 = vrot.slane %v424, 4
      %v426 = vadd.f32 %v424, %v425
      %v427 = vrot.slane %v426, 2
      %v428 = vadd.f32 %v426, %v427
      %v429 = vrot.slane %v428, 1
      %v430 = vadd.f32 %v428, %v429
      %vm431 = vcmask 516096
      %432 = vst.msk [vmem:[%s1] sm:$0x1] %vm431, %v430
      %v433 = vld [vmem:[#allocation3] sm:$0xff]
      %v434 = vsel %vm96, %v433, 0.0
      %v435 = vrot.slane %v434, 4
      %v436 = vadd.f32 %v434, %v435
      %v437 = vrot.slane %v436, 2
      %v438 = vadd.f32 %v436, %v437
      %v439 = vrot.slane %v438, 1
      %v440 = vadd.f32 %v438, %v439
      %441 = vst.msk [vmem:[%s2] sm:$0x1] %vm431, %v440
    $region17: #{bottleneck_forward.3} parent=1 // pred_fallthru
      _
    // Predicated region
    $region18: #{bottleneck_forward.3} parent=1 // pred_check
      _
    $region19: #{bottleneck_forward.3} parent=1 // pred_check_branch
      %443 = sbr.rel (0) target = $region21
    $region20: #{bottleneck_forward.3} parent=1 // pred_region
      _
    $region21: #{bottleneck_forward.3} parent=1 // pred_fallthru
      _
    // Predicated region
    $region22: #{bottleneck_forward.3} parent=1 // pred_check
      _
    $region23: #{bottleneck_forward.3} parent=1 // pred_check_branch
      %445 = sbr.rel (0) target = $region25
    $region24: #{bottleneck_forward.3} parent=1 // pred_region
      _
    $region25: #{bottleneck_forward.3} parent=1 // pred_fallthru
      _
    // Predicated region
    $region26: #{bottleneck_forward.3} parent=1 // pred_check
      _
    $region27: #{bottleneck_forward.3} parent=1 // pred_check_branch
      %447 = sbr.rel (0) target = $region29
    $region28: #{bottleneck_forward.3} parent=1 // pred_region
      _
    $region29: #{bottleneck_forward.3} parent=1 // pred_fallthru
      _
    // Predicated region
    $region30: #{bottleneck_forward.3} parent=1 // pred_check
      _
    $region31: #{bottleneck_forward.3} parent=1 // pred_check_branch
      %449 = sbr.rel (0) target = $region33
    $region32: #{bottleneck_forward.3} parent=1 // pred_region
      _
    $region33: #{bottleneck_forward.3} parent=1 // pred_fallthru
      _
    %450 = vsyncpa [#allocation5], 1

// kernel: bottleneck_forward.4
$region0: #{bottleneck_forward.4}
  #allocation0 [shape = 'u32[]', space=smem, size = 0x4, offset = 0x4, fixed_abs, tag = 'smem constant byte address 0x4 - core index']
  #allocation1 [shape = 'u32[144,128]{1,0:T(1,128)}', space=vmem, size = 0x12000, scoped, tag = 'internal scratch']
  #allocation2 [shape = 'f32[8,128]{1,0:T(8,128)}', space=vmem, size = 0x1000, scoped, tag = 'scratch operand']
  #allocation3 [shape = 'f32[8,128]{1,0:T(8,128)}', space=vmem, size = 0x1000, scoped, tag = 'scratch operand']
  %s0 = inlined_call_operand.vmem [shape: f32[512,64], index: 0, kind: input, shape index: {}]
  %s1 = inlined_call_operand.vmem [shape: f32[1,64], index: 1, kind: input, shape index: {}]
  %s2 = inlined_call_operand.vmem [shape: f32[1,64], index: 2, kind: input, shape index: {}]
  %s3 = inlined_call_operand.vmem [shape: bf16[64,128], index: 3, kind: input, shape index: {}]
  %s4 = inlined_call_operand.vmem [shape: f32[512,128], index: 4, kind: output, shape index: {0}]
  %s5 = inlined_call_operand.vmem [shape: f32[1,128], index: 5, kind: output, shape index: {1}]
  %s6 = inlined_call_operand.vmem [shape: f32[1,128], index: 6, kind: output, shape index: {2}]
  %7 = xla_tuple %s4, %s5, %s6
  %s8 = sld [smem:[#allocation0]]
  $region50: #{bottleneck_forward.4} parent=0
    _
  %s10 = ssub.s32 1, %s8
  %s11 = scalar_select 0, %s10, %s8
  // Predicated region
  $region2: #{bottleneck_forward.4} parent=0 // pred_check
    _
  $region3: #{bottleneck_forward.4} parent=0 // pred_check_branch
    %13 = sbr.rel (0) target = $region5
  $region4: #{bottleneck_forward.4} parent=0 // pred_region
    _
  $region5: #{bottleneck_forward.4} parent=0 // pred_fallthru
    _
  // Predicated region
  $region6: #{bottleneck_forward.4} parent=0 // pred_check
    _
  $region7: #{bottleneck_forward.4} parent=0 // pred_check_branch
    %15 = sbr.rel (0) target = $region9
  $region8: #{bottleneck_forward.4} parent=0 // pred_region
    _
  $region9: #{bottleneck_forward.4} parent=0 // pred_fallthru
    _
  // Predicated region
  $region10: #{bottleneck_forward.4} parent=0 // pred_check
    _
  $region11: #{bottleneck_forward.4} parent=0 // pred_check_branch
    %17 = sbr.rel (0) target = $region13
  $region12: #{bottleneck_forward.4} parent=0 // pred_region
    _
  $region13: #{bottleneck_forward.4} parent=0 // pred_fallthru
    _
  // Predicated region
  $region14: #{bottleneck_forward.4} parent=0 // pred_check
    _
  $region15: #{bottleneck_forward.4} parent=0 // pred_check_branch
    %19 = sbr.rel (0) target = $region17
  $region16: #{bottleneck_forward.4} parent=0 // pred_region
    _
  $region17: #{bottleneck_forward.4} parent=0 // pred_fallthru
    _
  %p21 = scmp.eq.s32.totalorder 0, 0
  // Predicated region
  $region18: #{bottleneck_forward.4} parent=0 // pred_check
    %p22 = pneg %p21
  $region19: #{bottleneck_forward.4} parent=0 // pred_check_branch
    %24 = sbr.rel (%p22) target = $region21
  $region20: #{bottleneck_forward.4} parent=0 // pred_region
    %25 = vst [vmem:[#allocation2] sm:$0xff] 0.0
    %26 = vst [vmem:[#allocation3] sm:$0xff] 0.0
  $region21: #{bottleneck_forward.4} parent=0 // pred_fallthru
    _
  %v27 = vld [vmem:[%s0] sm:$0xff]
  %v28 = vld [vmem:[%s0 + $0x8] sm:$0xff]
  %v29 = vld [vmem:[%s0 + $0x10] sm:$0xff]
  %v30 = vld [vmem:[%s0 + $0x18] sm:$0xff]
  %v31 = vld [vmem:[%s0 + $0x20] sm:$0xff]
  %v32 = vld [vmem:[%s0 + $0x28] sm:$0xff]
  %v33 = vld [vmem:[%s0 + $0x30] sm:$0xff]
  %v34 = vld [vmem:[%s0 + $0x38] sm:$0xff]
  %v35 = vld [vmem:[%s0 + $0x40] sm:$0xff]
  %v36 = vld [vmem:[%s0 + $0x48] sm:$0xff]
  %v37 = vld [vmem:[%s0 + $0x50] sm:$0xff]
  %v38 = vld [vmem:[%s0 + $0x58] sm:$0xff]
  %v39 = vld [vmem:[%s0 + $0x60] sm:$0xff]
  %v40 = vld [vmem:[%s0 + $0x68] sm:$0xff]
  %v41 = vld [vmem:[%s0 + $0x70] sm:$0xff]
  %v42 = vld [vmem:[%s0 + $0x78] sm:$0xff]
  %v43 = vld [vmem:[%s0 + $0x80] sm:$0xff]
  %v44 = vld [vmem:[%s0 + $0x88] sm:$0xff]
  %v45 = vld [vmem:[%s0 + $0x90] sm:$0xff]
  %v46 = vld [vmem:[%s0 + $0x98] sm:$0xff]
  %v47 = vld [vmem:[%s0 + $0xa0] sm:$0xff]
  %v48 = vld [vmem:[%s0 + $0xa8] sm:$0xff]
  %v49 = vld [vmem:[%s0 + $0xb0] sm:$0xff]
  %v50 = vld [vmem:[%s0 + $0xb8] sm:$0xff]
  %v51 = vld [vmem:[%s0 + $0xc0] sm:$0xff]
  %v52 = vld [vmem:[%s0 + $0xc8] sm:$0xff]
  %v53 = vld [vmem:[%s0 + $0xd0] sm:$0xff]
  %v54 = vld [vmem:[%s0 + $0xd8] sm:$0xff]
  %v55 = vld [vmem:[%s0 + $0xe0] sm:$0xff]
  %v56 = vld [vmem:[%s0 + $0xe8] sm:$0xff]
  %v57 = vld [vmem:[%s0 + $0xf0] sm:$0xff]
  %v58 = vld [vmem:[%s0 + $0xf8] sm:$0xff]
  %v59 = vld [vmem:[%s0 + $0x100] sm:$0xff]
  %v60 = vld [vmem:[%s0 + $0x108] sm:$0xff]
  %v61 = vld [vmem:[%s0 + $0x110] sm:$0xff]
  %v62 = vld [vmem:[%s0 + $0x118] sm:$0xff]
  %v63 = vld [vmem:[%s0 + $0x120] sm:$0xff]
  %v64 = vld [vmem:[%s0 + $0x128] sm:$0xff]
  %v65 = vld [vmem:[%s0 + $0x130] sm:$0xff]
  %v66 = vld [vmem:[%s0 + $0x138] sm:$0xff]
  %v67 = vld [vmem:[%s0 + $0x140] sm:$0xff]
  %v68 = vld [vmem:[%s0 + $0x148] sm:$0xff]
  %v69 = vld [vmem:[%s0 + $0x150] sm:$0xff]
  %v70 = vld [vmem:[%s0 + $0x158] sm:$0xff]
  %v71 = vld [vmem:[%s0 + $0x160] sm:$0xff]
  %v72 = vld [vmem:[%s0 + $0x168] sm:$0xff]
  %v73 = vld [vmem:[%s0 + $0x170] sm:$0xff]
  %v74 = vld [vmem:[%s0 + $0x178] sm:$0xff]
  %v75 = vld [vmem:[%s0 + $0x180] sm:$0xff]
  %v76 = vld [vmem:[%s0 + $0x188] sm:$0xff]
  %v77 = vld [vmem:[%s0 + $0x190] sm:$0xff]
  %v78 = vld [vmem:[%s0 + $0x198] sm:$0xff]
  %v79 = vld [vmem:[%s0 + $0x1a0] sm:$0xff]
  %v80 = vld [vmem:[%s0 + $0x1a8] sm:$0xff]
  %v81 = vld [vmem:[%s0 + $0x1b0] sm:$0xff]
  %v82 = vld [vmem:[%s0 + $0x1b8] sm:$0xff]
  %v83 = vld [vmem:[%s0 + $0x1c0] sm:$0xff]
  %v84 = vld [vmem:[%s0 + $0x1c8] sm:$0xff]
  %v85 = vld [vmem:[%s0 + $0x1d0] sm:$0xff]
  %v86 = vld [vmem:[%s0 + $0x1d8] sm:$0xff]
  %v87 = vld [vmem:[%s0 + $0x1e0] sm:$0xff]
  %v88 = vld [vmem:[%s0 + $0x1e8] sm:$0xff]
  %v89 = vld [vmem:[%s0 + $0x1f0] sm:$0xff]
  %v90 = vld [vmem:[%s0 + $0x1f8] sm:$0xff]
  %v91 = vld [vmem:[%s1] sm:$0x1]
  %v93 = vlaneseq
  %v94 = vshrl.u32 %v93, 7
  %v95 = vsub.s32 0, %v94
  %v96 = vrot.slane %v91, %v95
  %v98 = vmul.f32 %v27, %v96
  %v99 = vmul.f32 %v28, %v96
  %v100 = vmul.f32 %v29, %v96
  %v101 = vmul.f32 %v30, %v96
  %v102 = vmul.f32 %v31, %v96
  %v103 = vmul.f32 %v32, %v96
  %v104 = vmul.f32 %v33, %v96
  %v105 = vmul.f32 %v34, %v96
  %v106 = vmul.f32 %v35, %v96
  %v107 = vmul.f32 %v36, %v96
  %v108 = vmul.f32 %v37, %v96
  %v109 = vmul.f32 %v38, %v96
  %v110 = vmul.f32 %v39, %v96
  %v111 = vmul.f32 %v40, %v96
  %v112 = vmul.f32 %v41, %v96
  %v113 = vmul.f32 %v42, %v96
  %v114 = vmul.f32 %v43, %v96
  %v115 = vmul.f32 %v44, %v96
  %v116 = vmul.f32 %v45, %v96
  %v117 = vmul.f32 %v46, %v96
  %v118 = vmul.f32 %v47, %v96
  %v119 = vmul.f32 %v48, %v96
  %v120 = vmul.f32 %v49, %v96
  %v121 = vmul.f32 %v50, %v96
  %v122 = vmul.f32 %v51, %v96
  %v123 = vmul.f32 %v52, %v96
  %v124 = vmul.f32 %v53, %v96
  %v125 = vmul.f32 %v54, %v96
  %v126 = vmul.f32 %v55, %v96
  %v127 = vmul.f32 %v56, %v96
  %v128 = vmul.f32 %v57, %v96
  %v129 = vmul.f32 %v58, %v96
  %v130 = vmul.f32 %v59, %v96
  %v131 = vmul.f32 %v60, %v96
  %v132 = vmul.f32 %v61, %v96
  %v133 = vmul.f32 %v62, %v96
  %v134 = vmul.f32 %v63, %v96
  %v135 = vmul.f32 %v64, %v96
  %v136 = vmul.f32 %v65, %v96
  %v137 = vmul.f32 %v66, %v96
  %v138 = vmul.f32 %v67, %v96
  %v139 = vmul.f32 %v68, %v96
  %v140 = vmul.f32 %v69, %v96
  %v141 = vmul.f32 %v70, %v96
  %v142 = vmul.f32 %v71, %v96
  %v143 = vmul.f32 %v72, %v96
  %v144 = vmul.f32 %v73, %v96
  %v145 = vmul.f32 %v74, %v96
  %v146 = vmul.f32 %v75, %v96
  %v147 = vmul.f32 %v76, %v96
  %v148 = vmul.f32 %v77, %v96
  %v149 = vmul.f32 %v78, %v96
  %v150 = vmul.f32 %v79, %v96
  %v151 = vmul.f32 %v80, %v96
  %v152 = vmul.f32 %v81, %v96
  %v153 = vmul.f32 %v82, %v96
  %v154 = vmul.f32 %v83, %v96
  %v155 = vmul.f32 %v84, %v96
  %v156 = vmul.f32 %v85, %v96
  %v157 = vmul.f32 %v86, %v96
  %v158 = vmul.f32 %v87, %v96
  %v159 = vmul.f32 %v88, %v96
  %v160 = vmul.f32 %v89, %v96
  %v161 = vmul.f32 %v90, %v96
  %v162 = vld [vmem:[%s2] sm:$0x1]
  %v164 = vlaneseq
  %v165 = vshrl.u32 %v164, 7
  %v166 = vsub.s32 0, %v165
  %v167 = vrot.slane %v162, %v166
  %v169 = vadd.f32 %v98, %v167
  %v170 = vadd.f32 %v99, %v167
  %v171 = vadd.f32 %v100, %v167
  %v172 = vadd.f32 %v101, %v167
  %v173 = vadd.f32 %v102, %v167
  %v174 = vadd.f32 %v103, %v167
  %v175 = vadd.f32 %v104, %v167
  %v176 = vadd.f32 %v105, %v167
  %v177 = vadd.f32 %v106, %v167
  %v178 = vadd.f32 %v107, %v167
  %v179 = vadd.f32 %v108, %v167
  %v180 = vadd.f32 %v109, %v167
  %v181 = vadd.f32 %v110, %v167
  %v182 = vadd.f32 %v111, %v167
  %v183 = vadd.f32 %v112, %v167
  %v184 = vadd.f32 %v113, %v167
  %v185 = vadd.f32 %v114, %v167
  %v186 = vadd.f32 %v115, %v167
  %v187 = vadd.f32 %v116, %v167
  %v188 = vadd.f32 %v117, %v167
  %v189 = vadd.f32 %v118, %v167
  %v190 = vadd.f32 %v119, %v167
  %v191 = vadd.f32 %v120, %v167
  %v192 = vadd.f32 %v121, %v167
  %v193 = vadd.f32 %v122, %v167
  %v194 = vadd.f32 %v123, %v167
  %v195 = vadd.f32 %v124, %v167
  %v196 = vadd.f32 %v125, %v167
  %v197 = vadd.f32 %v126, %v167
  %v198 = vadd.f32 %v127, %v167
  %v199 = vadd.f32 %v128, %v167
  %v200 = vadd.f32 %v129, %v167
  %v201 = vadd.f32 %v130, %v167
  %v202 = vadd.f32 %v131, %v167
  %v203 = vadd.f32 %v132, %v167
  %v204 = vadd.f32 %v133, %v167
  %v205 = vadd.f32 %v134, %v167
  %v206 = vadd.f32 %v135, %v167
  %v207 = vadd.f32 %v136, %v167
  %v208 = vadd.f32 %v137, %v167
  %v209 = vadd.f32 %v138, %v167
  %v210 = vadd.f32 %v139, %v167
  %v211 = vadd.f32 %v140, %v167
  %v212 = vadd.f32 %v141, %v167
  %v213 = vadd.f32 %v142, %v167
  %v214 = vadd.f32 %v143, %v167
  %v215 = vadd.f32 %v144, %v167
  %v216 = vadd.f32 %v145, %v167
  %v217 = vadd.f32 %v146, %v167
  %v218 = vadd.f32 %v147, %v167
  %v219 = vadd.f32 %v148, %v167
  %v220 = vadd.f32 %v149, %v167
  %v221 = vadd.f32 %v150, %v167
  %v222 = vadd.f32 %v151, %v167
  %v223 = vadd.f32 %v152, %v167
  %v224 = vadd.f32 %v153, %v167
  %v225 = vadd.f32 %v154, %v167
  %v226 = vadd.f32 %v155, %v167
  %v227 = vadd.f32 %v156, %v167
  %v228 = vadd.f32 %v157, %v167
  %v229 = vadd.f32 %v158, %v167
  %v230 = vadd.f32 %v159, %v167
  %v231 = vadd.f32 %v160, %v167
  %v232 = vadd.f32 %v161, %v167
  %v233 = vmax.f32 %v169, 0.0
  %v234 = vmax.f32 %v170, 0.0
  %v235 = vmax.f32 %v171, 0.0
  %v236 = vmax.f32 %v172, 0.0
  %v237 = vmax.f32 %v173, 0.0
  %v238 = vmax.f32 %v174, 0.0
  %v239 = vmax.f32 %v175, 0.0
  %v240 = vmax.f32 %v176, 0.0
  %v241 = vmax.f32 %v177, 0.0
  %v242 = vmax.f32 %v178, 0.0
  %v243 = vmax.f32 %v179, 0.0
  %v244 = vmax.f32 %v180, 0.0
  %v245 = vmax.f32 %v181, 0.0
  %v246 = vmax.f32 %v182, 0.0
  %v247 = vmax.f32 %v183, 0.0
  %v248 = vmax.f32 %v184, 0.0
  %v249 = vmax.f32 %v185, 0.0
  %v250 = vmax.f32 %v186, 0.0
  %v251 = vmax.f32 %v187, 0.0
  %v252 = vmax.f32 %v188, 0.0
  %v253 = vmax.f32 %v189, 0.0
  %v254 = vmax.f32 %v190, 0.0
  %v255 = vmax.f32 %v191, 0.0
  %v256 = vmax.f32 %v192, 0.0
  %v257 = vmax.f32 %v193, 0.0
  %v258 = vmax.f32 %v194, 0.0
  %v259 = vmax.f32 %v195, 0.0
  %v260 = vmax.f32 %v196, 0.0
  %v261 = vmax.f32 %v197, 0.0
  %v262 = vmax.f32 %v198, 0.0
  %v263 = vmax.f32 %v199, 0.0
  %v264 = vmax.f32 %v200, 0.0
  %v265 = vmax.f32 %v201, 0.0
  %v266 = vmax.f32 %v202, 0.0
  %v267 = vmax.f32 %v203, 0.0
  %v268 = vmax.f32 %v204, 0.0
  %v269 = vmax.f32 %v205, 0.0
  %v270 = vmax.f32 %v206, 0.0
  %v271 = vmax.f32 %v207, 0.0
  %v272 = vmax.f32 %v208, 0.0
  %v273 = vmax.f32 %v209, 0.0
  %v274 = vmax.f32 %v210, 0.0
  %v275 = vmax.f32 %v211, 0.0
  %v276 = vmax.f32 %v212, 0.0
  %v277 = vmax.f32 %v213, 0.0
  %v278 = vmax.f32 %v214, 0.0
  %v279 = vmax.f32 %v215, 0.0
  %v280 = vmax.f32 %v216, 0.0
  %v281 = vmax.f32 %v217, 0.0
  %v282 = vmax.f32 %v218, 0.0
  %v283 = vmax.f32 %v219, 0.0
  %v284 = vmax.f32 %v220, 0.0
  %v285 = vmax.f32 %v221, 0.0
  %v286 = vmax.f32 %v222, 0.0
  %v287 = vmax.f32 %v223, 0.0
  %v288 = vmax.f32 %v224, 0.0
  %v289 = vmax.f32 %v225, 0.0
  %v290 = vmax.f32 %v226, 0.0
  %v291 = vmax.f32 %v227, 0.0
  %v292 = vmax.f32 %v228, 0.0
  %v293 = vmax.f32 %v229, 0.0
  %v294 = vmax.f32 %v230, 0.0
  %v295 = vmax.f32 %v231, 0.0
  %v296 = vmax.f32 %v232, 0.0
  %v297 = vpack.c.bf16 %v234, %v233
  %v298 = vpack.c.bf16 %v236, %v235
  %v299 = vpack.c.bf16 %v238, %v237
  %v300 = vpack.c.bf16 %v240, %v239
  %v301 = vpack.c.bf16 %v242, %v241
  %v302 = vpack.c.bf16 %v244, %v243
  %v303 = vpack.c.bf16 %v246, %v245
  %v304 = vpack.c.bf16 %v248, %v247
  %v305 = vpack.c.bf16 %v250, %v249
  %v306 = vpack.c.bf16 %v252, %v251
  %v307 = vpack.c.bf16 %v254, %v253
  %v308 = vpack.c.bf16 %v256, %v255
  %v309 = vpack.c.bf16 %v258, %v257
  %v310 = vpack.c.bf16 %v260, %v259
  %v311 = vpack.c.bf16 %v262, %v261
  %v312 = vpack.c.bf16 %v264, %v263
  %v313 = vpack.c.bf16 %v266, %v265
  %v314 = vpack.c.bf16 %v268, %v267
  %v315 = vpack.c.bf16 %v270, %v269
  %v316 = vpack.c.bf16 %v272, %v271
  %v317 = vpack.c.bf16 %v274, %v273
  %v318 = vpack.c.bf16 %v276, %v275
  %v319 = vpack.c.bf16 %v278, %v277
  %v320 = vpack.c.bf16 %v280, %v279
  %v321 = vpack.c.bf16 %v282, %v281
  %v322 = vpack.c.bf16 %v284, %v283
  %v323 = vpack.c.bf16 %v286, %v285
  %v324 = vpack.c.bf16 %v288, %v287
  %v325 = vpack.c.bf16 %v290, %v289
  %v326 = vpack.c.bf16 %v292, %v291
  %v327 = vpack.c.bf16 %v294, %v293
  %v328 = vpack.c.bf16 %v296, %v295
  %v329 = vld [vmem:[%s3] sm:$0xf]
  %v330 = vld [vmem:[%s3 + $0x4] sm:$0xf]
  %v331 = vld [vmem:[%s3 + $0x8] sm:$0xf]
  %v332 = vld [vmem:[%s3 + $0xc] sm:$0xf]
  %v333 = vld [vmem:[%s3 + $0x10] sm:$0xf]
  %v334 = vld [vmem:[%s3 + $0x14] sm:$0xf]
  %v335 = vld [vmem:[%s3 + $0x18] sm:$0xf]
  %v336 = vld [vmem:[%s3 + $0x1c] sm:$0xf]
  %v345 = vunpack.c.l.b16 %v329
  %v346 = vunpack.c.l.b16 %v330
  %v347 = vunpack.c.l.b16 %v331
  %v348 = vunpack.c.l.b16 %v332
  %v349 = vunpack.c.l.b16 %v333
  %v350 = vunpack.c.l.b16 %v334
  %v351 = vunpack.c.l.b16 %v335
  %v352 = vunpack.c.l.b16 %v336
  %v353 = vpack.c.b16 %v346, %v345
  %v354 = vpack.c.b16 %v348, %v347
  %v355 = vpack.c.b16 %v350, %v349
  %v356 = vpack.c.b16 %v352, %v351
  %vm361 = vcmask 523264
  %v363 = vsel %vm361, %v297, 0
  %v366 = vsel %vm361, %v298, 0
  %v369 = vsel %vm361, %v299, 0
  %v372 = vsel %vm361, %v300, 0
  %v375 = vsel %vm361, %v301, 0
  %v378 = vsel %vm361, %v302, 0
  %v381 = vsel %vm361, %v303, 0
  %v384 = vsel %vm361, %v304, 0
  %v387 = vsel %vm361, %v305, 0
  %v390 = vsel %vm361, %v306, 0
  %v393 = vsel %vm361, %v307, 0
  %v396 = vsel %vm361, %v308, 0
  %v399 = vsel %vm361, %v309, 0
  %v402 = vsel %vm361, %v310, 0
  %v405 = vsel %vm361, %v311, 0
  %v408 = vsel %vm361, %v312, 0
  %v411 = vsel %vm361, %v313, 0
  %v414 = vsel %vm361, %v314, 0
  %v417 = vsel %vm361, %v315, 0
  %v420 = vsel %vm361, %v316, 0
  %v423 = vsel %vm361, %v317, 0
  %v426 = vsel %vm361, %v318, 0
  %v429 = vsel %vm361, %v319, 0
  %v432 = vsel %vm361, %v320, 0
  %v435 = vsel %vm361, %v321, 0
  %v438 = vsel %vm361, %v322, 0
  %v441 = vsel %vm361, %v323, 0
  %v444 = vsel %vm361, %v324, 0
  %v447 = vsel %vm361, %v325, 0
  %v450 = vsel %vm361, %v326, 0
  %v453 = vsel %vm361, %v327, 0
  %v456 = vsel %vm361, %v328, 0
  %458 = vmatprep.subr.bf16.mxu0 0
  %459 = vmatpush1.bf16.msra.mxu0 %v353
  %460 = vmatprep.subr.bf16.mxu0 0
  %461 = vmatpush1.bf16.msra.mxu0 %v354
  %462 = vmatprep.subr.bf16.mxu0 0
  %463 = vmatpush1.bf16.msra.mxu0 %v355
  %464 = vmatprep.subr.bf16.mxu0 0
  %465 = vmatpush1.bf16.msra.mxu0 %v356
  %466 = vmatprep.subr.bf16.mxu0 0
  %467 = vmatpush1.bf16.msra.mxu0 0
  %468 = vmatprep.subr.bf16.mxu0 0
  %469 = vmatpush1.bf16.msra.mxu0 0
  %470 = vmatprep.subr.bf16.mxu0 0
  %471 = vmatpush1.bf16.msra.mxu0 0
  %472 = vmatprep.subr.bf16.mxu0 0
  %473 = vmatpush1.bf16.msra.mxu0 0
  %474 = vmatprep.subr.bf16.mxu0 0
  %475 = vmatpush1.bf16.msra.mxu0 0
  %476 = vmatprep.subr.bf16.mxu0 0
  %477 = vmatpush1.bf16.msra.mxu0 0
  %478 = vmatprep.subr.bf16.mxu0 0
  %479 = vmatpush1.bf16.msra.mxu0 0
  %480 = vmatprep.subr.bf16.mxu0 0
  %481 = vmatpush1.bf16.msra.mxu0 0
  %482 = vmatprep.subr.bf16.mxu0 0
  %483 = vmatpush1.bf16.msra.mxu0 0
  %484 = vmatprep.subr.bf16.mxu0 0
  %485 = vmatpush1.bf16.msra.mxu0 0
  %486 = vmatprep.subr.bf16.mxu0 0
  %487 = vmatpush1.bf16.msra.mxu0 0
  %488 = vmatprep.subr.bf16.mxu0 0
  %489 = vmatpush1.bf16.msra.mxu0 0
  %490 = vmatprep.mubr.bf16.mxu0 0
  %491 = vmatmul.mubr.bf16.gmra.mrb[0].mxu0 %v363
  %v492 = vpop.f32.mrb[0].mxu0
  %v493 = vadd.f32 0.0, %v492
  %v494 = vpop.f32.mrb[0].mxu0
  %v495 = vpop.f32.mrb[0].mxu0
  %v496 = vadd.f32 0.0, %v495
  %v497 = vpop.f32.mrb[0].mxu0
  %498 = vmatprep.mubr.bf16.mxu0 0
  %499 = vmatmul.mubr.bf16.gmra.mrb[0].mxu0 %v366
  %v500 = vpop.f32.mrb[0].mxu0
  %v501 = vadd.f32 0.0, %v500
  %v502 = vpop.f32.mrb[0].mxu0
  %v503 = vpop.f32.mrb[0].mxu0
  %v504 = vadd.f32 0.0, %v503
  %v505 = vpop.f32.mrb[0].mxu0
  %506 = vmatprep.mubr.bf16.mxu0 0
  %507 = vmatmul.mubr.bf16.gmra.mrb[0].mxu0 %v369
  %v508 = vpop.f32.mrb[0].mxu0
  %v509 = vadd.f32 0.0, %v508
  %v510 = vpop.f32.mrb[0].mxu0
  %v511 = vpop.f32.mrb[0].mxu0
  %v512 = vadd.f32 0.0, %v511
  %v513 = vpop.f32.mrb[0].mxu0
  %514 = vmatprep.mubr.bf16.mxu0 0
  %515 = vmatmul.mubr.bf16.gmra.mrb[0].mxu0 %v372
  %v516 = vpop.f32.mrb[0].mxu0
  %v517 = vadd.f32 0.0, %v516
  %v518 = vpop.f32.mrb[0].mxu0
  %v519 = vpop.f32.mrb[0].mxu0
  %v520 = vadd.f32 0.0, %v519
  %v521 = vpop.f32.mrb[0].mxu0
  %522 = vmatprep.mubr.bf16.mxu0 0
  %523 = vmatmul.mubr.bf16.gmra.mrb[0].mxu0 %v375
  %v524 = vpop.f32.mrb[0].mxu0
  %v525 = vadd.f32 0.0, %v524
  %v526 = vpop.f32.mrb[0].mxu0
  %v527 = vpop.f32.mrb[0].mxu0
  %v528 = vadd.f32 0.0, %v527
  %v529 = vpop.f32.mrb[0].mxu0
  %530 = vmatprep.mubr.bf16.mxu0 0
  %531 = vmatmul.mubr.bf16.gmra.mrb[0].mxu0 %v378
  %v532 = vpop.f32.mrb[0].mxu0
  %v533 = vadd.f32 0.0, %v532
  %v534 = vpop.f32.mrb[0].mxu0
  %v535 = vpop.f32.mrb[0].mxu0
  %v536 = vadd.f32 0.0, %v535
  %v537 = vpop.f32.mrb[0].mxu0
  %538 = vmatprep.mubr.bf16.mxu0 0
  %539 = vmatmul.mubr.bf16.gmra.mrb[0].mxu0 %v381
  %v540 = vpop.f32.mrb[0].mxu0
  %v541 = vadd.f32 0.0, %v540
  %v542 = vpop.f32.mrb[0].mxu0
  %v543 = vpop.f32.mrb[0].mxu0
  %v544 = vadd.f32 0.0, %v543
  %v545 = vpop.f32.mrb[0].mxu0
  %546 = vmatprep.mubr.bf16.mxu0 0
  %547 = vmatmul.mubr.bf16.gmra.mrb[0].mxu0 %v384
  %v548 = vpop.f32.mrb[0].mxu0
  %v549 = vadd.f32 0.0, %v548
  %v550 = vpop.f32.mrb[0].mxu0
  %v551 = vpop.f32.mrb[0].mxu0
  %v552 = vadd.f32 0.0, %v551
  %v553 = vpop.f32.mrb[0].mxu0
  %554 = vmatprep.mubr.bf16.mxu0 0
  %555 = vmatmul.mubr.bf16.gmra.mrb[0].mxu0 %v387
  %v556 = vpop.f32.mrb[0].mxu0
  %v557 = vadd.f32 0.0, %v556
  %v558 = vpop.f32.mrb[0].mxu0
  %v559 = vpop.f32.mrb[0].mxu0
  %v560 = vadd.f32 0.0, %v559
  %v561 = vpop.f32.mrb[0].mxu0
  %562 = vmatprep.mubr.bf16.mxu0 0
  %563 = vmatmul.mubr.bf16.gmra.mrb[0].mxu0 %v390
  %v564 = vpop.f32.mrb[0].mxu0
  %v565 = vadd.f32 0.0, %v564
  %v566 = vpop.f32.mrb[0].mxu0
  %v567 = vpop.f32.mrb[0].mxu0
  %v568 = vadd.f32 0.0, %v567
  %v569 = vpop.f32.mrb[0].mxu0
  %570 = vmatprep.mubr.bf16.mxu0 0
  %571 = vmatmul.mubr.bf16.gmra.mrb[0].mxu0 %v393
  %v572 = vpop.f32.mrb[0].mxu0
  %v573 = vadd.f32 0.0, %v572
  %v574 = vpop.f32.mrb[0].mxu0
  %v575 = vpop.f32.mrb[0].mxu0
  %v576 = vadd.f32 0.0, %v575
  %v577 = vpop.f32.mrb[0].mxu0
  %578 = vmatprep.mubr.bf16.mxu0 0
  %579 = vmatmul.mubr.bf16.gmra.mrb[0].mxu0 %v396
  %v580 = vpop.f32.mrb[0].mxu0
  %v581 = vadd.f32 0.0, %v580
  %v582 = vpop.f32.mrb[0].mxu0
  %v583 = vpop.f32.mrb[0].mxu0
  %v584 = vadd.f32 0.0, %v583
  %v585 = vpop.f32.mrb[0].mxu0
  %586 = vmatprep.mubr.bf16.mxu0 0
  %587 = vmatmul.mubr.bf16.gmra.mrb[0].mxu0 %v399
  %v588 = vpop.f32.mrb[0].mxu0
  %v589 = vadd.f32 0.0, %v588
  %v590 = vpop.f32.mrb[0].mxu0
  %v591 = vpop.f32.mrb[0].mxu0
  %v592 = vadd.f32 0.0, %v591
  %v593 = vpop.f32.mrb[0].mxu0
  %594 = vmatprep.mubr.bf16.mxu0 0
  %595 = vmatmul.mubr.bf16.gmra.mrb[0].mxu0 %v402
  %v596 = vpop.f32.mrb[0].mxu0
  %v597 = vadd.f32 0.0, %v596
  %v598 = vpop.f32.mrb[0].mxu0
  %v599 = vpop.f32.mrb[0].mxu0
  %v600 = vadd.f32 0.0, %v599
  %v601 = vpop.f32.mrb[0].mxu0
  %602 = vmatprep.mubr.bf16.mxu0 0
  %603 = vmatmul.mubr.bf16.gmra.mrb[0].mxu0 %v405
  %v604 = vpop.f32.mrb[0].mxu0
  %v605 = vadd.f32 0.0, %v604
  %v606 = vpop.f32.mrb[0].mxu0
  %v607 = vpop.f32.mrb[0].mxu0
  %v608 = vadd.f32 0.0, %v607
  %v609 = vpop.f32.mrb[0].mxu0
  %610 = vmatprep.mubr.bf16.mxu0 0
  %611 = vmatmul.mubr.bf16.gmra.mrb[0].mxu0 %v408
  %v612 = vpop.f32.mrb[0].mxu0
  %v613 = vadd.f32 0.0, %v612
  %v614 = vpop.f32.mrb[0].mxu0
  %v615 = vpop.f32.mrb[0].mxu0
  %v616 = vadd.f32 0.0, %v615
  %v617 = vpop.f32.mrb[0].mxu0
  %618 = vmatprep.mubr.bf16.mxu0 0
  %619 = vmatmul.mubr.bf16.gmra.mrb[0].mxu0 %v411
  %v620 = vpop.f32.mrb[0].mxu0
  %v621 = vadd.f32 0.0, %v620
  %v622 = vpop.f32.mrb[0].mxu0
  %v623 = vpop.f32.mrb[0].mxu0
  %v624 = vadd.f32 0.0, %v623
  %v625 = vpop.f32.mrb[0].mxu0
  %626 = vmatprep.mubr.bf16.mxu0 0
  %627 = vmatmul.mubr.bf16.gmra.mrb[0].mxu0 %v414
  %v628 = vpop.f32.mrb[0].mxu0
  %v629 = vadd.f32 0.0, %v628
  %v630 = vpop.f32.mrb[0].mxu0
  %v631 = vpop.f32.mrb[0].mxu0
  %v632 = vadd.f32 0.0, %v631
  %v633 = vpop.f32.mrb[0].mxu0
  %634 = vmatprep.mubr.bf16.mxu0 0
  %635 = vmatmul.mubr.bf16.gmra.mrb[0].mxu0 %v417
  %v636 = vpop.f32.mrb[0].mxu0
  %v637 = vadd.f32 0.0, %v636
  %v638 = vpop.f32.mrb[0].mxu0
  %v639 = vpop.f32.mrb[0].mxu0
  %v640 = vadd.f32 0.0, %v639
  %v641 = vpop.f32.mrb[0].mxu0
  %642 = vmatprep.mubr.bf16.mxu0 0
  %643 = vmatmul.mubr.bf16.gmra.mrb[0].mxu0 %v420
  %v644 = vpop.f32.mrb[0].mxu0
  %v645 = vadd.f32 0.0, %v644
  %v646 = vpop.f32.mrb[0].mxu0
  %v647 = vpop.f32.mrb[0].mxu0
  %v648 = vadd.f32 0.0, %v647
  %v649 = vpop.f32.mrb[0].mxu0
  %650 = vmatprep.mubr.bf16.mxu0 0
  %651 = vmatmul.mubr.bf16.gmra.mrb[0].mxu0 %v423
  %v652 = vpop.f32.mrb[0].mxu0
  %v653 = vadd.f32 0.0, %v652
  %v654 = vpop.f32.mrb[0].mxu0
  %v655 = vpop.f32.mrb[0].mxu0
  %v656 = vadd.f32 0.0, %v655
  %v657 = vpop.f32.mrb[0].mxu0
  %658 = vmatprep.mubr.bf16.mxu0 0
  %659 = vmatmul.mubr.bf16.gmra.mrb[0].mxu0 %v426
  %v660 = vpop.f32.mrb[0].mxu0
  %v661 = vadd.f32 0.0, %v660
  %v662 = vpop.f32.mrb[0].mxu0
  %v663 = vpop.f32.mrb[0].mxu0
  %v664 = vadd.f32 0.0, %v663
  %v665 = vpop.f32.mrb[0].mxu0
  %666 = vmatprep.mubr.bf16.mxu0 0
  %667 = vmatmul.mubr.bf16.gmra.mrb[0].mxu0 %v429
  %v668 = vpop.f32.mrb[0].mxu0
  %v669 = vadd.f32 0.0, %v668
  %v670 = vpop.f32.mrb[0].mxu0
  %v671 = vpop.f32.mrb[0].mxu0
  %v672 = vadd.f32 0.0, %v671
  %v673 = vpop.f32.mrb[0].mxu0
  %674 = vmatprep.mubr.bf16.mxu0 0
  %675 = vmatmul.mubr.bf16.gmra.mrb[0].mxu0 %v432
  %v676 = vpop.f32.mrb[0].mxu0
  %v677 = vadd.f32 0.0, %v676
  %v678 = vpop.f32.mrb[0].mxu0
  %v679 = vpop.f32.mrb[0].mxu0
  %v680 = vadd.f32 0.0, %v679
  %v681 = vpop.f32.mrb[0].mxu0
  %682 = vmatprep.mubr.bf16.mxu0 0
  %683 = vmatmul.mubr.bf16.gmra.mrb[0].mxu0 %v435
  %v684 = vpop.f32.mrb[0].mxu0
  %v685 = vadd.f32 0.0, %v684
  %v686 = vpop.f32.mrb[0].mxu0
  %v687 = vpop.f32.mrb[0].mxu0
  %v688 = vadd.f32 0.0, %v687
  %v689 = vpop.f32.mrb[0].mxu0
  %690 = vmatprep.mubr.bf16.mxu0 0
  %691 = vmatmul.mubr.bf16.gmra.mrb[0].mxu0 %v438
  %v692 = vpop.f32.mrb[0].mxu0
  %v693 = vadd.f32 0.0, %v692
  %v694 = vpop.f32.mrb[0].mxu0
  %v695 = vpop.f32.mrb[0].mxu0
  %v696 = vadd.f32 0.0, %v695
  %v697 = vpop.f32.mrb[0].mxu0
  %698 = vmatprep.mubr.bf16.mxu0 0
  %699 = vmatmul.mubr.bf16.gmra.mrb[0].mxu0 %v441
  %v700 = vpop.f32.mrb[0].mxu0
  %v701 = vadd.f32 0.0, %v700
  %v702 = vpop.f32.mrb[0].mxu0
  %v703 = vpop.f32.mrb[0].mxu0
  %v704 = vadd.f32 0.0, %v703
  %v705 = vpop.f32.mrb[0].mxu0
  %706 = vmatprep.mubr.bf16.mxu0 0
  %707 = vmatmul.mubr.bf16.gmra.mrb[0].mxu0 %v444
  %v708 = vpop.f32.mrb[0].mxu0
  %v709 = vadd.f32 0.0, %v708
  %v710 = vpop.f32.mrb[0].mxu0
  %v711 = vpop.f32.mrb[0].mxu0
  %v712 = vadd.f32 0.0, %v711
  %v713 = vpop.f32.mrb[0].mxu0
  %714 = vmatprep.mubr.bf16.mxu0 0
  %715 = vmatmul.mubr.bf16.gmra.mrb[0].mxu0 %v447
  %v716 = vpop.f32.mrb[0].mxu0
  %v717 = vadd.f32 0.0, %v716
  %v718 = vpop.f32.mrb[0].mxu0
  %v719 = vpop.f32.mrb[0].mxu0
  %v720 = vadd.f32 0.0, %v719
  %v721 = vpop.f32.mrb[0].mxu0
  %722 = vmatprep.mubr.bf16.mxu0 0
  %723 = vmatmul.mubr.bf16.gmra.mrb[0].mxu0 %v450
  %v724 = vpop.f32.mrb[0].mxu0
  %v725 = vadd.f32 0.0, %v724
  %v726 = vpop.f32.mrb[0].mxu0
  %v727 = vpop.f32.mrb[0].mxu0
  %v728 = vadd.f32 0.0, %v727
  %v729 = vpop.f32.mrb[0].mxu0
  %730 = vmatprep.mubr.bf16.mxu0 0
  %731 = vmatmul.mubr.bf16.gmra.mrb[0].mxu0 %v453
  %v732 = vpop.f32.mrb[0].mxu0
  %v733 = vadd.f32 0.0, %v732
  %v734 = vpop.f32.mrb[0].mxu0
  %v735 = vpop.f32.mrb[0].mxu0
  %v736 = vadd.f32 0.0, %v735
  %v737 = vpop.f32.mrb[0].mxu0
  %738 = vmatprep.mubr.bf16.mxu0 0
  %739 = vmatmul.mubr.bf16.gmra.mrb[0].mxu0 %v456
  %v740 = vpop.f32.mrb[0].mxu0
  %v741 = vadd.f32 0.0, %v740
  %v742 = vpop.f32.mrb[0].mxu0
  %v743 = vpop.f32.mrb[0].mxu0
  %v744 = vadd.f32 0.0, %v743
  %v745 = vpop.f32.mrb[0].mxu0
  %746 = vdwg.mxu0
  %747 = vst [vmem:[%s4] sm:$0xff] %v493
  %748 = vst [vmem:[%s4 + $0x8] sm:$0xff] %v496
  %749 = vst [vmem:[%s4 + $0x10] sm:$0xff] %v501
  %750 = vst [vmem:[%s4 + $0x18] sm:$0xff] %v504
  %751 = vst [vmem:[%s4 + $0x20] sm:$0xff] %v509
  %752 = vst [vmem:[%s4 + $0x28] sm:$0xff] %v512
  %753 = vst [vmem:[%s4 + $0x30] sm:$0xff] %v517
  %754 = vst [vmem:[%s4 + $0x38] sm:$0xff] %v520
  %755 = vst [vmem:[%s4 + $0x40] sm:$0xff] %v525
  %756 = vst [vmem:[%s4 + $0x48] sm:$0xff] %v528
  %757 = vst [vmem:[%s4 + $0x50] sm:$0xff] %v533
  %758 = vst [vmem:[%s4 + $0x58] sm:$0xff] %v536
  %759 = vst [vmem:[%s4 + $0x60] sm:$0xff] %v541
  %760 = vst [vmem:[%s4 + $0x68] sm:$0xff] %v544
  %761 = vst [vmem:[%s4 + $0x70] sm:$0xff] %v549
  %762 = vst [vmem:[%s4 + $0x78] sm:$0xff] %v552
  %763 = vst [vmem:[%s4 + $0x80] sm:$0xff] %v557
  %764 = vst [vmem:[%s4 + $0x88] sm:$0xff] %v560
  %765 = vst [vmem:[%s4 + $0x90] sm:$0xff] %v565
  %766 = vst [vmem:[%s4 + $0x98] sm:$0xff] %v568
  %767 = vst [vmem:[%s4 + $0xa0] sm:$0xff] %v573
  %768 = vst [vmem:[%s4 + $0xa8] sm:$0xff] %v576
  %769 = vst [vmem:[%s4 + $0xb0] sm:$0xff] %v581
  %770 = vst [vmem:[%s4 + $0xb8] sm:$0xff] %v584
  %771 = vst [vmem:[%s4 + $0xc0] sm:$0xff] %v589
  %772 = vst [vmem:[%s4 + $0xc8] sm:$0xff] %v592
  %773 = vst [vmem:[%s4 + $0xd0] sm:$0xff] %v597
  %774 = vst [vmem:[%s4 + $0xd8] sm:$0xff] %v600
  %775 = vst [vmem:[%s4 + $0xe0] sm:$0xff] %v605
  %776 = vst [vmem:[%s4 + $0xe8] sm:$0xff] %v608
  %777 = vst [vmem:[%s4 + $0xf0] sm:$0xff] %v613
  %778 = vst [vmem:[%s4 + $0xf8] sm:$0xff] %v616
  %779 = vst [vmem:[%s4 + $0x100] sm:$0xff] %v621
  %780 = vst [vmem:[%s4 + $0x108] sm:$0xff] %v624
  %781 = vst [vmem:[%s4 + $0x110] sm:$0xff] %v629
  %782 = vst [vmem:[%s4 + $0x118] sm:$0xff] %v632
  %783 = vst [vmem:[%s4 + $0x120] sm:$0xff] %v637
  %784 = vst [vmem:[%s4 + $0x128] sm:$0xff] %v640
  %785 = vst [vmem:[%s4 + $0x130] sm:$0xff] %v645
  %786 = vst [vmem:[%s4 + $0x138] sm:$0xff] %v648
  %787 = vst [vmem:[%s4 + $0x140] sm:$0xff] %v653
  %788 = vst [vmem:[%s4 + $0x148] sm:$0xff] %v656
  %789 = vst [vmem:[%s4 + $0x150] sm:$0xff] %v661
  %790 = vst [vmem:[%s4 + $0x158] sm:$0xff] %v664
  %791 = vst [vmem:[%s4 + $0x160] sm:$0xff] %v669
  %792 = vst [vmem:[%s4 + $0x168] sm:$0xff] %v672
  %793 = vst [vmem:[%s4 + $0x170] sm:$0xff] %v677
  %794 = vst [vmem:[%s4 + $0x178] sm:$0xff] %v680
  %795 = vst [vmem:[%s4 + $0x180] sm:$0xff] %v685
  %796 = vst [vmem:[%s4 + $0x188] sm:$0xff] %v688
  %797 = vst [vmem:[%s4 + $0x190] sm:$0xff] %v693
  %798 = vst [vmem:[%s4 + $0x198] sm:$0xff] %v696
  %799 = vst [vmem:[%s4 + $0x1a0] sm:$0xff] %v701
  %800 = vst [vmem:[%s4 + $0x1a8] sm:$0xff] %v704
  %801 = vst [vmem:[%s4 + $0x1b0] sm:$0xff] %v709
  %802 = vst [vmem:[%s4 + $0x1b8] sm:$0xff] %v712
  %803 = vst [vmem:[%s4 + $0x1c0] sm:$0xff] %v717
  %804 = vst [vmem:[%s4 + $0x1c8] sm:$0xff] %v720
  %805 = vst [vmem:[%s4 + $0x1d0] sm:$0xff] %v725
  %806 = vst [vmem:[%s4 + $0x1d8] sm:$0xff] %v728
  %807 = vst [vmem:[%s4 + $0x1e0] sm:$0xff] %v733
  %808 = vst [vmem:[%s4 + $0x1e8] sm:$0xff] %v736
  %809 = vst [vmem:[%s4 + $0x1f0] sm:$0xff] %v741
  %810 = vst [vmem:[%s4 + $0x1f8] sm:$0xff] %v744
  %v811 = vld [vmem:[#allocation2] sm:$0xff]
  %v812 = vadd.f32 %v493, %v496
  %v813 = vadd.f32 %v812, %v501
  %v814 = vadd.f32 %v813, %v504
  %v815 = vadd.f32 %v814, %v509
  %v816 = vadd.f32 %v815, %v512
  %v817 = vadd.f32 %v816, %v517
  %v818 = vadd.f32 %v817, %v520
  %v819 = vadd.f32 %v818, %v525
  %v820 = vadd.f32 %v819, %v528
  %v821 = vadd.f32 %v820, %v533
  %v822 = vadd.f32 %v821, %v536
  %v823 = vadd.f32 %v822, %v541
  %v824 = vadd.f32 %v823, %v544
  %v825 = vadd.f32 %v824, %v549
  %v826 = vadd.f32 %v825, %v552
  %v827 = vadd.f32 %v826, %v557
  %v828 = vadd.f32 %v827, %v560
  %v829 = vadd.f32 %v828, %v565
  %v830 = vadd.f32 %v829, %v568
  %v831 = vadd.f32 %v830, %v573
  %v832 = vadd.f32 %v831, %v576
  %v833 = vadd.f32 %v832, %v581
  %v834 = vadd.f32 %v833, %v584
  %v835 = vadd.f32 %v834, %v589
  %v836 = vadd.f32 %v835, %v592
  %v837 = vadd.f32 %v836, %v597
  %v838 = vadd.f32 %v837, %v600
  %v839 = vadd.f32 %v838, %v605
  %v840 = vadd.f32 %v839, %v608
  %v841 = vadd.f32 %v840, %v613
  %v842 = vadd.f32 %v841, %v616
  %v843 = vadd.f32 %v842, %v621
  %v844 = vadd.f32 %v843, %v624
  %v845 = vadd.f32 %v844, %v629
  %v846 = vadd.f32 %v845, %v632
  %v847 = vadd.f32 %v846, %v637
  %v848 = vadd.f32 %v847, %v640
  %v849 = vadd.f32 %v848, %v645
  %v850 = vadd.f32 %v849, %v648
  %v851 = vadd.f32 %v850, %v653
  %v852 = vadd.f32 %v851, %v656
  %v853 = vadd.f32 %v852, %v661
  %v854 = vadd.f32 %v853, %v664
  %v855 = vadd.f32 %v854, %v669
  %v856 = vadd.f32 %v855, %v672
  %v857 = vadd.f32 %v856, %v677
  %v858 = vadd.f32 %v857, %v680
  %v859 = vadd.f32 %v858, %v685
  %v860 = vadd.f32 %v859, %v688
  %v861 = vadd.f32 %v860, %v693
  %v862 = vadd.f32 %v861, %v696
  %v863 = vadd.f32 %v862, %v701
  %v864 = vadd.f32 %v863, %v704
  %v865 = vadd.f32 %v864, %v709
  %v866 = vadd.f32 %v865, %v712
  %v867 = vadd.f32 %v866, %v717
  %v868 = vadd.f32 %v867, %v720
  %v869 = vadd.f32 %v868, %v725
  %v870 = vadd.f32 %v869, %v728
  %v871 = vadd.f32 %v870, %v733
  %v872 = vadd.f32 %v871, %v736
  %v873 = vadd.f32 %v872, %v741
  %v874 = vadd.f32 %v873, %v744
  %v875 = vadd.f32 %v811, %v874
  %876 = vst [vmem:[#allocation2] sm:$0xff] %v875
  %v877 = vld [vmem:[#allocation3] sm:$0xff]
  %v878 = vmul.f32 %v493, %v493
  %v879 = vmul.f32 %v496, %v496
  %v880 = vmul.f32 %v501, %v501
  %v881 = vmul.f32 %v504, %v504
  %v882 = vmul.f32 %v509, %v509
  %v883 = vmul.f32 %v512, %v512
  %v884 = vmul.f32 %v517, %v517
  %v885 = vmul.f32 %v520, %v520
  %v886 = vmul.f32 %v525, %v525
  %v887 = vmul.f32 %v528, %v528
  %v888 = vmul.f32 %v533, %v533
  %v889 = vmul.f32 %v536, %v536
  %v890 = vmul.f32 %v541, %v541
  %v891 = vmul.f32 %v544, %v544
  %v892 = vmul.f32 %v549, %v549
  %v893 = vmul.f32 %v552, %v552
  %v894 = vmul.f32 %v557, %v557
  %v895 = vmul.f32 %v560, %v560
  %v896 = vmul.f32 %v565, %v565
  %v897 = vmul.f32 %v568, %v568
  %v898 = vmul.f32 %v573, %v573
  %v899 = vmul.f32 %v576, %v576
  %v900 = vmul.f32 %v581, %v581
  %v901 = vmul.f32 %v584, %v584
  %v902 = vmul.f32 %v589, %v589
  %v903 = vmul.f32 %v592, %v592
  %v904 = vmul.f32 %v597, %v597
  %v905 = vmul.f32 %v600, %v600
  %v906 = vmul.f32 %v605, %v605
  %v907 = vmul.f32 %v608, %v608
  %v908 = vmul.f32 %v613, %v613
  %v909 = vmul.f32 %v616, %v616
  %v910 = vmul.f32 %v621, %v621
  %v911 = vmul.f32 %v624, %v624
  %v912 = vmul.f32 %v629, %v629
  %v913 = vmul.f32 %v632, %v632
  %v914 = vmul.f32 %v637, %v637
  %v915 = vmul.f32 %v640, %v640
  %v916 = vmul.f32 %v645, %v645
  %v917 = vmul.f32 %v648, %v648
  %v918 = vmul.f32 %v653, %v653
  %v919 = vmul.f32 %v656, %v656
  %v920 = vmul.f32 %v661, %v661
  %v921 = vmul.f32 %v664, %v664
  %v922 = vmul.f32 %v669, %v669
  %v923 = vmul.f32 %v672, %v672
  %v924 = vmul.f32 %v677, %v677
  %v925 = vmul.f32 %v680, %v680
  %v926 = vmul.f32 %v685, %v685
  %v927 = vmul.f32 %v688, %v688
  %v928 = vmul.f32 %v693, %v693
  %v929 = vmul.f32 %v696, %v696
  %v930 = vmul.f32 %v701, %v701
  %v931 = vmul.f32 %v704, %v704
  %v932 = vmul.f32 %v709, %v709
  %v933 = vmul.f32 %v712, %v712
  %v934 = vmul.f32 %v717, %v717
  %v935 = vmul.f32 %v720, %v720
  %v936 = vmul.f32 %v725, %v725
  %v937 = vmul.f32 %v728, %v728
  %v938 = vmul.f32 %v733, %v733
  %v939 = vmul.f32 %v736, %v736
  %v940 = vmul.f32 %v741, %v741
  %v941 = vmul.f32 %v744, %v744
  %v942 = vadd.f32 %v878, %v879
  %v943 = vadd.f32 %v942, %v880
  %v944 = vadd.f32 %v943, %v881
  %v945 = vadd.f32 %v944, %v882
  %v946 = vadd.f32 %v945, %v883
  %v947 = vadd.f32 %v946, %v884
  %v948 = vadd.f32 %v947, %v885
  %v949 = vadd.f32 %v948, %v886
  %v950 = vadd.f32 %v949, %v887
  %v951 = vadd.f32 %v950, %v888
  %v952 = vadd.f32 %v951, %v889
  %v953 = vadd.f32 %v952, %v890
  %v954 = vadd.f32 %v953, %v891
  %v955 = vadd.f32 %v954, %v892
  %v956 = vadd.f32 %v955, %v893
  %v957 = vadd.f32 %v956, %v894
  %v958 = vadd.f32 %v957, %v895
  %v959 = vadd.f32 %v958, %v896
  %v960 = vadd.f32 %v959, %v897
  %v961 = vadd.f32 %v960, %v898
  %v962 = vadd.f32 %v961, %v899
  %v963 = vadd.f32 %v962, %v900
  %v964 = vadd.f32 %v963, %v901
  %v965 = vadd.f32 %v964, %v902
  %v966 = vadd.f32 %v965, %v903
  %v967 = vadd.f32 %v966, %v904
  %v968 = vadd.f32 %v967, %v905
  %v969 = vadd.f32 %v968, %v906
  %v970 = vadd.f32 %v969, %v907
  %v971 = vadd.f32 %v970, %v908
  %v972 = vadd.f32 %v971, %v909
  %v973 = vadd.f32 %v972, %v910
  %v974 = vadd.f32 %v973, %v911
  %v975 = vadd.f32 %v974, %v912
  %v976 = vadd.f32 %v975, %v913
  %v977 = vadd.f32 %v976, %v914
  %v978 = vadd.f32 %v977, %v915
  %v979 = vadd.f32 %v978, %v916
  %v980 = vadd.f32 %v979, %v917
  %v981 = vadd.f32 %v980, %v918
  %v982 = vadd.f32 %v981, %v919
  %v983 = vadd.f32 %v982, %v920
  %v984 = vadd.f32 %v983, %v921
  %v985 = vadd.f32 %v984, %v922
  %v986 = vadd.f32 %v985, %v923
  %v987 = vadd.f32 %v986, %v924
  %v988 = vadd.f32 %v987, %v925
  %v989 = vadd.f32 %v988, %v926
  %v990 = vadd.f32 %v989, %v927
  %v991 = vadd.f32 %v990, %v928
  %v992 = vadd.f32 %v991, %v929
  %v993 = vadd.f32 %v992, %v930
  %v994 = vadd.f32 %v993, %v931
  %v995 = vadd.f32 %v994, %v932
  %v996 = vadd.f32 %v995, %v933
  %v997 = vadd.f32 %v996, %v934
  %v998 = vadd.f32 %v997, %v935
  %v999 = vadd.f32 %v998, %v936
  %v1000 = vadd.f32 %v999, %v937
  %v1001 = vadd.f32 %v1000, %v938
  %v1002 = vadd.f32 %v1001, %v939
  %v1003 = vadd.f32 %v1002, %v940
  %v1004 = vadd.f32 %v1003, %v941
  %v1005 = vadd.f32 %v877, %v1004
  %1006 = vst [vmem:[#allocation3] sm:$0xff] %v1005
  // Predicated region
  $region22: #{bottleneck_forward.4} parent=0 // pred_check
    %p1007 = pneg %p21
  $region23: #{bottleneck_forward.4} parent=0 // pred_check_branch
    %1009 = sbr.rel (%p1007) target = $region25
  $region24: #{bottleneck_forward.4} parent=0 // pred_region
    %v1010 = vld [vmem:[#allocation2] sm:$0xff]
    %v1011 = vrot.slane %v1010, 4
    %v1012 = vadd.f32 %v1010, %v1011
    %v1013 = vrot.slane %v1012, 2
    %v1014 = vadd.f32 %v1012, %v1013
    %v1015 = vrot.slane %v1014, 1
    %v1016 = vadd.f32 %v1014, %v1015
    %1017 = vst [vmem:[%s5] sm:$0x1] %v1016
    %v1018 = vld [vmem:[#allocation3] sm:$0xff]
    %v1019 = vrot.slane %v1018, 4
    %v1020 = vadd.f32 %v1018, %v1019
    %v1021 = vrot.slane %v1020, 2
    %v1022 = vadd.f32 %v1020, %v1021
    %v1023 = vrot.slane %v1022, 1
    %v1024 = vadd.f32 %v1022, %v1023
    %1025 = vst [vmem:[%s6] sm:$0x1] %v1024
  $region25: #{bottleneck_forward.4} parent=0 // pred_fallthru
    _
  // Predicated region
  $region26: #{bottleneck_forward.4} parent=0 // pred_check
    _
  $region27: #{bottleneck_forward.4} parent=0 // pred_check_branch
    %1027 = sbr.rel (0) target = $region29
  $region28: #{bottleneck_forward.4} parent=0 // pred_region
    _
  $region29: #{bottleneck_forward.4} parent=0 // pred_fallthru
    _
  // Predicated region
  $region30: #{bottleneck_forward.4} parent=0 // pred_check
    _
  $region31: #{bottleneck_forward.4} parent=0 // pred_check_branch
    %1029 = sbr.rel (0) target = $region33
  $region32: #{bottleneck_forward.4} parent=0 // pred_region
    _
  $region33: #{bottleneck_forward.4} parent=0 // pred_fallthru
    _
  // Predicated region
  $region34: #{bottleneck_forward.4} parent=0 // pred_check
    _
  $region35: #{bottleneck_forward.4} parent=0 // pred_check_branch
    %1031 = sbr.rel (0) target = $region37
  $region36: #{bottleneck_forward.4} parent=0 // pred_region
    _
  $region37: #{bottleneck_forward.4} parent=0 // pred_fallthru
    _
  // Predicated region
  $region38: #{bottleneck_forward.4} parent=0 // pred_check
    _
  $region39: #{bottleneck_forward.4} parent=0 // pred_check_branch
    %1033 = sbr.rel (0) target = $region41
  $region40: #{bottleneck_forward.4} parent=0 // pred_region
    _
  $region41: #{bottleneck_forward.4} parent=0 // pred_fallthru
    _
  // Predicated region
  $region42: #{bottleneck_forward.4} parent=0 // pred_check
    _
  $region43: #{bottleneck_forward.4} parent=0 // pred_check_branch
    %1035 = sbr.rel (0) target = $region45
  $region44: #{bottleneck_forward.4} parent=0 // pred_region
    _
  $region45: #{bottleneck_forward.4} parent=0 // pred_fallthru
    _
  // Predicated region
  $region46: #{bottleneck_forward.4} parent=0 // pred_check
    _
  $region47: #{bottleneck_forward.4} parent=0 // pred_check_branch
    %1037 = sbr.rel (0) target = $region49
  $region48: #{bottleneck_forward.4} parent=0 // pred_region
    _
  $region49: #{bottleneck_forward.4} parent=0 // pred_fallthru
    _

// kernel: bottleneck_forward.5
$region0: #{bottleneck_forward.5}
  #allocation0 [shape = 'u32[]', space=smem, size = 0x4, offset = 0x4, fixed_abs, tag = 'smem constant byte address 0x4 - core index']
  #allocation1 [shape = 'u32[144,128]{1,0:T(1,128)}', space=vmem, size = 0x12000, scoped, tag = 'internal scratch']
  #allocation2 [shape = 'f32[18,18,128]{2,1,0:T(8,128)}', space=vmem, size = 0x36000, scoped, tag = 'scratch operand']
  %s0 = inlined_call_operand.vmem [shape: f32[2,16,16,128], index: 0, kind: input, shape index: {}]
  %s1 = inlined_call_operand.vmem [shape: f32[1,128], index: 1, kind: input, shape index: {}]
  %s2 = inlined_call_operand.vmem [shape: f32[1,128], index: 2, kind: input, shape index: {}]
  %s3 = inlined_call_operand.vmem [shape: bf16[3,3,128,32], index: 3, kind: input, shape index: {}]
  %s4 = inlined_call_operand.vmem [shape: f32[2,16,16,32], index: 4, kind: output, shape index: {}]
  %s5 = sld [smem:[#allocation0]]
  $region49: #{bottleneck_forward.5} parent=0
    _
  %s7 = ssub.s32 1, %s5
  %s8 = scalar_select 0, %s7, %s5
  loop: start=0, step=1, limit=4
  $region2: #{bottleneck_forward.5} parent=0 // loop_pre_header
    _
  $region3: #{bottleneck_forward.5} parent=0 // loop_header
    %s10 = sphi 0, %s14
    %p11 = scmp.ge.s32.totalorder %s10, 4
    %s20 = sphi 0, %s22
    %s23 = sphi 0, %s20
    %s24 = sphi 0, %s23
    %s40 = sphi 0, %s24
    %s44 = sphi 0, %s44
    %s46 = sphi 0, %s44
    %s47 = sphi 0, %s46
    %s61 = sphi 0, %s47
    %s65 = sphi 0, %s65
    %s67 = sphi 0, %s65
    %s68 = sphi 0, %s67
    %s82 = sphi 0, %s68
    %s86 = sphi 0, %s86
    %s88 = sphi 0, %s86
    %s89 = sphi 0, %s88
    %s103 = sphi 0, %s89
    %s109 = sphi 0, %s111
    %s112 = sphi 0, %s109
    %s113 = sphi 0, %s112
    %s129 = sphi 0, %s113
  $region4: #{bottleneck_forward.5} parent=0 // loop_header_branch
    %13 = sbr.rel (%p11) target = $region8
  $region5: #{bottleneck_forward.5} parent=0 // loop_body
    %s15 = ssub.s32 %s10, 1
    %s16 = ssub.s32 %s10, 2
    %s17 = sadd.s32 %s10, 1
    %s18 = ssub.s32 %s10, %s17
    %p19 = scmp.eq.s32.totalorder %s18, 0
    %s21 = sadd.s32 %s20, 1
    %s22 = scalar_select %p19, %s20, %s21
    %p25 = pneg %p19
    %p26 = scmp.eq.s32.totalorder %s10, 1
    %p27 = por %p25, %p26
    %p28 = scmp.ne.s32.totalorder %s20, %s23
    %p29 = scmp.eq.s32.totalorder %s10, 0
    %p30 = por %p28, %p29
    %p31 = scmp.ne.s32.totalorder %s20, %s23
    %p32 = scmp.eq.s32.totalorder %s15, 1
    %p33 = por %p31, %p32
    %p34 = scmp.ne.s32.totalorder %s23, %s24
    %p35 = scmp.eq.s32.totalorder %s15, 0
    %p36 = por %p34, %p35
    %p37 = scmp.ne.s32.totalorder %s23, %s24
    %p38 = scmp.eq.s32.totalorder %s16, 1
    %p39 = por %p37, %p38
    %p41 = scmp.ne.s32.totalorder %s24, %s40
    %p42 = scmp.eq.s32.totalorder %s16, 0
    %p43 = por %p41, %p42
    %s45 = sadd.s32 %s44, 1
    %p48 = scmp.eq.s32.totalorder %s10, 1
    %p49 = scmp.ne.s32.totalorder %s44, %s46
    %p50 = scmp.eq.s32.totalorder %s10, 0
    %p51 = por %p49, %p50
    %p52 = scmp.ne.s32.totalorder %s44, %s46
    %p53 = scmp.eq.s32.totalorder %s15, 1
    %p54 = por %p52, %p53
    %p55 = scmp.ne.s32.totalorder %s46, %s47
    %p56 = scmp.eq.s32.totalorder %s15, 0
    %p57 = por %p55, %p56
    %p58 = scmp.ne.s32.totalorder %s46, %s47
    %p59 = scmp.eq.s32.totalorder %s16, 1
    %p60 = por %p58, %p59
    %p62 = scmp.ne.s32.totalorder %s47, %s61
    %p63 = scmp.eq.s32.totalorder %s16, 0
    %p64 = por %p62, %p63
    %s66 = sadd.s32 %s65, 1
    %p69 = scmp.eq.s32.totalorder %s10, 1
    %p70 = scmp.ne.s32.totalorder %s65, %s67
    %p71 = scmp.eq.s32.totalorder %s10, 0
    %p72 = por %p70, %p71
    %p73 = scmp.ne.s32.totalorder %s65, %s67
    %p74 = scmp.eq.s32.totalorder %s15, 1
    %p75 = por %p73, %p74
    %p76 = scmp.ne.s32.totalorder %s67, %s68
    %p77 = scmp.eq.s32.totalorder %s15, 0
    %p78 = por %p76, %p77
    %p79 = scmp.ne.s32.totalorder %s67, %s68
    %p80 = scmp.eq.s32.totalorder %s16, 1
    %p81 = por %p79, %p80
    %p83 = scmp.ne.s32.totalorder %s68, %s82
    %p84 = scmp.eq.s32.totalorder %s16, 0
    %p85 = por %p83, %p84
    %s87 = sadd.s32 %s86, 1
    %p90 = scmp.eq.s32.totalorder %s10, 1
    %p91 = scmp.ne.s32.totalorder %s86, %s88
    %p92 = scmp.eq.s32.totalorder %s10, 0
    %p93 = por %p91, %p92
    %p94 = scmp.ne.s32.totalorder %s86, %s88
    %p95 = scmp.eq.s32.totalorder %s15, 1
    %p96 = por %p94, %p95
    %p97 = scmp.ne.s32.totalorder %s88, %s89
    %p98 = scmp.eq.s32.totalorder %s15, 0
    %p99 = por %p97, %p98
    %p100 = scmp.ne.s32.totalorder %s88, %s89
    %p101 = scmp.eq.s32.totalorder %s16, 1
    %p102 = por %p100, %p101
    %p104 = scmp.ne.s32.totalorder %s89, %s103
    %p105 = scmp.eq.s32.totalorder %s16, 0
    %p106 = por %p104, %p105
    %s107 = ssub.s32 %s10, %s17
    %p108 = scmp.eq.s32.totalorder %s107, 0
    %s110 = sadd.s32 %s109, 1
    %s111 = scalar_select %p108, %s109, %s110
    %p114 = pneg %p108
    %p115 = scmp.eq.s32.totalorder %s10, 1
    %p116 = por %p114, %p115
    %p117 = scmp.ne.s32.totalorder %s109, %s112
    %p118 = scmp.eq.s32.totalorder %s10, 0
    %p119 = por %p117, %p118
    %p120 = scmp.ne.s32.totalorder %s109, %s112
    %p121 = scmp.eq.s32.totalorder %s15, 1
    %p122 = por %p120, %p121
    %p123 = scmp.ne.s32.totalorder %s112, %s113
    %p124 = scmp.eq.s32.totalorder %s15, 0
    %p125 = por %p123, %p124
    %p126 = scmp.ne.s32.totalorder %s112, %s113
    %p127 = scmp.eq.s32.totalorder %s16, 1
    %p128 = por %p126, %p127
    %p130 = scmp.ne.s32.totalorder %s113, %s129
    %p131 = scmp.eq.s32.totalorder %s16, 0
    %p132 = por %p130, %p131
    %p133 = scmp.le.s32.totalorder 1, %s10
    %p134 = scmp.lt.s32.totalorder %s10, 3
    %p135 = pnand %p133, %p134
    %p136 = pneg %p135
    // Predicated region
    $region9: #{bottleneck_forward.5} parent=5 // pred_check
      _
    $region10: #{bottleneck_forward.5} parent=5 // pred_check_branch
      %138 = sbr.rel (%p135) target = $region12
    $region11: #{bottleneck_forward.5} parent=5 // pred_region
      %s139 = ssub.s32 %s10, 1
      // Predicated region
      $region13: #{bottleneck_forward.5} parent=11 // pred_check
        %p140 = pneg %p57
      $region14: #{bottleneck_forward.5} parent=11 // pred_check_branch
        %142 = sbr.rel (%p140) target = $region16
      $region15: #{bottleneck_forward.5} parent=11 // pred_region
        _
      $region16: #{bottleneck_forward.5} parent=11 // pred_fallthru
        _
      // Predicated region
      $region17: #{bottleneck_forward.5} parent=11 // pred_check
        %p143 = pneg %p78
      $region18: #{bottleneck_forward.5} parent=11 // pred_check_branch
        %145 = sbr.rel (%p143) target = $region20
      $region19: #{bottleneck_forward.5} parent=11 // pred_region
        _
      $region20: #{bottleneck_forward.5} parent=11 // pred_fallthru
        _
      // Predicated region
      $region21: #{bottleneck_forward.5} parent=11 // pred_check
        %p146 = pneg %p99
      $region22: #{bottleneck_forward.5} parent=11 // pred_check_branch
        %148 = sbr.rel (%p146) target = $region24
      $region23: #{bottleneck_forward.5} parent=11 // pred_region
        _
      $region24: #{bottleneck_forward.5} parent=11 // pred_fallthru
        _
    $region12: #{bottleneck_forward.5} parent=5 // pred_fallthru
      _
    %p149 = scmp.lt.s32.totalorder %s10, 2
    // Predicated region
    $region25: #{bottleneck_forward.5} parent=5 // pred_check
      %p150 = pneg %p149
    $region26: #{bottleneck_forward.5} parent=5 // pred_check_branch
      %152 = sbr.rel (%p150) target = $region28
    $region27: #{bottleneck_forward.5} parent=5 // pred_region
      // Predicated region
      $region29: #{bottleneck_forward.5} parent=27 // pred_check
        %p153 = pneg %p30
      $region30: #{bottleneck_forward.5} parent=27 // pred_check_branch
        %155 = sbr.rel (%p153) target = $region32
      $region31: #{bottleneck_forward.5} parent=27 // pred_region
        %p156 = scmp.lt.s32.totalorder %s10, 1
        %s157 = scalar_select %p156, %s10, 1
        %s158 = smul.addr %s157, 32
        %s159 = smul.addr %s158, 8
        %s160 = scalar_lea.vmem %s0, %s159
      $region32: #{bottleneck_forward.5} parent=27 // pred_fallthru
        _
    $region28: #{bottleneck_forward.5} parent=5 // pred_fallthru
      _
    %p161 = scmp.le.s32.totalorder 1, %s10
    %p162 = scmp.lt.s32.totalorder %s10, 3
    %p163 = pnand %p161, %p162
    %p164 = pneg %p163
    // Predicated region
    $region33: #{bottleneck_forward.5} parent=5 // pred_check
      _
    $region34: #{bottleneck_forward.5} parent=5 // pred_check_branch
      %166 = sbr.rel (%p163) target = $region36
    $region35: #{bottleneck_forward.5} parent=5 // pred_region
      %s167 = ssub.s32 %s10, 1
      %p168 = scmp.lt.s32.totalorder %s15, 1
      %s169 = scalar_select %p168, %s15, 1
      %s170 = smul.addr %s169, 32
      %s171 = smul.addr %s170, 8
      %s172 = scalar_lea.vmem %s0, %s171
      %p173 = pneg %p36
      %p174 = pneg %p33
      %p175 = pneg %p57
      %p176 = pneg %p54
      %p177 = pneg %p78
      %p178 = pneg %p75
      %p179 = pneg %p99
      %p180 = pneg %p96
      %p181 = pneg %p125
      %p182 = pneg %p122
      %p183 = scmp.lt.s32.totalorder %s15, 1
      %s184 = scalar_select %p183, %s15, 1
      %s185 = smul.addr %s184, 32
      %s186 = smul.addr %s185, 8
      %s187 = scalar_lea.vmem %s4, %s186
      %p188 = scmp.lt.s32.totalorder %s15, 1
      %s189 = scalar_select %p188, %s15, 1
      %s190 = smul.addr %s189, 32
      %s191 = smul.addr %s190, 8
      %s192 = scalar_lea.vmem %s0, %s191
      %p193 = scmp.lt.s32.totalorder %s15, 1
      %s194 = scalar_select %p193, %s15, 1
      %s195 = smul.addr %s194, 32
      %s196 = smul.addr %s195, 8
      %s197 = scalar_lea.vmem %s4, %s196
      %199 = vst [vmem:[#allocation2] sm:$0xff] 0.0
      %200 = vst [vmem:[#allocation2 + $0x8] sm:$0xff] 0.0
      %201 = vst [vmem:[#allocation2 + $0x10] sm:$0x3] 0.0
      %202 = vst [vmem:[#allocation2 + $0x18] sm:$0xff] 0.0
      %203 = vst [vmem:[#allocation2 + $0x20] sm:$0xff] 0.0
      %204 = vst [vmem:[#allocation2 + $0x28] sm:$0x3] 0.0
      %205 = vst [vmem:[#allocation2 + $0x30] sm:$0xff] 0.0
      %206 = vst [vmem:[#allocation2 + $0x38] sm:$0xff] 0.0
      %207 = vst [vmem:[#allocation2 + $0x40] sm:$0x3] 0.0
      %208 = vst [vmem:[#allocation2 + $0x48] sm:$0xff] 0.0
      %209 = vst [vmem:[#allocation2 + $0x50] sm:$0xff] 0.0
      %210 = vst [vmem:[#allocation2 + $0x58] sm:$0x3] 0.0
      %211 = vst [vmem:[#allocation2 + $0x60] sm:$0xff] 0.0
      %212 = vst [vmem:[#allocation2 + $0x68] sm:$0xff] 0.0
      %213 = vst [vmem:[#allocation2 + $0x70] sm:$0x3] 0.0
      %214 = vst [vmem:[#allocation2 + $0x78] sm:$0xff] 0.0
      %215 = vst [vmem:[#allocation2 + $0x80] sm:$0xff] 0.0
      %216 = vst [vmem:[#allocation2 + $0x88] sm:$0x3] 0.0
      %217 = vst [vmem:[#allocation2 + $0x90] sm:$0xff] 0.0
      %218 = vst [vmem:[#allocation2 + $0x98] sm:$0xff] 0.0
      %219 = vst [vmem:[#allocation2 + $0xa0] sm:$0x3] 0.0
      %220 = vst [vmem:[#allocation2 + $0xa8] sm:$0xff] 0.0
      %221 = vst [vmem:[#allocation2 + $0xb0] sm:$0xff] 0.0
      %222 = vst [vmem:[#allocation2 + $0xb8] sm:$0x3] 0.0
      %223 = vst [vmem:[#allocation2 + $0xc0] sm:$0xff] 0.0
      %224 = vst [vmem:[#allocation2 + $0xc8] sm:$0xff] 0.0
      %225 = vst [vmem:[#allocation2 + $0xd0] sm:$0x3] 0.0
      %226 = vst [vmem:[#allocation2 + $0xd8] sm:$0xff] 0.0
      %227 = vst [vmem:[#allocation2 + $0xe0] sm:$0xff] 0.0
      %228 = vst [vmem:[#allocation2 + $0xe8] sm:$0x3] 0.0
      %229 = vst [vmem:[#allocation2 + $0xf0] sm:$0xff] 0.0
      %230 = vst [vmem:[#allocation2 + $0xf8] sm:$0xff] 0.0
      %231 = vst [vmem:[#allocation2 + $0x100] sm:$0x3] 0.0
      %232 = vst [vmem:[#allocation2 + $0x108] sm:$0xff] 0.0
      %233 = vst [vmem:[#allocation2 + $0x110] sm:$0xff] 0.0
      %234 = vst [vmem:[#allocation2 + $0x118] sm:$0x3] 0.0
      %235 = vst [vmem:[#allocation2 + $0x120] sm:$0xff] 0.0
      %236 = vst [vmem:[#allocation2 + $0x128] sm:$0xff] 0.0
      %237 = vst [vmem:[#allocation2 + $0x130] sm:$0x3] 0.0
      %238 = vst [vmem:[#allocation2 + $0x138] sm:$0xff] 0.0
      %239 = vst [vmem:[#allocation2 + $0x140] sm:$0xff] 0.0
      %240 = vst [vmem:[#allocation2 + $0x148] sm:$0x3] 0.0
      %241 = vst [vmem:[#allocation2 + $0x150] sm:$0xff] 0.0
      %242 = vst [vmem:[#allocation2 + $0x158] sm:$0xff] 0.0
      %243 = vst [vmem:[#allocation2 + $0x160] sm:$0x3] 0.0
      %244 = vst [vmem:[#allocation2 + $0x168] sm:$0xff] 0.0
      %245 = vst [vmem:[#allocation2 + $0x170] sm:$0xff] 0.0
      %246 = vst [vmem:[#allocation2 + $0x178] sm:$0x3] 0.0
      %247 = vst [vmem:[#allocation2 + $0x180] sm:$0xff] 0.0
      %248 = vst [vmem:[#allocation2 + $0x188] sm:$0xff] 0.0
      %249 = vst [vmem:[#allocation2 + $0x190] sm:$0x3] 0.0
      %250 = vst [vmem:[#allocation2 + $0x198] sm:$0xff] 0.0
      %251 = vst [vmem:[#allocation2 + $0x1a0] sm:$0xff] 0.0
      %252 = vst [vmem:[#allocation2 + $0x1a8] sm:$0x3] 0.0
      %v253 = vld [vmem:[%s192] sm:$0xff]
      %v254 = vld [vmem:[%s192 + $0x8] sm:$0xff]
      %v255 = vld [vmem:[%s192 + $0x10] sm:$0xff]
      %v256 = vld [vmem:[%s192 + $0x18] sm:$0xff]
      %v257 = vld [vmem:[%s192 + $0x20] sm:$0xff]
      %v258 = vld [vmem:[%s192 + $0x28] sm:$0xff]
      %v259 = vld [vmem:[%s192 + $0x30] sm:$0xff]
      %v260 = vld [vmem:[%s192 + $0x38] sm:$0xff]
      %v261 = vld [vmem:[%s192 + $0x40] sm:$0xff]
      %v262 = vld [vmem:[%s192 + $0x48] sm:$0xff]
      %v263 = vld [vmem:[%s192 + $0x50] sm:$0xff]
      %v264 = vld [vmem:[%s192 + $0x58] sm:$0xff]
      %v265 = vld [vmem:[%s192 + $0x60] sm:$0xff]
      %v266 = vld [vmem:[%s192 + $0x68] sm:$0xff]
      %v267 = vld [vmem:[%s192 + $0x70] sm:$0xff]
      %v268 = vld [vmem:[%s192 + $0x78] sm:$0xff]
      %v269 = vld [vmem:[%s192 + $0x80] sm:$0xff]
      %v270 = vld [vmem:[%s192 + $0x88] sm:$0xff]
      %v271 = vld [vmem:[%s192 + $0x90] sm:$0xff]
      %v272 = vld [vmem:[%s192 + $0x98] sm:$0xff]
      %v273 = vld [vmem:[%s192 + $0xa0] sm:$0xff]
      %v274 = vld [vmem:[%s192 + $0xa8] sm:$0xff]
      %v275 = vld [vmem:[%s192 + $0xb0] sm:$0xff]
      %v276 = vld [vmem:[%s192 + $0xb8] sm:$0xff]
      %v277 = vld [vmem:[%s192 + $0xc0] sm:$0xff]
      %v278 = vld [vmem:[%s192 + $0xc8] sm:$0xff]
      %v279 = vld [vmem:[%s192 + $0xd0] sm:$0xff]
      %v280 = vld [vmem:[%s192 + $0xd8] sm:$0xff]
      %v281 = vld [vmem:[%s192 + $0xe0] sm:$0xff]
      %v282 = vld [vmem:[%s192 + $0xe8] sm:$0xff]
      %v283 = vld [vmem:[%s192 + $0xf0] sm:$0xff]
      %v284 = vld [vmem:[%s192 + $0xf8] sm:$0xff]
      %v285 = vld [vmem:[%s1] sm:$0x1]
      %v287 = vlaneseq
      %v288 = vshrl.u32 %v287, 7
      %v289 = vsub.s32 0, %v288
      %v290 = vrot.slane %v285, %v289
      %v292 = vmul.f32 %v253, %v290
      %v293 = vmul.f32 %v254, %v290
      %v294 = vmul.f32 %v255, %v290
      %v295 = vmul.f32 %v256, %v290
      %v296 = vmul.f32 %v257, %v290
      %v297 = vmul.f32 %v258, %v290
      %v298 = vmul.f32 %v259, %v290
      %v299 = vmul.f32 %v260, %v290
      %v300 = vmul.f32 %v261, %v290
      %v301 = vmul.f32 %v262, %v290
      %v302 = vmul.f32 %v263, %v290
      %v303 = vmul.f32 %v264, %v290
      %v304 = vmul.f32 %v265, %v290
      %v305 = vmul.f32 %v266, %v290
      %v306 = vmul.f32 %v267, %v290
      %v307 = vmul.f32 %v268, %v290
      %v308 = vmul.f32 %v269, %v290
      %v309 = vmul.f32 %v270, %v290
      %v310 = vmul.f32 %v271, %v290
      %v311 = vmul.f32 %v272, %v290
      %v312 = vmul.f32 %v273, %v290
      %v313 = vmul.f32 %v274, %v290
      %v314 = vmul.f32 %v275, %v290
      %v315 = vmul.f32 %v276, %v290
      %v316 = vmul.f32 %v277, %v290
      %v317 = vmul.f32 %v278, %v290
      %v318 = vmul.f32 %v279, %v290
      %v319 = vmul.f32 %v280, %v290
      %v320 = vmul.f32 %v281, %v290
      %v321 = vmul.f32 %v282, %v290
      %v322 = vmul.f32 %v283, %v290
      %v323 = vmul.f32 %v284, %v290
      %v324 = vld [vmem:[%s2] sm:$0x1]
      %v326 = vlaneseq
      %v327 = vshrl.u32 %v326, 7
      %v328 = vsub.s32 0, %v327
      %v329 = vrot.slane %v324, %v328
      %v331 = vadd.f32 %v292, %v329
      %v332 = vadd.f32 %v293, %v329
      %v333 = vadd.f32 %v294, %v329
      %v334 = vadd.f32 %v295, %v329
      %v335 = vadd.f32 %v296, %v329
      %v336 = vadd.f32 %v297, %v329
      %v337 = vadd.f32 %v298, %v329
      %v338 = vadd.f32 %v299, %v329
      %v339 = vadd.f32 %v300, %v329
      %v340 = vadd.f32 %v301, %v329
      %v341 = vadd.f32 %v302, %v329
      %v342 = vadd.f32 %v303, %v329
      %v343 = vadd.f32 %v304, %v329
      %v344 = vadd.f32 %v305, %v329
      %v345 = vadd.f32 %v306, %v329
      %v346 = vadd.f32 %v307, %v329
      %v347 = vadd.f32 %v308, %v329
      %v348 = vadd.f32 %v309, %v329
      %v349 = vadd.f32 %v310, %v329
      %v350 = vadd.f32 %v311, %v329
      %v351 = vadd.f32 %v312, %v329
      %v352 = vadd.f32 %v313, %v329
      %v353 = vadd.f32 %v314, %v329
      %v354 = vadd.f32 %v315, %v329
      %v355 = vadd.f32 %v316, %v329
      %v356 = vadd.f32 %v317, %v329
      %v357 = vadd.f32 %v318, %v329
      %v358 = vadd.f32 %v319, %v329
      %v359 = vadd.f32 %v320, %v329
      %v360 = vadd.f32 %v321, %v329
      %v361 = vadd.f32 %v322, %v329
      %v362 = vadd.f32 %v323, %v329
      %v363 = vmax.f32 %v331, 0.0
      %v364 = vmax.f32 %v332, 0.0
      %v365 = vmax.f32 %v333, 0.0
      %v366 = vmax.f32 %v334, 0.0
      %v367 = vmax.f32 %v335, 0.0
      %v368 = vmax.f32 %v336, 0.0
      %v369 = vmax.f32 %v337, 0.0
      %v370 = vmax.f32 %v338, 0.0
      %v371 = vmax.f32 %v339, 0.0
      %v372 = vmax.f32 %v340, 0.0
      %v373 = vmax.f32 %v341, 0.0
      %v374 = vmax.f32 %v342, 0.0
      %v375 = vmax.f32 %v343, 0.0
      %v376 = vmax.f32 %v344, 0.0
      %v377 = vmax.f32 %v345, 0.0
      %v378 = vmax.f32 %v346, 0.0
      %v379 = vmax.f32 %v347, 0.0
      %v380 = vmax.f32 %v348, 0.0
      %v381 = vmax.f32 %v349, 0.0
      %v382 = vmax.f32 %v350, 0.0
      %v383 = vmax.f32 %v351, 0.0
      %v384 = vmax.f32 %v352, 0.0
      %v385 = vmax.f32 %v353, 0.0
      %v386 = vmax.f32 %v354, 0.0
      %v387 = vmax.f32 %v355, 0.0
      %v388 = vmax.f32 %v356, 0.0
      %v389 = vmax.f32 %v357, 0.0
      %v390 = vmax.f32 %v358, 0.0
      %v391 = vmax.f32 %v359, 0.0
      %v392 = vmax.f32 %v360, 0.0
      %v393 = vmax.f32 %v361, 0.0
      %v394 = vmax.f32 %v362, 0.0
      %s395 = scalar_lea.vmem [#allocation2], 24
      %396 = vst [vmem:[%s395 + $0x1] sm:$0xff] %v363
      %397 = vst [vmem:[%s395 + $0x9] sm:$0xff] %v364
      %398 = vst [vmem:[%s395 + $0x19] sm:$0xff] %v365
      %399 = vst [vmem:[%s395 + $0x21] sm:$0xff] %v366
      %400 = vst [vmem:[%s395 + $0x31] sm:$0xff] %v367
      %401 = vst [vmem:[%s395 + $0x39] sm:$0xff] %v368
      %402 = vst [vmem:[%s395 + $0x49] sm:$0xff] %v369
      %403 = vst [vmem:[%s395 + $0x51] sm:$0xff] %v370
      %404 = vst [vmem:[%s395 + $0x61] sm:$0xff] %v371
      %405 = vst [vmem:[%s395 + $0x69] sm:$0xff] %v372
      %406 = vst [vmem:[%s395 + $0x79] sm:$0xff] %v373
      %407 = vst [vmem:[%s395 + $0x81] sm:$0xff] %v374
      %408 = vst [vmem:[%s395 + $0x91] sm:$0xff] %v375
      %409 = vst [vmem:[%s395 + $0x99] sm:$0xff] %v376
      %410 = vst [vmem:[%s395 + $0xa9] sm:$0xff] %v377
      %411 = vst [vmem:[%s395 + $0xb1] sm:$0xff] %v378
      %412 = vst [vmem:[%s395 + $0xc1] sm:$0xff] %v379
      %413 = vst [vmem:[%s395 + $0xc9] sm:$0xff] %v380
      %414 = vst [vmem:[%s395 + $0xd9] sm:$0xff] %v381
      %415 = vst [vmem:[%s395 + $0xe1] sm:$0xff] %v382
      %416 = vst [vmem:[%s395 + $0xf1] sm:$0xff] %v383
      %417 = vst [vmem:[%s395 + $0xf9] sm:$0xff] %v384
      %418 = vst [vmem:[%s395 + $0x109] sm:$0xff] %v385
      %419 = vst [vmem:[%s395 + $0x111] sm:$0xff] %v386
      %420 = vst [vmem:[%s395 + $0x121] sm:$0xff] %v387
      %421 = vst [vmem:[%s395 + $0x129] sm:$0xff] %v388
      %422 = vst [vmem:[%s395 + $0x139] sm:$0xff] %v389
      %423 = vst [vmem:[%s395 + $0x141] sm:$0xff] %v390
      %424 = vst [vmem:[%s395 + $0x151] sm:$0xff] %v391
      %425 = vst [vmem:[%s395 + $0x159] sm:$0xff] %v392
      %426 = vst [vmem:[%s395 + $0x169] sm:$0xff] %v393
      %427 = vst [vmem:[%s395 + $0x171] sm:$0xff] %v394
      %v428 = vld [vmem:[#allocation2] sm:$0xff]
      %v429 = vld [vmem:[#allocation2 + $0x8] sm:$0xff]
      %v430 = vld [vmem:[#allocation2 + $0x18] sm:$0xff]
      %v431 = vld [vmem:[#allocation2 + $0x20] sm:$0xff]
      %v432 = vld [vmem:[#allocation2 + $0x30] sm:$0xff]
      %v433 = vld [vmem:[#allocation2 + $0x38] sm:$0xff]
      %v434 = vld [vmem:[#allocation2 + $0x48] sm:$0xff]
      %v435 = vld [vmem:[#allocation2 + $0x50] sm:$0xff]
      %v436 = vld [vmem:[#allocation2 + $0x60] sm:$0xff]
      %v437 = vld [vmem:[#allocation2 + $0x68] sm:$0xff]
      %v438 = vld [vmem:[#allocation2 + $0x78] sm:$0xff]
      %v439 = vld [vmem:[#allocation2 + $0x80] sm:$0xff]
      %v440 = vld [vmem:[#allocation2 + $0x90] sm:$0xff]
      %v441 = vld [vmem:[#allocation2 + $0x98] sm:$0xff]
      %v442 = vld [vmem:[#allocation2 + $0xa8] sm:$0xff]
      %v443 = vld [vmem:[#allocation2 + $0xb0] sm:$0xff]
      %v444 = vld [vmem:[#allocation2 + $0xc0] sm:$0xff]
      %v445 = vld [vmem:[#allocation2 + $0xc8] sm:$0xff]
      %v446 = vld [vmem:[#allocation2 + $0xd8] sm:$0xff]
      %v447 = vld [vmem:[#allocation2 + $0xe0] sm:$0xff]
      %v448 = vld [vmem:[#allocation2 + $0xf0] sm:$0xff]
      %v449 = vld [vmem:[#allocation2 + $0xf8] sm:$0xff]
      %v450 = vld [vmem:[#allocation2 + $0x108] sm:$0xff]
      %v451 = vld [vmem:[#allocation2 + $0x110] sm:$0xff]
      %v452 = vld [vmem:[#allocation2 + $0x120] sm:$0xff]
      %v453 = vld [vmem:[#allocation2 + $0x128] sm:$0xff]
      %v454 = vld [vmem:[#allocation2 + $0x138] sm:$0xff]
      %v455 = vld [vmem:[#allocation2 + $0x140] sm:$0xff]
      %v456 = vld [vmem:[#allocation2 + $0x150] sm:$0xff]
      %v457 = vld [vmem:[#allocation2 + $0x158] sm:$0xff]
      %v458 = vld [vmem:[#allocation2 + $0x168] sm:$0xff]
      %v459 = vld [vmem:[#allocation2 + $0x170] sm:$0xff]
      %v460 = vpack.c.bf16 %v429, %v428
      %v461 = vpack.c.bf16 %v431, %v430
      %v462 = vpack.c.bf16 %v433, %v432
      %v463 = vpack.c.bf16 %v435, %v434
      %v464 = vpack.c.bf16 %v437, %v436
      %v465 = vpack.c.bf16 %v439, %v438
      %v466 = vpack.c.bf16 %v441, %v440
      %v467 = vpack.c.bf16 %v443, %v442
      %v468 = vpack.c.bf16 %v445, %v444
      %v469 = vpack.c.bf16 %v447, %v446
      %v470 = vpack.c.bf16 %v449, %v448
      %v471 = vpack.c.bf16 %v451, %v450
      %v472 = vpack.c.bf16 %v453, %v452
      %v473 = vpack.c.bf16 %v455, %v454
      %v474 = vpack.c.bf16 %v457, %v456
      %v475 = vpack.c.bf16 %v459, %v458
      %v476 = vld [vmem:[%s3] sm:$0xf]
      %v477 = vld [vmem:[%s3 + $0x4] sm:$0xf]
      %v478 = vld [vmem:[%s3 + $0x8] sm:$0xf]
      %v479 = vld [vmem:[%s3 + $0xc] sm:$0xf]
      %v480 = vld [vmem:[%s3 + $0x10] sm:$0xf]
      %v481 = vld [vmem:[%s3 + $0x14] sm:$0xf]
      %v482 = vld [vmem:[%s3 + $0x18] sm:$0xf]
      %v483 = vld [vmem:[%s3 + $0x1c] sm:$0xf]
      %v484 = vld [vmem:[%s3 + $0x20] sm:$0xf]
      %v485 = vld [vmem:[%s3 + $0x24] sm:$0xf]
      %v486 = vld [vmem:[%s3 + $0x28] sm:$0xf]
      %v487 = vld [vmem:[%s3 + $0x2c] sm:$0xf]
      %v488 = vld [vmem:[%s3 + $0x30] sm:$0xf]
      %v489 = vld [vmem:[%s3 + $0x34] sm:$0xf]
      %v490 = vld [vmem:[%s3 + $0x38] sm:$0xf]
      %v491 = vld [vmem:[%s3 + $0x3c] sm:$0xf]
      %v492 = vld [vmem:[#allocation2 + $0x1] sm:$0xff]
      %v493 = vld [vmem:[#allocation2 + $0x9] sm:$0xff]
      %v494 = vld [vmem:[#allocation2 + $0x19] sm:$0xff]
      %v495 = vld [vmem:[#allocation2 + $0x21] sm:$0xff]
      %v496 = vld [vmem:[#allocation2 + $0x31] sm:$0xff]
      %v497 = vld [vmem:[#allocation2 + $0x39] sm:$0xff]
      %v498 = vld [vmem:[#allocation2 + $0x49] sm:$0xff]
      %v499 = vld [vmem:[#allocation2 + $0x51] sm:$0xff]
      %v500 = vld [vmem:[#allocation2 + $0x61] sm:$0xff]
      %v501 = vld [vmem:[#allocation2 + $0x69] sm:$0xff]
      %v502 = vld [vmem:[#allocation2 + $0x79] sm:$0xff]
      %v503 = vld [vmem:[#allocation2 + $0x81] sm:$0xff]
      %v504 = vld [vmem:[#allocation2 + $0x91] sm:$0xff]
      %v505 = vld [vmem:[#allocation2 + $0x99] sm:$0xff]
      %v506 = vld [vmem:[#allocation2 + $0xa9] sm:$0xff]
      %v507 = vld [vmem:[#allocation2 + $0xb1] sm:$0xff]
      %v508 = vld [vmem:[#allocation2 + $0xc1] sm:$0xff]
      %v509 = vld [vmem:[#allocation2 + $0xc9] sm:$0xff]
      %v510 = vld [vmem:[#allocation2 + $0xd9] sm:$0xff]
      %v511 = vld [vmem:[#allocation2 + $0xe1] sm:$0xff]
      %v512 = vld [vmem:[#allocation2 + $0xf1] sm:$0xff]
      %v513 = vld [vmem:[#allocation2 + $0xf9] sm:$0xff]
      %v514 = vld [vmem:[#allocation2 + $0x109] sm:$0xff]
      %v515 = vld [vmem:[#allocation2 + $0x111] sm:$0xff]
      %v516 = vld [vmem:[#allocation2 + $0x121] sm:$0xff]
      %v517 = vld [vmem:[#allocation2 + $0x129] sm:$0xff]
      %v518 = vld [vmem:[#allocation2 + $0x139] sm:$0xff]
      %v519 = vld [vmem:[#allocation2 + $0x141] sm:$0xff]
      %v520 = vld [vmem:[#allocation2 + $0x151] sm:$0xff]
      %v521 = vld [vmem:[#allocation2 + $0x159] sm:$0xff]
      %v522 = vld [vmem:[#allocation2 + $0x169] sm:$0xff]
      %v523 = vld [vmem:[#allocation2 + $0x171] sm:$0xff]
      %v524 = vpack.c.bf16 %v493, %v492
      %v525 = vpack.c.bf16 %v495, %v494
      %v526 = vpack.c.bf16 %v497, %v496
      %v527 = vpack.c.bf16 %v499, %v498
      %v528 = vpack.c.bf16 %v501, %v500
      %v529 = vpack.c.bf16 %v503, %v502
      %v530 = vpack.c.bf16 %v505, %v504
      %v531 = vpack.c.bf16 %v507, %v506
      %v532 = vpack.c.bf16 %v509, %v508
      %v533 = vpack.c.bf16 %v511, %v510
      %v534 = vpack.c.bf16 %v513, %v512
      %v535 = vpack.c.bf16 %v515, %v514
      %v536 = vpack.c.bf16 %v517, %v516
      %v537 = vpack.c.bf16 %v519, %v518
      %v538 = vpack.c.bf16 %v521, %v520
      %v539 = vpack.c.bf16 %v523, %v522
      %s540 = scalar_lea.vmem %s3, 64
      %v541 = vld [vmem:[%s540] sm:$0xf]
      %v542 = vld [vmem:[%s540 + $0x4] sm:$0xf]
      %v543 = vld [vmem:[%s540 + $0x8] sm:$0xf]
      %v544 = vld [vmem:[%s540 + $0xc] sm:$0xf]
      %v545 = vld [vmem:[%s540 + $0x10] sm:$0xf]
      %v546 = vld [vmem:[%s540 + $0x14] sm:$0xf]
      %v547 = vld [vmem:[%s540 + $0x18] sm:$0xf]
      %v548 = vld [vmem:[%s540 + $0x1c] sm:$0xf]
      %v549 = vld [vmem:[%s540 + $0x20] sm:$0xf]
      %v550 = vld [vmem:[%s540 + $0x24] sm:$0xf]
      %v551 = vld [vmem:[%s540 + $0x28] sm:$0xf]
      %v552 = vld [vmem:[%s540 + $0x2c] sm:$0xf]
      %v553 = vld [vmem:[%s540 + $0x30] sm:$0xf]
      %v554 = vld [vmem:[%s540 + $0x34] sm:$0xf]
      %v555 = vld [vmem:[%s540 + $0x38] sm:$0xf]
      %v556 = vld [vmem:[%s540 + $0x3c] sm:$0xf]
      %v573 = vunpack.c.l.b16 %v541
      %v574 = vunpack.c.l.b16 %v542
      %v575 = vunpack.c.l.b16 %v543
      %v576 = vunpack.c.l.b16 %v544
      %v577 = vunpack.c.l.b16 %v545
      %v578 = vunpack.c.l.b16 %v546
      %v579 = vunpack.c.l.b16 %v547
      %v580 = vunpack.c.l.b16 %v548
      %v581 = vunpack.c.l.b16 %v549
      %v582 = vunpack.c.l.b16 %v550
      %v583 = vunpack.c.l.b16 %v551
      %v584 = vunpack.c.l.b16 %v552
      %v585 = vunpack.c.l.b16 %v553
      %v586 = vunpack.c.l.b16 %v554
      %v587 = vunpack.c.l.b16 %v555
      %v588 = vunpack.c.l.b16 %v556
      %v589 = vpack.c.b16 %v574, %v573
      %v590 = vpack.c.b16 %v576, %v575
      %v591 = vpack.c.b16 %v578, %v577
      %v592 = vpack.c.b16 %v580, %v579
      %v593 = vpack.c.b16 %v582, %v581
      %v594 = vpack.c.b16 %v584, %v583
      %v595 = vpack.c.b16 %v586, %v585
      %v596 = vpack.c.b16 %v588, %v587
      %605 = vmatprep.subr.bf16.mxu0 0
      %606 = vmatpush1.bf16.msra.mxu0 %v589
      %607 = vmatprep.subr.bf16.mxu0 0
      %608 = vmatpush1.bf16.msra.mxu0 %v590
      %609 = vmatprep.subr.bf16.mxu0 0
      %610 = vmatpush1.bf16.msra.mxu0 %v591
      %611 = vmatprep.subr.bf16.mxu0 0
      %612 = vmatpush1.bf16.msra.mxu0 %v592
      %613 = vmatprep.subr.bf16.mxu0 0
      %614 = vmatpush1.bf16.msra.mxu0 %v593
      %615 = vmatprep.subr.bf16.mxu0 0
      %616 = vmatpush1.bf16.msra.mxu0 %v594
      %617 = vmatprep.subr.bf16.mxu0 0
      %618 = vmatpush1.bf16.msra.mxu0 %v595
      %619 = vmatprep.subr.bf16.mxu0 0
      %620 = vmatpush1.bf16.msra.mxu0 %v596
      %621 = vmatprep.subr.bf16.mxu0 0
      %622 = vmatpush1.bf16.msra.mxu0 0
      %623 = vmatprep.subr.bf16.mxu0 0
      %624 = vmatpush1.bf16.msra.mxu0 0
      %625 = vmatprep.subr.bf16.mxu0 0
      %626 = vmatpush1.bf16.msra.mxu0 0
      %627 = vmatprep.subr.bf16.mxu0 0
      %628 = vmatpush1.bf16.msra.mxu0 0
      %629 = vmatprep.subr.bf16.mxu0 0
      %630 = vmatpush1.bf16.msra.mxu0 0
      %631 = vmatprep.subr.bf16.mxu0 0
      %632 = vmatpush1.bf16.msra.mxu0 0
      %633 = vmatprep.subr.bf16.mxu0 0
      %634 = vmatpush1.bf16.msra.mxu0 0
      %635 = vmatprep.subr.bf16.mxu0 0
      %636 = vmatpush1.bf16.msra.mxu0 0
      %637 = vmatprep.mubr.bf16.mxu0 0
      %638 = vmatmul.mubr.bf16.gmra.mrb[0].mxu0 %v524
      %v639 = vpop.f32.mrb[0].mxu0
      %v640 = vadd.f32 0.0, %v639
      %v641 = vpop.f32.mrb[0].mxu0
      %v642 = vpop.f32.mrb[0].mxu0
      %v643 = vadd.f32 0.0, %v642
      %v644 = vpop.f32.mrb[0].mxu0
      %645 = vmatprep.mubr.bf16.mxu0 0
      %646 = vmatmul.mubr.bf16.gmra.mrb[0].mxu0 %v525
      %v647 = vpop.f32.mrb[0].mxu0
      %v648 = vadd.f32 0.0, %v647
      %v649 = vpop.f32.mrb[0].mxu0
      %v650 = vpop.f32.mrb[0].mxu0
      %v651 = vadd.f32 0.0, %v650
      %v652 = vpop.f32.mrb[0].mxu0
      %653 = vmatprep.mubr.bf16.mxu0 0
      %654 = vmatmul.mubr.bf16.gmra.mrb[0].mxu0 %v526
      %v655 = vpop.f32.mrb[0].mxu0
      %v656 = vadd.f32 0.0, %v655
      %v657 = vpop.f32.mrb[0].mxu0
      %v658 = vpop.f32.mrb[0].mxu0
      %v659 = vadd.f32 0.0, %v658
      %v660 = vpop.f32.mrb[0].mxu0
      %661 = vmatprep.mubr.bf16.mxu0 0
      %662 = vmatmul.mubr.bf16.gmra.mrb[0].mxu0 %v527
      %v663 = vpop.f32.mrb[0].mxu0
      %v664 = vadd.f32 0.0, %v663
      %v665 = vpop.f32.mrb[0].mxu0
      %v666 = vpop.f32.mrb[0].mxu0
      %v667 = vadd.f32 0.0, %v666
      %v668 = vpop.f32.mrb[0].mxu0
      %669 = vmatprep.mubr.bf16.mxu0 0
      %670 = vmatmul.mubr.bf16.gmra.mrb[0].mxu0 %v528
      %v671 = vpop.f32.mrb[0].mxu0
      %v672 = vadd.f32 0.0, %v671
      %v673 = vpop.f32.mrb[0].mxu0
      %v674 = vpop.f32.mrb[0].mxu0
      %v675 = vadd.f32 0.0, %v674
      %v676 = vpop.f32.mrb[0].mxu0
      %677 = vmatprep.mubr.bf16.mxu0 0
      %678 = vmatmul.mubr.bf16.gmra.mrb[0].mxu0 %v529
      %v679 = vpop.f32.mrb[0].mxu0
      %v680 = vadd.f32 0.0, %v679
      %v681 = vpop.f32.mrb[0].mxu0
      %v682 = vpop.f32.mrb[0].mxu0
      %v683 = vadd.f32 0.0, %v682
      %v684 = vpop.f32.mrb[0].mxu0
      %685 = vmatprep.mubr.bf16.mxu0 0
      %686 = vmatmul.mubr.bf16.gmra.mrb[0].mxu0 %v530
      %v687 = vpop.f32.mrb[0].mxu0
      %v688 = vadd.f32 0.0, %v687
      %v689 = vpop.f32.mrb[0].mxu0
      %v690 = vpop.f32.mrb[0].mxu0
      %v691 = vadd.f32 0.0, %v690
      %v692 = vpop.f32.mrb[0].mxu0
      %693 = vmatprep.mubr.bf16.mxu0 0
      %694 = vmatmul.mubr.bf16.gmra.mrb[0].mxu0 %v531
      %v695 = vpop.f32.mrb[0].mxu0
      %v696 = vadd.f32 0.0, %v695
      %v697 = vpop.f32.mrb[0].mxu0
      %v698 = vpop.f32.mrb[0].mxu0
      %v699 = vadd.f32 0.0, %v698
      %v700 = vpop.f32.mrb[0].mxu0
      %701 = vmatprep.mubr.bf16.mxu0 0
      %702 = vmatmul.mubr.bf16.gmra.mrb[0].mxu0 %v532
      %v703 = vpop.f32.mrb[0].mxu0
      %v704 = vadd.f32 0.0, %v703
      %v705 = vpop.f32.mrb[0].mxu0
      %v706 = vpop.f32.mrb[0].mxu0
      %v707 = vadd.f32 0.0, %v706
      %v708 = vpop.f32.mrb[0].mxu0
      %709 = vmatprep.mubr.bf16.mxu0 0
      %710 = vmatmul.mubr.bf16.gmra.mrb[0].mxu0 %v533
      %v711 = vpop.f32.mrb[0].mxu0
      %v712 = vadd.f32 0.0, %v711
      %v713 = vpop.f32.mrb[0].mxu0
      %v714 = vpop.f32.mrb[0].mxu0
      %v715 = vadd.f32 0.0, %v714
      %v716 = vpop.f32.mrb[0].mxu0
      %717 = vmatprep.mubr.bf16.mxu0 0
      %718 = vmatmul.mubr.bf16.gmra.mrb[0].mxu0 %v534
      %v719 = vpop.f32.mrb[0].mxu0
      %v720 = vadd.f32 0.0, %v719
      %v721 = vpop.f32.mrb[0].mxu0
      %v722 = vpop.f32.mrb[0].mxu0
      %v723 = vadd.f32 0.0, %v722
      %v724 = vpop.f32.mrb[0].mxu0
      %725 = vmatprep.mubr.bf16.mxu0 0
      %726 = vmatmul.mubr.bf16.gmra.mrb[0].mxu0 %v535
      %v727 = vpop.f32.mrb[0].mxu0
      %v728 = vadd.f32 0.0, %v727
      %v729 = vpop.f32.mrb[0].mxu0
      %v730 = vpop.f32.mrb[0].mxu0
      %v731 = vadd.f32 0.0, %v730
      %v732 = vpop.f32.mrb[0].mxu0
      %733 = vmatprep.mubr.bf16.mxu0 0
      %734 = vmatmul.mubr.bf16.gmra.mrb[0].mxu0 %v536
      %v735 = vpop.f32.mrb[0].mxu0
      %v736 = vadd.f32 0.0, %v735
      %v737 = vpop.f32.mrb[0].mxu0
      %v738 = vpop.f32.mrb[0].mxu0
      %v739 = vadd.f32 0.0, %v738
      %v740 = vpop.f32.mrb[0].mxu0
      %741 = vmatprep.mubr.bf16.mxu0 0
      %742 = vmatmul.mubr.bf16.gmra.mrb[0].mxu0 %v537
      %v743 = vpop.f32.mrb[0].mxu0
      %v744 = vadd.f32 0.0, %v743
      %v745 = vpop.f32.mrb[0].mxu0
      %v746 = vpop.f32.mrb[0].mxu0
      %v747 = vadd.f32 0.0, %v746
      %v748 = vpop.f32.mrb[0].mxu0
      %749 = vmatprep.mubr.bf16.mxu0 0
      %750 = vmatmul.mubr.bf16.gmra.mrb[0].mxu0 %v538
      %v751 = vpop.f32.mrb[0].mxu0
      %v752 = vadd.f32 0.0, %v751
      %v753 = vpop.f32.mrb[0].mxu0
      %v754 = vpop.f32.mrb[0].mxu0
      %v755 = vadd.f32 0.0, %v754
      %v756 = vpop.f32.mrb[0].mxu0
      %757 = vmatprep.mubr.bf16.mxu0 0
      %758 = vmatmul.mubr.bf16.gmra.mrb[0].mxu0 %v539
      %v759 = vpop.f32.mrb[0].mxu0
      %v760 = vadd.f32 0.0, %v759
      %v761 = vpop.f32.mrb[0].mxu0
      %v762 = vpop.f32.mrb[0].mxu0
      %v763 = vadd.f32 0.0, %v762
      %v764 = vpop.f32.mrb[0].mxu0
      %765 = vdwg.mxu0
      %v782 = vunpack.c.l.b16 %v476
      %v783 = vunpack.c.l.b16 %v477
      %v784 = vunpack.c.l.b16 %v478
      %v785 = vunpack.c.l.b16 %v479
      %v786 = vunpack.c.l.b16 %v480
      %v787 = vunpack.c.l.b16 %v481
      %v788 = vunpack.c.l.b16 %v482
      %v789 = vunpack.c.l.b16 %v483
      %v790 = vunpack.c.l.b16 %v484
      %v791 = vunpack.c.l.b16 %v485
      %v792 = vunpack.c.l.b16 %v486
      %v793 = vunpack.c.l.b16 %v487
      %v794 = vunpack.c.l.b16 %v488
      %v795 = vunpack.c.l.b16 %v489
      %v796 = vunpack.c.l.b16 %v490
      %v797 = vunpack.c.l.b16 %v491
      %v798 = vpack.c.b16 %v783, %v782
      %v799 = vpack.c.b16 %v785, %v784
      %v800 = vpack.c.b16 %v787, %v786
      %v801 = vpack.c.b16 %v789, %v788
      %v802 = vpack.c.b16 %v791, %v790
      %v803 = vpack.c.b16 %v793, %v792
      %v804 = vpack.c.b16 %v795, %v794
      %v805 = vpack.c.b16 %v797, %v796
      %814 = vmatprep.subr.bf16.mxu0 0
      %815 = vmatpush1.bf16.msra.mxu0 %v798
      %816 = vmatprep.subr.bf16.mxu0 0
      %817 = vmatpush1.bf16.msra.mxu0 %v799
      %818 = vmatprep.subr.bf16.mxu0 0
      %819 = vmatpush1.bf16.msra.mxu0 %v800
      %820 = vmatprep.subr.bf16.mxu0 0
      %821 = vmatpush1.bf16.msra.mxu0 %v801
      %822 = vmatprep.subr.bf16.mxu0 0
      %823 = vmatpush1.bf16.msra.mxu0 %v802
      %824 = vmatprep.subr.bf16.mxu0 0
      %825 = vmatpush1.bf16.msra.mxu0 %v803
      %826 = vmatprep.subr.bf16.mxu0 0
      %827 = vmatpush1.bf16.msra.mxu0 %v804
      %828 = vmatprep.subr.bf16.mxu0 0
      %829 = vmatpush1.bf16.msra.mxu0 %v805
      %830 = vmatprep.subr.bf16.mxu0 0
      %831 = vmatpush1.bf16.msra.mxu0 0
      %832 = vmatprep.subr.bf16.mxu0 0
      %833 = vmatpush1.bf16.msra.mxu0 0
      %834 = vmatprep.subr.bf16.mxu0 0
      %835 = vmatpush1.bf16.msra.mxu0 0
      %836 = vmatprep.subr.bf16.mxu0 0
      %837 = vmatpush1.bf16.msra.mxu0 0
      %838 = vmatprep.subr.bf16.mxu0 0
      %839 = vmatpush1.bf16.msra.mxu0 0
      %840 = vmatprep.subr.bf16.mxu0 0
      %841 = vmatpush1.bf16.msra.mxu0 0
      %842 = vmatprep.subr.bf16.mxu0 0
      %843 = vmatpush1.bf16.msra.mxu0 0
      %844 = vmatprep.subr.bf16.mxu0 0
      %845 = vmatpush1.bf16.msra.mxu0 0
      %846 = vmatprep.mubr.bf16.mxu0 0
      %847 = vmatmul.mubr.bf16.gmra.mrb[0].mxu0 %v460
      %v848 = vpop.f32.mrb[0].mxu0
      %v849 = vadd.f32 %v640, %v848
      %v850 = vpop.f32.mrb[0].mxu0
      %v851 = vpop.f32.mrb[0].mxu0
      %v852 = vadd.f32 %v643, %v851
      %v853 = vpop.f32.mrb[0].mxu0
      %854 = vmatprep.mubr.bf16.mxu0 0
      %855 = vmatmul.mubr.bf16.gmra.mrb[0].mxu0 %v461
      %v856 = vpop.f32.mrb[0].mxu0
      %v857 = vadd.f32 %v648, %v856
      %v858 = vpop.f32.mrb[0].mxu0
      %v859 = vpop.f32.mrb[0].mxu0
      %v860 = vadd.f32 %v651, %v859
      %v861 = vpop.f32.mrb[0].mxu0
      %862 = vmatprep.mubr.bf16.mxu0 0
      %863 = vmatmul.mubr.bf16.gmra.mrb[0].mxu0 %v462
      %v864 = vpop.f32.mrb[0].mxu0
      %v865 = vadd.f32 %v656, %v864
      %v866 = vpop.f32.mrb[0].mxu0
      %v867 = vpop.f32.mrb[0].mxu0
      %v868 = vadd.f32 %v659, %v867
      %v869 = vpop.f32.mrb[0].mxu0
      %870 = vmatprep.mubr.bf16.mxu0 0
      %871 = vmatmul.mubr.bf16.gmra.mrb[0].mxu0 %v463
      %v872 = vpop.f32.mrb[0].mxu0
      %v873 = vadd.f32 %v664, %v872
      %v874 = vpop.f32.mrb[0].mxu0
      %v875 = vpop.f32.mrb[0].mxu0
      %v876 = vadd.f32 %v667, %v875
      %v877 = vpop.f32.mrb[0].mxu0
      %878 = vmatprep.mubr.bf16.mxu0 0
      %879 = vmatmul.mubr.bf16.gmra.mrb[0].mxu0 %v464
      %v880 = vpop.f32.mrb[0].mxu0
      %v881 = vadd.f32 %v672, %v880
      %v882 = vpop.f32.mrb[0].mxu0
      %v883 = vpop.f32.mrb[0].mxu0
      %v884 = vadd.f32 %v675, %v883
      %v885 = vpop.f32.mrb[0].mxu0
      %886 = vmatprep.mubr.bf16.mxu0 0
      %887 = vmatmul.mubr.bf16.gmra.mrb[0].mxu0 %v465
      %v888 = vpop.f32.mrb[0].mxu0
      %v889 = vadd.f32 %v680, %v888
      %v890 = vpop.f32.mrb[0].mxu0
      %v891 = vpop.f32.mrb[0].mxu0
      %v892 = vadd.f32 %v683, %v891
      %v893 = vpop.f32.mrb[0].mxu0
      %894 = vmatprep.mubr.bf16.mxu0 0
      %895 = vmatmul.mubr.bf16.gmra.mrb[0].mxu0 %v466
      %v896 = vpop.f32.mrb[0].mxu0
      %v897 = vadd.f32 %v688, %v896
      %v898 = vpop.f32.mrb[0].mxu0
      %v899 = vpop.f32.mrb[0].mxu0
      %v900 = vadd.f32 %v691, %v899
      %v901 = vpop.f32.mrb[0].mxu0
      %902 = vmatprep.mubr.bf16.mxu0 0
      %903 = vmatmul.mubr.bf16.gmra.mrb[0].mxu0 %v467
      %v904 = vpop.f32.mrb[0].mxu0
      %v905 = vadd.f32 %v696, %v904
      %v906 = vpop.f32.mrb[0].mxu0
      %v907 = vpop.f32.mrb[0].mxu0
      %v908 = vadd.f32 %v699, %v907
      %v909 = vpop.f32.mrb[0].mxu0
      %910 = vmatprep.mubr.bf16.mxu0 0
      %911 = vmatmul.mubr.bf16.gmra.mrb[0].mxu0 %v468
      %v912 = vpop.f32.mrb[0].mxu0
      %v913 = vadd.f32 %v704, %v912
      %v914 = vpop.f32.mrb[0].mxu0
      %v915 = vpop.f32.mrb[0].mxu0
      %v916 = vadd.f32 %v707, %v915
      %v917 = vpop.f32.mrb[0].mxu0
      %918 = vmatprep.mubr.bf16.mxu0 0
      %919 = vmatmul.mubr.bf16.gmra.mrb[0].mxu0 %v469
      %v920 = vpop.f32.mrb[0].mxu0
      %v921 = vadd.f32 %v712, %v920
      %v922 = vpop.f32.mrb[0].mxu0
      %v923 = vpop.f32.mrb[0].mxu0
      %v924 = vadd.f32 %v715, %v923
      %v925 = vpop.f32.mrb[0].mxu0
      %926 = vmatprep.mubr.bf16.mxu0 0
      %927 = vmatmul.mubr.bf16.gmra.mrb[0].mxu0 %v470
      %v928 = vpop.f32.mrb[0].mxu0
      %v929 = vadd.f32 %v720, %v928
      %v930 = vpop.f32.mrb[0].mxu0
      %v931 = vpop.f32.mrb[0].mxu0
      %v932 = vadd.f32 %v723, %v931
      %v933 = vpop.f32.mrb[0].mxu0
      %934 = vmatprep.mubr.bf16.mxu0 0
      %935 = vmatmul.mubr.bf16.gmra.mrb[0].mxu0 %v471
      %v936 = vpop.f32.mrb[0].mxu0
      %v937 = vadd.f32 %v728, %v936
      %v938 = vpop.f32.mrb[0].mxu0
      %v939 = vpop.f32.mrb[0].mxu0
      %v940 = vadd.f32 %v731, %v939
      %v941 = vpop.f32.mrb[0].mxu0
      %942 = vmatprep.mubr.bf16.mxu0 0
      %943 = vmatmul.mubr.bf16.gmra.mrb[0].mxu0 %v472
      %v944 = vpop.f32.mrb[0].mxu0
      %v945 = vadd.f32 %v736, %v944
      %v946 = vpop.f32.mrb[0].mxu0
      %v947 = vpop.f32.mrb[0].mxu0
      %v948 = vadd.f32 %v739, %v947
      %v949 = vpop.f32.mrb[0].mxu0
      %950 = vmatprep.mubr.bf16.mxu0 0
      %951 = vmatmul.mubr.bf16.gmra.mrb[0].mxu0 %v473
      %v952 = vpop.f32.mrb[0].mxu0
      %v953 = vadd.f32 %v744, %v952
      %v954 = vpop.f32.mrb[0].mxu0
      %v955 = vpop.f32.mrb[0].mxu0
      %v956 = vadd.f32 %v747, %v955
      %v957 = vpop.f32.mrb[0].mxu0
      %958 = vmatprep.mubr.bf16.mxu0 0
      %959 = vmatmul.mubr.bf16.gmra.mrb[0].mxu0 %v474
      %v960 = vpop.f32.mrb[0].mxu0
      %v961 = vadd.f32 %v752, %v960
      %v962 = vpop.f32.mrb[0].mxu0
      %v963 = vpop.f32.mrb[0].mxu0
      %v964 = vadd.f32 %v755, %v963
      %v965 = vpop.f32.mrb[0].mxu0
      %966 = vmatprep.mubr.bf16.mxu0 0
      %967 = vmatmul.mubr.bf16.gmra.mrb[0].mxu0 %v475
      %v968 = vpop.f32.mrb[0].mxu0
      %v969 = vadd.f32 %v760, %v968
      %v970 = vpop.f32.mrb[0].mxu0
      %v971 = vpop.f32.mrb[0].mxu0
      %v972 = vadd.f32 %v763, %v971
      %v973 = vpop.f32.mrb[0].mxu0
      %974 = vdwg.mxu0
      %v975 = vld [vmem:[#allocation2 + $0x2] sm:$0xff]
      %v976 = vld [vmem:[#allocation2 + $0xa] sm:$0xff]
      %v977 = vld [vmem:[#allocation2 + $0x1a] sm:$0xff]
      %v978 = vld [vmem:[#allocation2 + $0x22] sm:$0xff]
      %v979 = vld [vmem:[#allocation2 + $0x32] sm:$0xff]
      %v980 = vld [vmem:[#allocation2 + $0x3a] sm:$0xff]
      %v981 = vld [vmem:[#allocation2 + $0x4a] sm:$0xff]
      %v982 = vld [vmem:[#allocation2 + $0x52] sm:$0xff]
      %v983 = vld [vmem:[#allocation2 + $0x62] sm:$0xff]
      %v984 = vld [vmem:[#allocation2 + $0x6a] sm:$0xff]
      %v985 = vld [vmem:[#allocation2 + $0x7a] sm:$0xff]
      %v986 = vld [vmem:[#allocation2 + $0x82] sm:$0xff]
      %v987 = vld [vmem:[#allocation2 + $0x92] sm:$0xff]
      %v988 = vld [vmem:[#allocation2 + $0x9a] sm:$0xff]
      %v989 = vld [vmem:[#allocation2 + $0xaa] sm:$0xff]
      %v990 = vld [vmem:[#allocation2 + $0xb2] sm:$0xff]
      %v991 = vld [vmem:[#allocation2 + $0xc2] sm:$0xff]
      %v992 = vld [vmem:[#allocation2 + $0xca] sm:$0xff]
      %v993 = vld [vmem:[#allocation2 + $0xda] sm:$0xff]
      %v994 = vld [vmem:[#allocation2 + $0xe2] sm:$0xff]
      %v995 = vld [vmem:[#allocation2 + $0xf2] sm:$0xff]
      %v996 = vld [vmem:[#allocation2 + $0xfa] sm:$0xff]
      %v997 = vld [vmem:[#allocation2 + $0x10a] sm:$0xff]
      %v998 = vld [vmem:[#allocation2 + $0x112] sm:$0xff]
      %v999 = vld [vmem:[#allocation2 + $0x122] sm:$0xff]
      %v1000 = vld [vmem:[#allocation2 + $0x12a] sm:$0xff]
      %v1001 = vld [vmem:[#allocation2 + $0x13a] sm:$0xff]
      %v1002 = vld [vmem:[#allocation2 + $0x142] sm:$0xff]
      %v1003 = vld [vmem:[#allocation2 + $0x152] sm:$0xff]
      %v1004 = vld [vmem:[#allocation2 + $0x15a] sm:$0xff]
      %v1005 = vld [vmem:[#allocation2 + $0x16a] sm:$0xff]
      %v1006 = vld [vmem:[#allocation2 + $0x172] sm:$0xff]
      %v1007 = vpack.c.bf16 %v976, %v975
      %v1008 = vpack.c.bf16 %v978, %v977
      %v1009 = vpack.c.bf16 %v980, %v979
      %v1010 = vpack.c.bf16 %v982, %v981
      %v1011 = vpack.c.bf16 %v984, %v983
      %v1012 = vpack.c.bf16 %v986, %v985
      %v1013 = vpack.c.bf16 %v988, %v987
      %v1014 = vpack.c.bf16 %v990, %v989
      %v1015 = vpack.c.bf16 %v992, %v991
      %v1016 = vpack.c.bf16 %v994, %v993
      %v1017 = vpack.c.bf16 %v996, %v995
      %v1018 = vpack.c.bf16 %v998, %v997
      %v1019 = vpack.c.bf16 %v1000, %v999
      %v1020 = vpack.c.bf16 %v1002, %v1001
      %v1021 = vpack.c.bf16 %v1004, %v1003
      %v1022 = vpack.c.bf16 %v1006, %v1005
      %s1023 = scalar_lea.vmem %s3, 128
      %v1024 = vld [vmem:[%s1023] sm:$0xf]
      %v1025 = vld [vmem:[%s1023 + $0x4] sm:$0xf]
      %v1026 = vld [vmem:[%s1023 + $0x8] sm:$0xf]
      %v1027 = vld [vmem:[%s1023 + $0xc] sm:$0xf]
      %v1028 = vld [vmem:[%s1023 + $0x10] sm:$0xf]
      %v1029 = vld [vmem:[%s1023 + $0x14] sm:$0xf]
      %v1030 = vld [vmem:[%s1023 + $0x18] sm:$0xf]
      %v1031 = vld [vmem:[%s1023 + $0x1c] sm:$0xf]
      %v1032 = vld [vmem:[%s1023 + $0x20] sm:$0xf]
      %v1033 = vld [vmem:[%s1023 + $0x24] sm:$0xf]
      %v1034 = vld [vmem:[%s1023 + $0x28] sm:$0xf]
      %v1035 = vld [vmem:[%s1023 + $0x2c] sm:$0xf]
      %v1036 = vld [vmem:[%s1023 + $0x30] sm:$0xf]
      %v1037 = vld [vmem:[%s1023 + $0x34] sm:$0xf]
      %v1038 = vld [vmem:[%s1023 + $0x38] sm:$0xf]
      %v1039 = vld [vmem:[%s1023 + $0x3c] sm:$0xf]
      %v1056 = vunpack.c.l.b16 %v1024
      %v1057 = vunpack.c.l.b16 %v1025
      %v1058 = vunpack.c.l.b16 %v1026
      %v1059 = vunpack.c.l.b16 %v1027
      %v1060 = vunpack.c.l.b16 %v1028
      %v1061 = vunpack.c.l.b16 %v1029
      %v1062 = vunpack.c.l.b16 %v1030
      %v1063 = vunpack.c.l.b16 %v1031
      %v1064 = vunpack.c.l.b16 %v1032
      %v1065 = vunpack.c.l.b16 %v1033
      %v1066 = vunpack.c.l.b16 %v1034
      %v1067 = vunpack.c.l.b16 %v1035
      %v1068 = vunpack.c.l.b16 %v1036
      %v1069 = vunpack.c.l.b16 %v1037
      %v1070 = vunpack.c.l.b16 %v1038
      %v1071 = vunpack.c.l.b16 %v1039
      %v1072 = vpack.c.b16 %v1057, %v1056
      %v1073 = vpack.c.b16 %v1059, %v1058
      %v1074 = vpack.c.b16 %v1061, %v1060
      %v1075 = vpack.c.b16 %v1063, %v1062
      %v1076 = vpack.c.b16 %v1065, %v1064
      %v1077 = vpack.c.b16 %v1067, %v1066
      %v1078 = vpack.c.b16 %v1069, %v1068
      %v1079 = vpack.c.b16 %v1071, %v1070
      %1088 = vmatprep.subr.bf16.mxu0 0
      %1089 = vmatpush1.bf16.msra.mxu0 %v1072
      %1090 = vmatprep.subr.bf16.mxu0 0
      %1091 = vmatpush1.bf16.msra.mxu0 %v1073
      %1092 = vmatprep.subr.bf16.mxu0 0
      %1093 = vmatpush1.bf16.msra.mxu0 %v1074
      %1094 = vmatprep.subr.bf16.mxu0 0
      %1095 = vmatpush1.bf16.msra.mxu0 %v1075
      %1096 = vmatprep.subr.bf16.mxu0 0
      %1097 = vmatpush1.bf16.msra.mxu0 %v1076
      %1098 = vmatprep.subr.bf16.mxu0 0
      %1099 = vmatpush1.bf16.msra.mxu0 %v1077
      %1100 = vmatprep.subr.bf16.mxu0 0
      %1101 = vmatpush1.bf16.msra.mxu0 %v1078
      %1102 = vmatprep.subr.bf16.mxu0 0
      %1103 = vmatpush1.bf16.msra.mxu0 %v1079
      %1104 = vmatprep.subr.bf16.mxu0 0
      %1105 = vmatpush1.bf16.msra.mxu0 0
      %1106 = vmatprep.subr.bf16.mxu0 0
      %1107 = vmatpush1.bf16.msra.mxu0 0
      %1108 = vmatprep.subr.bf16.mxu0 0
      %1109 = vmatpush1.bf16.msra.mxu0 0
      %1110 = vmatprep.subr.bf16.mxu0 0
      %1111 = vmatpush1.bf16.msra.mxu0 0
      %1112 = vmatprep.subr.bf16.mxu0 0
      %1113 = vmatpush1.bf16.msra.mxu0 0
      %1114 = vmatprep.subr.bf16.mxu0 0
      %1115 = vmatpush1.bf16.msra.mxu0 0
      %1116 = vmatprep.subr.bf16.mxu0 0
      %1117 = vmatpush1.bf16.msra.mxu0 0
      %1118 = vmatprep.subr.bf16.mxu0 0
      %1119 = vmatpush1.bf16.msra.mxu0 0
      %1120 = vmatprep.mubr.bf16.mxu0 0
      %1121 = vmatmul.mubr.bf16.gmra.mrb[0].mxu0 %v1007
      %v1122 = vpop.f32.mrb[0].mxu0
      %v1123 = vadd.f32 0.0, %v1122
      %v1124 = vpop.f32.mrb[0].mxu0
      %v1125 = vpop.f32.mrb[0].mxu0
      %v1126 = vadd.f32 0.0, %v1125
      %v1127 = vpop.f32.mrb[0].mxu0
      %1128 = vmatprep.mubr.bf16.mxu0 0
      %1129 = vmatmul.mubr.bf16.gmra.mrb[0].mxu0 %v1008
      %v1130 = vpop.f32.mrb[0].mxu0
      %v1131 = vadd.f32 0.0, %v1130
      %v1132 = vpop.f32.mrb[0].mxu0
      %v1133 = vpop.f32.mrb[0].mxu0
      %v1134 = vadd.f32 0.0, %v1133
      %v1135 = vpop.f32.mrb[0].mxu0
      %1136 = vmatprep.mubr.bf16.mxu0 0
      %1137 = vmatmul.mubr.bf16.gmra.mrb[0].mxu0 %v1009
      %v1138 = vpop.f32.mrb[0].mxu0
      %v1139 = vadd.f32 0.0, %v1138
      %v1140 = vpop.f32.mrb[0].mxu0
      %v1141 = vpop.f32.mrb[0].mxu0
      %v1142 = vadd.f32 0.0, %v1141
      %v1143 = vpop.f32.mrb[0].mxu0
      %1144 = vmatprep.mubr.bf16.mxu0 0
      %1145 = vmatmul.mubr.bf16.gmra.mrb[0].mxu0 %v1010
      %v1146 = vpop.f32.mrb[0].mxu0
      %v1147 = vadd.f32 0.0, %v1146
      %v1148 = vpop.f32.mrb[0].mxu0
      %v1149 = vpop.f32.mrb[0].mxu0
      %v1150 = vadd.f32 0.0, %v1149
      %v1151 = vpop.f32.mrb[0].mxu0
      %1152 = vmatprep.mubr.bf16.mxu0 0
      %1153 = vmatmul.mubr.bf16.gmra.mrb[0].mxu0 %v1011
      %v1154 = vpop.f32.mrb[0].mxu0
      %v1155 = vadd.f32 0.0, %v1154
      %v1156 = vpop.f32.mrb[0].mxu0
      %v1157 = vpop.f32.mrb[0].mxu0
      %v1158 = vadd.f32 0.0, %v1157
      %v1159 = vpop.f32.mrb[0].mxu0
      %1160 = vmatprep.mubr.bf16.mxu0 0
      %1161 = vmatmul.mubr.bf16.gmra.mrb[0].mxu0 %v1012
      %v1162 = vpop.f32.mrb[0].mxu0
      %v1163 = vadd.f32 0.0, %v1162
      %v1164 = vpop.f32.mrb[0].mxu0
      %v1165 = vpop.f32.mrb[0].mxu0
      %v1166 = vadd.f32 0.0, %v1165
      %v1167 = vpop.f32.mrb[0].mxu0
      %1168 = vmatprep.mubr.bf16.mxu0 0
      %1169 = vmatmul.mubr.bf16.gmra.mrb[0].mxu0 %v1013
      %v1170 = vpop.f32.mrb[0].mxu0
      %v1171 = vadd.f32 0.0, %v1170
      %v1172 = vpop.f32.mrb[0].mxu0
      %v1173 = vpop.f32.mrb[0].mxu0
      %v1174 = vadd.f32 0.0, %v1173
      %v1175 = vpop.f32.mrb[0].mxu0
      %1176 = vmatprep.mubr.bf16.mxu0 0
      %1177 = vmatmul.mubr.bf16.gmra.mrb[0].mxu0 %v1014
      %v1178 = vpop.f32.mrb[0].mxu0
      %v1179 = vadd.f32 0.0, %v1178
      %v1180 = vpop.f32.mrb[0].mxu0
      %v1181 = vpop.f32.mrb[0].mxu0
      %v1182 = vadd.f32 0.0, %v1181
      %v1183 = vpop.f32.mrb[0].mxu0
      %1184 = vmatprep.mubr.bf16.mxu0 0
      %1185 = vmatmul.mubr.bf16.gmra.mrb[0].mxu0 %v1015
      %v1186 = vpop.f32.mrb[0].mxu0
      %v1187 = vadd.f32 0.0, %v1186
      %v1188 = vpop.f32.mrb[0].mxu0
      %v1189 = vpop.f32.mrb[0].mxu0
      %v1190 = vadd.f32 0.0, %v1189
      %v1191 = vpop.f32.mrb[0].mxu0
      %1192 = vmatprep.mubr.bf16.mxu0 0
      %1193 = vmatmul.mubr.bf16.gmra.mrb[0].mxu0 %v1016
      %v1194 = vpop.f32.mrb[0].mxu0
      %v1195 = vadd.f32 0.0, %v1194
      %v1196 = vpop.f32.mrb[0].mxu0
      %v1197 = vpop.f32.mrb[0].mxu0
      %v1198 = vadd.f32 0.0, %v1197
      %v1199 = vpop.f32.mrb[0].mxu0
      %1200 = vmatprep.mubr.bf16.mxu0 0
      %1201 = vmatmul.mubr.bf16.gmra.mrb[0].mxu0 %v1017
      %v1202 = vpop.f32.mrb[0].mxu0
      %v1203 = vadd.f32 0.0, %v1202
      %v1204 = vpop.f32.mrb[0].mxu0
      %v1205 = vpop.f32.mrb[0].mxu0
      %v1206 = vadd.f32 0.0, %v1205
      %v1207 = vpop.f32.mrb[0].mxu0
      %1208 = vmatprep.mubr.bf16.mxu0 0
      %1209 = vmatmul.mubr.bf16.gmra.mrb[0].mxu0 %v1018
      %v1210 = vpop.f32.mrb[0].mxu0
      %v1211 = vadd.f32 0.0, %v1210
      %v1212 = vpop.f32.mrb[0].mxu0
      %v1213 = vpop.f32.mrb[0].mxu0
      %v1214 = vadd.f32 0.0, %v1213
      %v1215 = vpop.f32.mrb[0].mxu0
      %1216 = vmatprep.mubr.bf16.mxu0 0
      %1217 = vmatmul.mubr.bf16.gmra.mrb[0].mxu0 %v1019
      %v1218 = vpop.f32.mrb[0].mxu0
      %v1219 = vadd.f32 0.0, %v1218
      %v1220 = vpop.f32.mrb[0].mxu0
      %v1221 = vpop.f32.mrb[0].mxu0
      %v1222 = vadd.f32 0.0, %v1221
      %v1223 = vpop.f32.mrb[0].mxu0
      %1224 = vmatprep.mubr.bf16.mxu0 0
      %1225 = vmatmul.mubr.bf16.gmra.mrb[0].mxu0 %v1020
      %v1226 = vpop.f32.mrb[0].mxu0
      %v1227 = vadd.f32 0.0, %v1226
      %v1228 = vpop.f32.mrb[0].mxu0
      %v1229 = vpop.f32.mrb[0].mxu0
      %v1230 = vadd.f32 0.0, %v1229
      %v1231 = vpop.f32.mrb[0].mxu0
      %1232 = vmatprep.mubr.bf16.mxu0 0
      %1233 = vmatmul.mubr.bf16.gmra.mrb[0].mxu0 %v1021
      %v1234 = vpop.f32.mrb[0].mxu0
      %v1235 = vadd.f32 0.0, %v1234
      %v1236 = vpop.f32.mrb[0].mxu0
      %v1237 = vpop.f32.mrb[0].mxu0
      %v1238 = vadd.f32 0.0, %v1237
      %v1239 = vpop.f32.mrb[0].mxu0
      %1240 = vmatprep.mubr.bf16.mxu0 0
      %1241 = vmatmul.mubr.bf16.gmra.mrb[0].mxu0 %v1022
      %v1242 = vpop.f32.mrb[0].mxu0
      %v1243 = vadd.f32 0.0, %v1242
      %v1244 = vpop.f32.mrb[0].mxu0
      %v1245 = vpop.f32.mrb[0].mxu0
      %v1246 = vadd.f32 0.0, %v1245
      %v1247 = vpop.f32.mrb[0].mxu0
      %1248 = vdwg.mxu0
      %v1249 = vadd.f32 %v849, %v1123
      %v1250 = vadd.f32 %v852, %v1126
      %v1251 = vadd.f32 %v857, %v1131
      %v1252 = vadd.f32 %v860, %v1134
      %v1253 = vadd.f32 %v865, %v1139
      %v1254 = vadd.f32 %v868, %v1142
      %v1255 = vadd.f32 %v873, %v1147
      %v1256 = vadd.f32 %v876, %v1150
      %v1257 = vadd.f32 %v881, %v1155
      %v1258 = vadd.f32 %v884, %v1158
      %v1259 = vadd.f32 %v889, %v1163
      %v1260 = vadd.f32 %v892, %v1166
      %v1261 = vadd.f32 %v897, %v1171
      %v1262 = vadd.f32 %v900, %v1174
      %v1263 = vadd.f32 %v905, %v1179
      %v1264 = vadd.f32 %v908, %v1182
      %v1265 = vadd.f32 %v913, %v1187
      %v1266 = vadd.f32 %v916, %v1190
      %v1267 = vadd.f32 %v921, %v1195
      %v1268 = vadd.f32 %v924, %v1198
      %v1269 = vadd.f32 %v929, %v1203
      %v1270 = vadd.f32 %v932, %v1206
      %v1271 = vadd.f32 %v937, %v1211
      %v1272 = vadd.f32 %v940, %v1214
      %v1273 = vadd.f32 %v945, %v1219
      %v1274 = vadd.f32 %v948, %v1222
      %v1275 = vadd.f32 %v953, %v1227
      %v1276 = vadd.f32 %v956, %v1230
      %v1277 = vadd.f32 %v961, %v1235
      %v1278 = vadd.f32 %v964, %v1238
      %v1279 = vadd.f32 %v969, %v1243
      %v1280 = vadd.f32 %v972, %v1246
      %v1281 = vld [vmem:[%s395] sm:$0xff]
      %v1282 = vld [vmem:[%s395 + $0x8] sm:$0xff]
      %v1283 = vld [vmem:[%s395 + $0x18] sm:$0xff]
      %v1284 = vld [vmem:[%s395 + $0x20] sm:$0xff]
      %v1285 = vld [vmem:[%s395 + $0x30] sm:$0xff]
      %v1286 = vld [vmem:[%s395 + $0x38] sm:$0xff]
      %v1287 = vld [vmem:[%s395 + $0x48] sm:$0xff]
      %v1288 = vld [vmem:[%s395 + $0x50] sm:$0xff]
      %v1289 = vld [vmem:[%s395 + $0x60] sm:$0xff]
      %v1290 = vld [vmem:[%s395 + $0x68] sm:$0xff]
      %v1291 = vld [vmem:[%s395 + $0x78] sm:$0xff]
      %v1292 = vld [vmem:[%s395 + $0x80] sm:$0xff]
      %v1293 = vld [vmem:[%s395 + $0x90] sm:$0xff]
      %v1294 = vld [vmem:[%s395 + $0x98] sm:$0xff]
      %v1295 = vld [vmem:[%s395 + $0xa8] sm:$0xff]
      %v1296 = vld [vmem:[%s395 + $0xb0] sm:$0xff]
      %v1297 = vld [vmem:[%s395 + $0xc0] sm:$0xff]
      %v1298 = vld [vmem:[%s395 + $0xc8] sm:$0xff]
      %v1299 = vld [vmem:[%s395 + $0xd8] sm:$0xff]
      %v1300 = vld [vmem:[%s395 + $0xe0] sm:$0xff]
      %v1301 = vld [vmem:[%s395 + $0xf0] sm:$0xff]
      %v1302 = vld [vmem:[%s395 + $0xf8] sm:$0xff]
      %v1303 = vld [vmem:[%s395 + $0x108] sm:$0xff]
      %v1304 = vld [vmem:[%s395 + $0x110] sm:$0xff]
      %v1305 = vld [vmem:[%s395 + $0x120] sm:$0xff]
      %v1306 = vld [vmem:[%s395 + $0x128] sm:$0xff]
      %v1307 = vld [vmem:[%s395 + $0x138] sm:$0xff]
      %v1308 = vld [vmem:[%s395 + $0x140] sm:$0xff]
      %v1309 = vld [vmem:[%s395 + $0x150] sm:$0xff]
      %v1310 = vld [vmem:[%s395 + $0x158] sm:$0xff]
      %v1311 = vld [vmem:[%s395 + $0x168] sm:$0xff]
      %v1312 = vld [vmem:[%s395 + $0x170] sm:$0xff]
      %v1313 = vpack.c.bf16 %v1282, %v1281
      %v1314 = vpack.c.bf16 %v1284, %v1283
      %v1315 = vpack.c.bf16 %v1286, %v1285
      %v1316 = vpack.c.bf16 %v1288, %v1287
      %v1317 = vpack.c.bf16 %v1290, %v1289
      %v1318 = vpack.c.bf16 %v1292, %v1291
      %v1319 = vpack.c.bf16 %v1294, %v1293
      %v1320 = vpack.c.bf16 %v1296, %v1295
      %v1321 = vpack.c.bf16 %v1298, %v1297
      %v1322 = vpack.c.bf16 %v1300, %v1299
      %v1323 = vpack.c.bf16 %v1302, %v1301
      %v1324 = vpack.c.bf16 %v1304, %v1303
      %v1325 = vpack.c.bf16 %v1306, %v1305
      %v1326 = vpack.c.bf16 %v1308, %v1307
      %v1327 = vpack.c.bf16 %v1310, %v1309
      %v1328 = vpack.c.bf16 %v1312, %v1311
      %s1329 = scalar_lea.vmem %s3, 192
      %v1330 = vld [vmem:[%s1329] sm:$0xf]
      %v1331 = vld [vmem:[%s1329 + $0x4] sm:$0xf]
      %v1332 = vld [vmem:[%s1329 + $0x8] sm:$0xf]
      %v1333 = vld [vmem:[%s1329 + $0xc] sm:$0xf]
      %v1334 = vld [vmem:[%s1329 + $0x10] sm:$0xf]
      %v1335 = vld [vmem:[%s1329 + $0x14] sm:$0xf]
      %v1336 = vld [vmem:[%s1329 + $0x18] sm:$0xf]
      %v1337 = vld [vmem:[%s1329 + $0x1c] sm:$0xf]
      %v1338 = vld [vmem:[%s1329 + $0x20] sm:$0xf]
      %v1339 = vld [vmem:[%s1329 + $0x24] sm:$0xf]
      %v1340 = vld [vmem:[%s1329 + $0x28] sm:$0xf]
      %v1341 = vld [vmem:[%s1329 + $0x2c] sm:$0xf]
      %v1342 = vld [vmem:[%s1329 + $0x30] sm:$0xf]
      %v1343 = vld [vmem:[%s1329 + $0x34] sm:$0xf]
      %v1344 = vld [vmem:[%s1329 + $0x38] sm:$0xf]
      %v1345 = vld [vmem:[%s1329 + $0x3c] sm:$0xf]
      %v1362 = vunpack.c.l.b16 %v1330
      %v1363 = vunpack.c.l.b16 %v1331
      %v1364 = vunpack.c.l.b16 %v1332
      %v1365 = vunpack.c.l.b16 %v1333
      %v1366 = vunpack.c.l.b16 %v1334
      %v1367 = vunpack.c.l.b16 %v1335
      %v1368 = vunpack.c.l.b16 %v1336
      %v1369 = vunpack.c.l.b16 %v1337
      %v1370 = vunpack.c.l.b16 %v1338
      %v1371 = vunpack.c.l.b16 %v1339
      %v1372 = vunpack.c.l.b16 %v1340
      %v1373 = vunpack.c.l.b16 %v1341
      %v1374 = vunpack.c.l.b16 %v1342
      %v1375 = vunpack.c.l.b16 %v1343
      %v1376 = vunpack.c.l.b16 %v1344
      %v1377 = vunpack.c.l.b16 %v1345
      %v1378 = vpack.c.b16 %v1363, %v1362
      %v1379 = vpack.c.b16 %v1365, %v1364
      %v1380 = vpack.c.b16 %v1367, %v1366
      %v1381 = vpack.c.b16 %v1369, %v1368
      %v1382 = vpack.c.b16 %v1371, %v1370
      %v1383 = vpack.c.b16 %v1373, %v1372
      %v1384 = vpack.c.b16 %v1375, %v1374
      %v1385 = vpack.c.b16 %v1377, %v1376
      %1394 = vmatprep.subr.bf16.mxu0 0
      %1395 = vmatpush1.bf16.msra.mxu0 %v1378
      %1396 = vmatprep.subr.bf16.mxu0 0
      %1397 = vmatpush1.bf16.msra.mxu0 %v1379
      %1398 = vmatprep.subr.bf16.mxu0 0
      %1399 = vmatpush1.bf16.msra.mxu0 %v1380
      %1400 = vmatprep.subr.bf16.mxu0 0
      %1401 = vmatpush1.bf16.msra.mxu0 %v1381
      %1402 = vmatprep.subr.bf16.mxu0 0
      %1403 = vmatpush1.bf16.msra.mxu0 %v1382
      %1404 = vmatprep.subr.bf16.mxu0 0
      %1405 = vmatpush1.bf16.msra.mxu0 %v1383
      %1406 = vmatprep.subr.bf16.mxu0 0
      %1407 = vmatpush1.bf16.msra.mxu0 %v1384
      %1408 = vmatprep.subr.bf16.mxu0 0
      %1409 = vmatpush1.bf16.msra.mxu0 %v1385
      %1410 = vmatprep.subr.bf16.mxu0 0
      %1411 = vmatpush1.bf16.msra.mxu0 0
      %1412 = vmatprep.subr.bf16.mxu0 0
      %1413 = vmatpush1.bf16.msra.mxu0 0
      %1414 = vmatprep.subr.bf16.mxu0 0
      %1415 = vmatpush1.bf16.msra.mxu0 0
      %1416 = vmatprep.subr.bf16.mxu0 0
      %1417 = vmatpush1.bf16.msra.mxu0 0
      %1418 = vmatprep.subr.bf16.mxu0 0
      %1419 = vmatpush1.bf16.msra.mxu0 0
      %1420 = vmatprep.subr.bf16.mxu0 0
      %1421 = vmatpush1.bf16.msra.mxu0 0
      %1422 = vmatprep.subr.bf16.mxu0 0
      %1423 = vmatpush1.bf16.msra.mxu0 0
      %1424 = vmatprep.subr.bf16.mxu0 0
      %1425 = vmatpush1.bf16.msra.mxu0 0
      %1426 = vmatprep.mubr.bf16.mxu0 0
      %1427 = vmatmul.mubr.bf16.gmra.mrb[0].mxu0 %v1313
      %v1428 = vpop.f32.mrb[0].mxu0
      %v1429 = vadd.f32 0.0, %v1428
      %v1430 = vpop.f32.mrb[0].mxu0
      %v1431 = vpop.f32.mrb[0].mxu0
      %v1432 = vadd.f32 0.0, %v1431
      %v1433 = vpop.f32.mrb[0].mxu0
      %1434 = vmatprep.mubr.bf16.mxu0 0
      %1435 = vmatmul.mubr.bf16.gmra.mrb[0].mxu0 %v1314
      %v1436 = vpop.f32.mrb[0].mxu0
      %v1437 = vadd.f32 0.0, %v1436
      %v1438 = vpop.f32.mrb[0].mxu0
      %v1439 = vpop.f32.mrb[0].mxu0
      %v1440 = vadd.f32 0.0, %v1439
      %v1441 = vpop.f32.mrb[0].mxu0
      %1442 = vmatprep.mubr.bf16.mxu0 0
      %1443 = vmatmul.mubr.bf16.gmra.mrb[0].mxu0 %v1315
      %v1444 = vpop.f32.mrb[0].mxu0
      %v1445 = vadd.f32 0.0, %v1444
      %v1446 = vpop.f32.mrb[0].mxu0
      %v1447 = vpop.f32.mrb[0].mxu0
      %v1448 = vadd.f32 0.0, %v1447
      %v1449 = vpop.f32.mrb[0].mxu0
      %1450 = vmatprep.mubr.bf16.mxu0 0
      %1451 = vmatmul.mubr.bf16.gmra.mrb[0].mxu0 %v1316
      %v1452 = vpop.f32.mrb[0].mxu0
      %v1453 = vadd.f32 0.0, %v1452
      %v1454 = vpop.f32.mrb[0].mxu0
      %v1455 = vpop.f32.mrb[0].mxu0
      %v1456 = vadd.f32 0.0, %v1455
      %v1457 = vpop.f32.mrb[0].mxu0
      %1458 = vmatprep.mubr.bf16.mxu0 0
      %1459 = vmatmul.mubr.bf16.gmra.mrb[0].mxu0 %v1317
      %v1460 = vpop.f32.mrb[0].mxu0
      %v1461 = vadd.f32 0.0, %v1460
      %v1462 = vpop.f32.mrb[0].mxu0
      %v1463 = vpop.f32.mrb[0].mxu0
      %v1464 = vadd.f32 0.0, %v1463
      %v1465 = vpop.f32.mrb[0].mxu0
      %1466 = vmatprep.mubr.bf16.mxu0 0
      %1467 = vmatmul.mubr.bf16.gmra.mrb[0].mxu0 %v1318
      %v1468 = vpop.f32.mrb[0].mxu0
      %v1469 = vadd.f32 0.0, %v1468
      %v1470 = vpop.f32.mrb[0].mxu0
      %v1471 = vpop.f32.mrb[0].mxu0
      %v1472 = vadd.f32 0.0, %v1471
      %v1473 = vpop.f32.mrb[0].mxu0
      %1474 = vmatprep.mubr.bf16.mxu0 0
      %1475 = vmatmul.mubr.bf16.gmra.mrb[0].mxu0 %v1319
      %v1476 = vpop.f32.mrb[0].mxu0
      %v1477 = vadd.f32 0.0, %v1476
      %v1478 = vpop.f32.mrb[0].mxu0
      %v1479 = vpop.f32.mrb[0].mxu0
      %v1480 = vadd.f32 0.0, %v1479
      %v1481 = vpop.f32.mrb[0].mxu0
      %1482 = vmatprep.mubr.bf16.mxu0 0
      %1483 = vmatmul.mubr.bf16.gmra.mrb[0].mxu0 %v1320
      %v1484 = vpop.f32.mrb[0].mxu0
      %v1485 = vadd.f32 0.0, %v1484
      %v1486 = vpop.f32.mrb[0].mxu0
      %v1487 = vpop.f32.mrb[0].mxu0
      %v1488 = vadd.f32 0.0, %v1487
      %v1489 = vpop.f32.mrb[0].mxu0
      %1490 = vmatprep.mubr.bf16.mxu0 0
      %1491 = vmatmul.mubr.bf16.gmra.mrb[0].mxu0 %v1321
      %v1492 = vpop.f32.mrb[0].mxu0
      %v1493 = vadd.f32 0.0, %v1492
      %v1494 = vpop.f32.mrb[0].mxu0
      %v1495 = vpop.f32.mrb[0].mxu0
      %v1496 = vadd.f32 0.0, %v1495
      %v1497 = vpop.f32.mrb[0].mxu0
      %1498 = vmatprep.mubr.bf16.mxu0 0
      %1499 = vmatmul.mubr.bf16.gmra.mrb[0].mxu0 %v1322
      %v1500 = vpop.f32.mrb[0].mxu0
      %v1501 = vadd.f32 0.0, %v1500
      %v1502 = vpop.f32.mrb[0].mxu0
      %v1503 = vpop.f32.mrb[0].mxu0
      %v1504 = vadd.f32 0.0, %v1503
      %v1505 = vpop.f32.mrb[0].mxu0
      %1506 = vmatprep.mubr.bf16.mxu0 0
      %1507 = vmatmul.mubr.bf16.gmra.mrb[0].mxu0 %v1323
      %v1508 = vpop.f32.mrb[0].mxu0
      %v1509 = vadd.f32 0.0, %v1508
      %v1510 = vpop.f32.mrb[0].mxu0
      %v1511 = vpop.f32.mrb[0].mxu0
      %v1512 = vadd.f32 0.0, %v1511
      %v1513 = vpop.f32.mrb[0].mxu0
      %1514 = vmatprep.mubr.bf16.mxu0 0
      %1515 = vmatmul.mubr.bf16.gmra.mrb[0].mxu0 %v1324
      %v1516 = vpop.f32.mrb[0].mxu0
      %v1517 = vadd.f32 0.0, %v1516
      %v1518 = vpop.f32.mrb[0].mxu0
      %v1519 = vpop.f32.mrb[0].mxu0
      %v1520 = vadd.f32 0.0, %v1519
      %v1521 = vpop.f32.mrb[0].mxu0
      %1522 = vmatprep.mubr.bf16.mxu0 0
      %1523 = vmatmul.mubr.bf16.gmra.mrb[0].mxu0 %v1325
      %v1524 = vpop.f32.mrb[0].mxu0
      %v1525 = vadd.f32 0.0, %v1524
      %v1526 = vpop.f32.mrb[0].mxu0
      %v1527 = vpop.f32.mrb[0].mxu0
      %v1528 = vadd.f32 0.0, %v1527
      %v1529 = vpop.f32.mrb[0].mxu0
      %1530 = vmatprep.mubr.bf16.mxu0 0
      %1531 = vmatmul.mubr.bf16.gmra.mrb[0].mxu0 %v1326
      %v1532 = vpop.f32.mrb[0].mxu0
      %v1533 = vadd.f32 0.0, %v1532
      %v1534 = vpop.f32.mrb[0].mxu0
      %v1535 = vpop.f32.mrb[0].mxu0
      %v1536 = vadd.f32 0.0, %v1535
      %v1537 = vpop.f32.mrb[0].mxu0
      %1538 = vmatprep.mubr.bf16.mxu0 0
      %1539 = vmatmul.mubr.bf16.gmra.mrb[0].mxu0 %v1327
      %v1540 = vpop.f32.mrb[0].mxu0
      %v1541 = vadd.f32 0.0, %v1540
      %v1542 = vpop.f32.mrb[0].mxu0
      %v1543 = vpop.f32.mrb[0].mxu0
      %v1544 = vadd.f32 0.0, %v1543
      %v1545 = vpop.f32.mrb[0].mxu0
      %1546 = vmatprep.mubr.bf16.mxu0 0
      %1547 = vmatmul.mubr.bf16.gmra.mrb[0].mxu0 %v1328
      %v1548 = vpop.f32.mrb[0].mxu0
      %v1549 = vadd.f32 0.0, %v1548
      %v1550 = vpop.f32.mrb[0].mxu0
      %v1551 = vpop.f32.mrb[0].mxu0
      %v1552 = vadd.f32 0.0, %v1551
      %v1553 = vpop.f32.mrb[0].mxu0
      %1554 = vdwg.mxu0
      %v1555 = vadd.f32 %v1249, %v1429
      %v1556 = vadd.f32 %v1250, %v1432
      %v1557 = vadd.f32 %v1251, %v1437
      %v1558 = vadd.f32 %v1252, %v1440
      %v1559 = vadd.f32 %v1253, %v1445
      %v1560 = vadd.f32 %v1254, %v1448
      %v1561 = vadd.f32 %v1255, %v1453
      %v1562 = vadd.f32 %v1256, %v1456
      %v1563 = vadd.f32 %v1257, %v1461
      %v1564 = vadd.f32 %v1258, %v1464
      %v1565 = vadd.f32 %v1259, %v1469
      %v1566 = vadd.f32 %v1260, %v1472
      %v1567 = vadd.f32 %v1261, %v1477
      %v1568 = vadd.f32 %v1262, %v1480
      %v1569 = vadd.f32 %v1263, %v1485
      %v1570 = vadd.f32 %v1264, %v1488
      %v1571 = vadd.f32 %v1265, %v1493
      %v1572 = vadd.f32 %v1266, %v1496
      %v1573 = vadd.f32 %v1267, %v1501
      %v1574 = vadd.f32 %v1268, %v1504
      %v1575 = vadd.f32 %v1269, %v1509
      %v1576 = vadd.f32 %v1270, %v1512
      %v1577 = vadd.f32 %v1271, %v1517
      %v1578 = vadd.f32 %v1272, %v1520
      %v1579 = vadd.f32 %v1273, %v1525
      %v1580 = vadd.f32 %v1274, %v1528
      %v1581 = vadd.f32 %v1275, %v1533
      %v1582 = vadd.f32 %v1276, %v1536
      %v1583 = vadd.f32 %v1277, %v1541
      %v1584 = vadd.f32 %v1278, %v1544
      %v1585 = vadd.f32 %v1279, %v1549
      %v1586 = vadd.f32 %v1280, %v1552
      %v1587 = vld [vmem:[%s395 + $0x1] sm:$0xff]
      %v1588 = vld [vmem:[%s395 + $0x9] sm:$0xff]
      %v1589 = vld [vmem:[%s395 + $0x19] sm:$0xff]
      %v1590 = vld [vmem:[%s395 + $0x21] sm:$0xff]
      %v1591 = vld [vmem:[%s395 + $0x31] sm:$0xff]
      %v1592 = vld [vmem:[%s395 + $0x39] sm:$0xff]
      %v1593 = vld [vmem:[%s395 + $0x49] sm:$0xff]
      %v1594 = vld [vmem:[%s395 + $0x51] sm:$0xff]
      %v1595 = vld [vmem:[%s395 + $0x61] sm:$0xff]
      %v1596 = vld [vmem:[%s395 + $0x69] sm:$0xff]
      %v1597 = vld [vmem:[%s395 + $0x79] sm:$0xff]
      %v1598 = vld [vmem:[%s395 + $0x81] sm:$0xff]
      %v1599 = vld [vmem:[%s395 + $0x91] sm:$0xff]
      %v1600 = vld [vmem:[%s395 + $0x99] sm:$0xff]
      %v1601 = vld [vmem:[%s395 + $0xa9] sm:$0xff]
      %v1602 = vld [vmem:[%s395 + $0xb1] sm:$0xff]
      %v1603 = vld [vmem:[%s395 + $0xc1] sm:$0xff]
      %v1604 = vld [vmem:[%s395 + $0xc9] sm:$0xff]
      %v1605 = vld [vmem:[%s395 + $0xd9] sm:$0xff]
      %v1606 = vld [vmem:[%s395 + $0xe1] sm:$0xff]
      %v1607 = vld [vmem:[%s395 + $0xf1] sm:$0xff]
      %v1608 = vld [vmem:[%s395 + $0xf9] sm:$0xff]
      %v1609 = vld [vmem:[%s395 + $0x109] sm:$0xff]
      %v1610 = vld [vmem:[%s395 + $0x111] sm:$0xff]
      %v1611 = vld [vmem:[%s395 + $0x121] sm:$0xff]
      %v1612 = vld [vmem:[%s395 + $0x129] sm:$0xff]
      %v1613 = vld [vmem:[%s395 + $0x139] sm:$0xff]
      %v1614 = vld [vmem:[%s395 + $0x141] sm:$0xff]
      %v1615 = vld [vmem:[%s395 + $0x151] sm:$0xff]
      %v1616 = vld [vmem:[%s395 + $0x159] sm:$0xff]
      %v1617 = vld [vmem:[%s395 + $0x169] sm:$0xff]
      %v1618 = vld [vmem:[%s395 + $0x171] sm:$0xff]
      %v1619 = vpack.c.bf16 %v1588, %v1587
      %v1620 = vpack.c.bf16 %v1590, %v1589
      %v1621 = vpack.c.bf16 %v1592, %v1591
      %v1622 = vpack.c.bf16 %v1594, %v1593
      %v1623 = vpack.c.bf16 %v1596, %v1595
      %v1624 = vpack.c.bf16 %v1598, %v1597
      %v1625 = vpack.c.bf16 %v1600, %v1599
      %v1626 = vpack.c.bf16 %v1602, %v1601
      %v1627 = vpack.c.bf16 %v1604, %v1603
      %v1628 = vpack.c.bf16 %v1606, %v1605
      %v1629 = vpack.c.bf16 %v1608, %v1607
      %v1630 = vpack.c.bf16 %v1610, %v1609
      %v1631 = vpack.c.bf16 %v1612, %v1611
      %v1632 = vpack.c.bf16 %v1614, %v1613
      %v1633 = vpack.c.bf16 %v1616, %v1615
      %v1634 = vpack.c.bf16 %v1618, %v1617
      %s1635 = scalar_lea.vmem %s3, 256
      %v1636 = vld [vmem:[%s1635] sm:$0xf]
      %v1637 = vld [vmem:[%s1635 + $0x4] sm:$0xf]
      %v1638 = vld [vmem:[%s1635 + $0x8] sm:$0xf]
      %v1639 = vld [vmem:[%s1635 + $0xc] sm:$0xf]
      %v1640 = vld [vmem:[%s1635 + $0x10] sm:$0xf]
      %v1641 = vld [vmem:[%s1635 + $0x14] sm:$0xf]
      %v1642 = vld [vmem:[%s1635 + $0x18] sm:$0xf]
      %v1643 = vld [vmem:[%s1635 + $0x1c] sm:$0xf]
      %v1644 = vld [vmem:[%s1635 + $0x20] sm:$0xf]
      %v1645 = vld [vmem:[%s1635 + $0x24] sm:$0xf]
      %v1646 = vld [vmem:[%s1635 + $0x28] sm:$0xf]
      %v1647 = vld [vmem:[%s1635 + $0x2c] sm:$0xf]
      %v1648 = vld [vmem:[%s1635 + $0x30] sm:$0xf]
      %v1649 = vld [vmem:[%s1635 + $0x34] sm:$0xf]
      %v1650 = vld [vmem:[%s1635 + $0x38] sm:$0xf]
      %v1651 = vld [vmem:[%s1635 + $0x3c] sm:$0xf]
      %v1668 = vunpack.c.l.b16 %v1636
      %v1669 = vunpack.c.l.b16 %v1637
      %v1670 = vunpack.c.l.b16 %v1638
      %v1671 = vunpack.c.l.b16 %v1639
      %v1672 = vunpack.c.l.b16 %v1640
      %v1673 = vunpack.c.l.b16 %v1641
      %v1674 = vunpack.c.l.b16 %v1642
      %v1675 = vunpack.c.l.b16 %v1643
      %v1676 = vunpack.c.l.b16 %v1644
      %v1677 = vunpack.c.l.b16 %v1645
      %v1678 = vunpack.c.l.b16 %v1646
      %v1679 = vunpack.c.l.b16 %v1647
      %v1680 = vunpack.c.l.b16 %v1648
      %v1681 = vunpack.c.l.b16 %v1649
      %v1682 = vunpack.c.l.b16 %v1650
      %v1683 = vunpack.c.l.b16 %v1651
      %v1684 = vpack.c.b16 %v1669, %v1668
      %v1685 = vpack.c.b16 %v1671, %v1670
      %v1686 = vpack.c.b16 %v1673, %v1672
      %v1687 = vpack.c.b16 %v1675, %v1674
      %v1688 = vpack.c.b16 %v1677, %v1676
      %v1689 = vpack.c.b16 %v1679, %v1678
      %v1690 = vpack.c.b16 %v1681, %v1680
      %v1691 = vpack.c.b16 %v1683, %v1682
      %1700 = vmatprep.subr.bf16.mxu0 0
      %1701 = vmatpush1.bf16.msra.mxu0 %v1684
      %1702 = vmatprep.subr.bf16.mxu0 0
      %1703 = vmatpush1.bf16.msra.mxu0 %v1685
      %1704 = vmatprep.subr.bf16.mxu0 0
      %1705 = vmatpush1.bf16.msra.mxu0 %v1686
      %1706 = vmatprep.subr.bf16.mxu0 0
      %1707 = vmatpush1.bf16.msra.mxu0 %v1687
      %1708 = vmatprep.subr.bf16.mxu0 0
      %1709 = vmatpush1.bf16.msra.mxu0 %v1688
      %1710 = vmatprep.subr.bf16.mxu0 0
      %1711 = vmatpush1.bf16.msra.mxu0 %v1689
      %1712 = vmatprep.subr.bf16.mxu0 0
      %1713 = vmatpush1.bf16.msra.mxu0 %v1690
      %1714 = vmatprep.subr.bf16.mxu0 0
      %1715 = vmatpush1.bf16.msra.mxu0 %v1691
      %1716 = vmatprep.subr.bf16.mxu0 0
      %1717 = vmatpush1.bf16.msra.mxu0 0
      %1718 = vmatprep.subr.bf16.mxu0 0
      %1719 = vmatpush1.bf16.msra.mxu0 0
      %1720 = vmatprep.subr.bf16.mxu0 0
      %1721 = vmatpush1.bf16.msra.mxu0 0
      %1722 = vmatprep.subr.bf16.mxu0 0
      %1723 = vmatpush1.bf16.msra.mxu0 0
      %1724 = vmatprep.subr.bf16.mxu0 0
      %1725 = vmatpush1.bf16.msra.mxu0 0
      %1726 = vmatprep.subr.bf16.mxu0 0
      %1727 = vmatpush1.bf16.msra.mxu0 0
      %1728 = vmatprep.subr.bf16.mxu0 0
      %1729 = vmatpush1.bf16.msra.mxu0 0
      %1730 = vmatprep.subr.bf16.mxu0 0
      %1731 = vmatpush1.bf16.msra.mxu0 0
      %1732 = vmatprep.mubr.bf16.mxu0 0
      %1733 = vmatmul.mubr.bf16.gmra.mrb[0].mxu0 %v1619
      %v1734 = vpop.f32.mrb[0].mxu0
      %v1735 = vadd.f32 0.0, %v1734
      %v1736 = vpop.f32.mrb[0].mxu0
      %v1737 = vpop.f32.mrb[0].mxu0
      %v1738 = vadd.f32 0.0, %v1737
      %v1739 = vpop.f32.mrb[0].mxu0
      %1740 = vmatprep.mubr.bf16.mxu0 0
      %1741 = vmatmul.mubr.bf16.gmra.mrb[0].mxu0 %v1620
      %v1742 = vpop.f32.mrb[0].mxu0
      %v1743 = vadd.f32 0.0, %v1742
      %v1744 = vpop.f32.mrb[0].mxu0
      %v1745 = vpop.f32.mrb[0].mxu0
      %v1746 = vadd.f32 0.0, %v1745
      %v1747 = vpop.f32.mrb[0].mxu0
      %1748 = vmatprep.mubr.bf16.mxu0 0
      %1749 = vmatmul.mubr.bf16.gmra.mrb[0].mxu0 %v1621
      %v1750 = vpop.f32.mrb[0].mxu0
      %v1751 = vadd.f32 0.0, %v1750
      %v1752 = vpop.f32.mrb[0].mxu0
      %v1753 = vpop.f32.mrb[0].mxu0
      %v1754 = vadd.f32 0.0, %v1753
      %v1755 = vpop.f32.mrb[0].mxu0
      %1756 = vmatprep.mubr.bf16.mxu0 0
      %1757 = vmatmul.mubr.bf16.gmra.mrb[0].mxu0 %v1622
      %v1758 = vpop.f32.mrb[0].mxu0
      %v1759 = vadd.f32 0.0, %v1758
      %v1760 = vpop.f32.mrb[0].mxu0
      %v1761 = vpop.f32.mrb[0].mxu0
      %v1762 = vadd.f32 0.0, %v1761
      %v1763 = vpop.f32.mrb[0].mxu0
      %1764 = vmatprep.mubr.bf16.mxu0 0
      %1765 = vmatmul.mubr.bf16.gmra.mrb[0].mxu0 %v1623
      %v1766 = vpop.f32.mrb[0].mxu0
      %v1767 = vadd.f32 0.0, %v1766
      %v1768 = vpop.f32.mrb[0].mxu0
      %v1769 = vpop.f32.mrb[0].mxu0
      %v1770 = vadd.f32 0.0, %v1769
      %v1771 = vpop.f32.mrb[0].mxu0
      %1772 = vmatprep.mubr.bf16.mxu0 0
      %1773 = vmatmul.mubr.bf16.gmra.mrb[0].mxu0 %v1624
      %v1774 = vpop.f32.mrb[0].mxu0
      %v1775 = vadd.f32 0.0, %v1774
      %v1776 = vpop.f32.mrb[0].mxu0
      %v1777 = vpop.f32.mrb[0].mxu0
      %v1778 = vadd.f32 0.0, %v1777
      %v1779 = vpop.f32.mrb[0].mxu0
      %1780 = vmatprep.mubr.bf16.mxu0 0
      %1781 = vmatmul.mubr.bf16.gmra.mrb[0].mxu0 %v1625
      %v1782 = vpop.f32.mrb[0].mxu0
      %v1783 = vadd.f32 0.0, %v1782
      %v1784 = vpop.f32.mrb[0].mxu0
      %v1785 = vpop.f32.mrb[0].mxu0
      %v1786 = vadd.f32 0.0, %v1785
      %v1787 = vpop.f32.mrb[0].mxu0
      %1788 = vmatprep.mubr.bf16.mxu0 0
      %1789 = vmatmul.mubr.bf16.gmra.mrb[0].mxu0 %v1626
      %v1790 = vpop.f32.mrb[0].mxu0
      %v1791 = vadd.f32 0.0, %v1790
      %v1792 = vpop.f32.mrb[0].mxu0
      %v1793 = vpop.f32.mrb[0].mxu0
      %v1794 = vadd.f32 0.0, %v1793
      %v1795 = vpop.f32.mrb[0].mxu0
      %1796 = vmatprep.mubr.bf16.mxu0 0
      %1797 = vmatmul.mubr.bf16.gmra.mrb[0].mxu0 %v1627
      %v1798 = vpop.f32.mrb[0].mxu0
      %v1799 = vadd.f32 0.0, %v1798
      %v1800 = vpop.f32.mrb[0].mxu0
      %v1801 = vpop.f32.mrb[0].mxu0
      %v1802 = vadd.f32 0.0, %v1801
      %v1803 = vpop.f32.mrb[0].mxu0
      %1804 = vmatprep.mubr.bf16.mxu0 0
      %1805 = vmatmul.mubr.bf16.gmra.mrb[0].mxu0 %v1628
      %v1806 = vpop.f32.mrb[0].mxu0
      %v1807 = vadd.f32 0.0, %v1806
      %v1808 = vpop.f32.mrb[0].mxu0
      %v1809 = vpop.f32.mrb[0].mxu0
      %v1810 = vadd.f32 0.0, %v1809
      %v1811 = vpop.f32.mrb[0].mxu0
      %1812 = vmatprep.mubr.bf16.mxu0 0
      %1813 = vmatmul.mubr.bf16.gmra.mrb[0].mxu0 %v1629
      %v1814 = vpop.f32.mrb[0].mxu0
      %v1815 = vadd.f32 0.0, %v1814
      %v1816 = vpop.f32.mrb[0].mxu0
      %v1817 = vpop.f32.mrb[0].mxu0
      %v1818 = vadd.f32 0.0, %v1817
      %v1819 = vpop.f32.mrb[0].mxu0
      %1820 = vmatprep.mubr.bf16.mxu0 0
      %1821 = vmatmul.mubr.bf16.gmra.mrb[0].mxu0 %v1630
      %v1822 = vpop.f32.mrb[0].mxu0
      %v1823 = vadd.f32 0.0, %v1822
      %v1824 = vpop.f32.mrb[0].mxu0
      %v1825 = vpop.f32.mrb[0].mxu0
      %v1826 = vadd.f32 0.0, %v1825
      %v1827 = vpop.f32.mrb[0].mxu0
      %1828 = vmatprep.mubr.bf16.mxu0 0
      %1829 = vmatmul.mubr.bf16.gmra.mrb[0].mxu0 %v1631
      %v1830 = vpop.f32.mrb[0].mxu0
      %v1831 = vadd.f32 0.0, %v1830
      %v1832 = vpop.f32.mrb[0].mxu0
      %v1833 = vpop.f32.mrb[0].mxu0
      %v1834 = vadd.f32 0.0, %v1833
      %v1835 = vpop.f32.mrb[0].mxu0
      %1836 = vmatprep.mubr.bf16.mxu0 0
      %1837 = vmatmul.mubr.bf16.gmra.mrb[0].mxu0 %v1632
      %v1838 = vpop.f32.mrb[0].mxu0
      %v1839 = vadd.f32 0.0, %v1838
      %v1840 = vpop.f32.mrb[0].mxu0
      %v1841 = vpop.f32.mrb[0].mxu0
      %v1842 = vadd.f32 0.0, %v1841
      %v1843 = vpop.f32.mrb[0].mxu0
      %1844 = vmatprep.mubr.bf16.mxu0 0
      %1845 = vmatmul.mubr.bf16.gmra.mrb[0].mxu0 %v1633
      %v1846 = vpop.f32.mrb[0].mxu0
      %v1847 = vadd.f32 0.0, %v1846
      %v1848 = vpop.f32.mrb[0].mxu0
      %v1849 = vpop.f32.mrb[0].mxu0
      %v1850 = vadd.f32 0.0, %v1849
      %v1851 = vpop.f32.mrb[0].mxu0
      %1852 = vmatprep.mubr.bf16.mxu0 0
      %1853 = vmatmul.mubr.bf16.gmra.mrb[0].mxu0 %v1634
      %v1854 = vpop.f32.mrb[0].mxu0
      %v1855 = vadd.f32 0.0, %v1854
      %v1856 = vpop.f32.mrb[0].mxu0
      %v1857 = vpop.f32.mrb[0].mxu0
      %v1858 = vadd.f32 0.0, %v1857
      %v1859 = vpop.f32.mrb[0].mxu0
      %1860 = vdwg.mxu0
      %v1861 = vadd.f32 %v1555, %v1735
      %v1862 = vadd.f32 %v1556, %v1738
      %v1863 = vadd.f32 %v1557, %v1743
      %v1864 = vadd.f32 %v1558, %v1746
      %v1865 = vadd.f32 %v1559, %v1751
      %v1866 = vadd.f32 %v1560, %v1754
      %v1867 = vadd.f32 %v1561, %v1759
      %v1868 = vadd.f32 %v1562, %v1762
      %v1869 = vadd.f32 %v1563, %v1767
      %v1870 = vadd.f32 %v1564, %v1770
      %v1871 = vadd.f32 %v1565, %v1775
      %v1872 = vadd.f32 %v1566, %v1778
      %v1873 = vadd.f32 %v1567, %v1783
      %v1874 = vadd.f32 %v1568, %v1786
      %v1875 = vadd.f32 %v1569, %v1791
      %v1876 = vadd.f32 %v1570, %v1794
      %v1877 = vadd.f32 %v1571, %v1799
      %v1878 = vadd.f32 %v1572, %v1802
      %v1879 = vadd.f32 %v1573, %v1807
      %v1880 = vadd.f32 %v1574, %v1810
      %v1881 = vadd.f32 %v1575, %v1815
      %v1882 = vadd.f32 %v1576, %v1818
      %v1883 = vadd.f32 %v1577, %v1823
      %v1884 = vadd.f32 %v1578, %v1826
      %v1885 = vadd.f32 %v1579, %v1831
      %v1886 = vadd.f32 %v1580, %v1834
      %v1887 = vadd.f32 %v1581, %v1839
      %v1888 = vadd.f32 %v1582, %v1842
      %v1889 = vadd.f32 %v1583, %v1847
      %v1890 = vadd.f32 %v1584, %v1850
      %v1891 = vadd.f32 %v1585, %v1855
      %v1892 = vadd.f32 %v1586, %v1858
      %v1893 = vld [vmem:[%s395 + $0x2] sm:$0xff]
      %v1894 = vld [vmem:[%s395 + $0xa] sm:$0xff]
      %v1895 = vld [vmem:[%s395 + $0x1a] sm:$0xff]
      %v1896 = vld [vmem:[%s395 + $0x22] sm:$0xff]
      %v1897 = vld [vmem:[%s395 + $0x32] sm:$0xff]
      %v1898 = vld [vmem:[%s395 + $0x3a] sm:$0xff]
      %v1899 = vld [vmem:[%s395 + $0x4a] sm:$0xff]
      %v1900 = vld [vmem:[%s395 + $0x52] sm:$0xff]
      %v1901 = vld [vmem:[%s395 + $0x62] sm:$0xff]
      %v1902 = vld [vmem:[%s395 + $0x6a] sm:$0xff]
      %v1903 = vld [vmem:[%s395 + $0x7a] sm:$0xff]
      %v1904 = vld [vmem:[%s395 + $0x82] sm:$0xff]
      %v1905 = vld [vmem:[%s395 + $0x92] sm:$0xff]
      %v1906 = vld [vmem:[%s395 + $0x9a] sm:$0xff]
      %v1907 = vld [vmem:[%s395 + $0xaa] sm:$0xff]
      %v1908 = vld [vmem:[%s395 + $0xb2] sm:$0xff]
      %v1909 = vld [vmem:[%s395 + $0xc2] sm:$0xff]
      %v1910 = vld [vmem:[%s395 + $0xca] sm:$0xff]
      %v1911 = vld [vmem:[%s395 + $0xda] sm:$0xff]
      %v1912 = vld [vmem:[%s395 + $0xe2] sm:$0xff]
      %v1913 = vld [vmem:[%s395 + $0xf2] sm:$0xff]
      %v1914 = vld [vmem:[%s395 + $0xfa] sm:$0xff]
      %v1915 = vld [vmem:[%s395 + $0x10a] sm:$0xff]
      %v1916 = vld [vmem:[%s395 + $0x112] sm:$0xff]
      %v1917 = vld [vmem:[%s395 + $0x122] sm:$0xff]
      %v1918 = vld [vmem:[%s395 + $0x12a] sm:$0xff]
      %v1919 = vld [vmem:[%s395 + $0x13a] sm:$0xff]
      %v1920 = vld [vmem:[%s395 + $0x142] sm:$0xff]
      %v1921 = vld [vmem:[%s395 + $0x152] sm:$0xff]
      %v1922 = vld [vmem:[%s395 + $0x15a] sm:$0xff]
      %v1923 = vld [vmem:[%s395 + $0x16a] sm:$0xff]
      %v1924 = vld [vmem:[%s395 + $0x172] sm:$0xff]
      %v1925 = vpack.c.bf16 %v1894, %v1893
      %v1926 = vpack.c.bf16 %v1896, %v1895
      %v1927 = vpack.c.bf16 %v1898, %v1897
      %v1928 = vpack.c.bf16 %v1900, %v1899
      %v1929 = vpack.c.bf16 %v1902, %v1901
      %v1930 = vpack.c.bf16 %v1904, %v1903
      %v1931 = vpack.c.bf16 %v1906, %v1905
      %v1932 = vpack.c.bf16 %v1908, %v1907
      %v1933 = vpack.c.bf16 %v1910, %v1909
      %v1934 = vpack.c.bf16 %v1912, %v1911
      %v1935 = vpack.c.bf16 %v1914, %v1913
      %v1936 = vpack.c.bf16 %v1916, %v1915
      %v1937 = vpack.c.bf16 %v1918, %v1917
      %v1938 = vpack.c.bf16 %v1920, %v1919
      %v1939 = vpack.c.bf16 %v1922, %v1921
      %v1940 = vpack.c.bf16 %v1924, %v1923
      %s1941 = scalar_lea.vmem %s3, 320
      %v1942 = vld [vmem:[%s1941] sm:$0xf]
      %v1943 = vld [vmem:[%s1941 + $0x4] sm:$0xf]
      %v1944 = vld [vmem:[%s1941 + $0x8] sm:$0xf]
      %v1945 = vld [vmem:[%s1941 + $0xc] sm:$0xf]
      %v1946 = vld [vmem:[%s1941 + $0x10] sm:$0xf]
      %v1947 = vld [vmem:[%s1941 + $0x14] sm:$0xf]
      %v1948 = vld [vmem:[%s1941 + $0x18] sm:$0xf]
      %v1949 = vld [vmem:[%s1941 + $0x1c] sm:$0xf]
      %v1950 = vld [vmem:[%s1941 + $0x20] sm:$0xf]
      %v1951 = vld [vmem:[%s1941 + $0x24] sm:$0xf]
      %v1952 = vld [vmem:[%s1941 + $0x28] sm:$0xf]
      %v1953 = vld [vmem:[%s1941 + $0x2c] sm:$0xf]
      %v1954 = vld [vmem:[%s1941 + $0x30] sm:$0xf]
      %v1955 = vld [vmem:[%s1941 + $0x34] sm:$0xf]
      %v1956 = vld [vmem:[%s1941 + $0x38] sm:$0xf]
      %v1957 = vld [vmem:[%s1941 + $0x3c] sm:$0xf]
      %v1974 = vunpack.c.l.b16 %v1942
      %v1975 = vunpack.c.l.b16 %v1943
      %v1976 = vunpack.c.l.b16 %v1944
      %v1977 = vunpack.c.l.b16 %v1945
      %v1978 = vunpack.c.l.b16 %v1946
      %v1979 = vunpack.c.l.b16 %v1947
      %v1980 = vunpack.c.l.b16 %v1948
      %v1981 = vunpack.c.l.b16 %v1949
      %v1982 = vunpack.c.l.b16 %v1950
      %v1983 = vunpack.c.l.b16 %v1951
      %v1984 = vunpack.c.l.b16 %v1952
      %v1985 = vunpack.c.l.b16 %v1953
      %v1986 = vunpack.c.l.b16 %v1954
      %v1987 = vunpack.c.l.b16 %v1955
      %v1988 = vunpack.c.l.b16 %v1956
      %v1989 = vunpack.c.l.b16 %v1957
      %v1990 = vpack.c.b16 %v1975, %v1974
      %v1991 = vpack.c.b16 %v1977, %v1976
      %v1992 = vpack.c.b16 %v1979, %v1978
      %v1993 = vpack.c.b16 %v1981, %v1980
      %v1994 = vpack.c.b16 %v1983, %v1982
      %v1995 = vpack.c.b16 %v1985, %v1984
      %v1996 = vpack.c.b16 %v1987, %v1986
      %v1997 = vpack.c.b16 %v1989, %v1988
      %2006 = vmatprep.subr.bf16.mxu0 0
      %2007 = vmatpush1.bf16.msra.mxu0 %v1990
      %2008 = vmatprep.subr.bf16.mxu0 0
      %2009 = vmatpush1.bf16.msra.mxu0 %v1991
      %2010 = vmatprep.subr.bf16.mxu0 0
      %2011 = vmatpush1.bf16.msra.mxu0 %v1992
      %2012 = vmatprep.subr.bf16.mxu0 0
      %2013 = vmatpush1.bf16.msra.mxu0 %v1993
      %2014 = vmatprep.subr.bf16.mxu0 0
      %2015 = vmatpush1.bf16.msra.mxu0 %v1994
      %2016 = vmatprep.subr.bf16.mxu0 0
      %2017 = vmatpush1.bf16.msra.mxu0 %v1995
      %2018 = vmatprep.subr.bf16.mxu0 0
      %2019 = vmatpush1.bf16.msra.mxu0 %v1996
      %2020 = vmatprep.subr.bf16.mxu0 0
      %2021 = vmatpush1.bf16.msra.mxu0 %v1997
      %2022 = vmatprep.subr.bf16.mxu0 0
      %2023 = vmatpush1.bf16.msra.mxu0 0
      %2024 = vmatprep.subr.bf16.mxu0 0
      %2025 = vmatpush1.bf16.msra.mxu0 0
      %2026 = vmatprep.subr.bf16.mxu0 0
      %2027 = vmatpush1.bf16.msra.mxu0 0
      %2028 = vmatprep.subr.bf16.mxu0 0
      %2029 = vmatpush1.bf16.msra.mxu0 0
      %2030 = vmatprep.subr.bf16.mxu0 0
      %2031 = vmatpush1.bf16.msra.mxu0 0
      %2032 = vmatprep.subr.bf16.mxu0 0
      %2033 = vmatpush1.bf16.msra.mxu0 0
      %2034 = vmatprep.subr.bf16.mxu0 0
      %2035 = vmatpush1.bf16.msra.mxu0 0
      %2036 = vmatprep.subr.bf16.mxu0 0
      %2037 = vmatpush1.bf16.msra.mxu0 0
      %2038 = vmatprep.mubr.bf16.mxu0 0
      %2039 = vmatmul.mubr.bf16.gmra.mrb[0].mxu0 %v1925
      %v2040 = vpop.f32.mrb[0].mxu0
      %v2041 = vadd.f32 0.0, %v2040
      %v2042 = vpop.f32.mrb[0].mxu0
      %v2043 = vpop.f32.mrb[0].mxu0
      %v2044 = vadd.f32 0.0, %v2043
      %v2045 = vpop.f32.mrb[0].mxu0
      %2046 = vmatprep.mubr.bf16.mxu0 0
      %2047 = vmatmul.mubr.bf16.gmra.mrb[0].mxu0 %v1926
      %v2048 = vpop.f32.mrb[0].mxu0
      %v2049 = vadd.f32 0.0, %v2048
      %v2050 = vpop.f32.mrb[0].mxu0
      %v2051 = vpop.f32.mrb[0].mxu0
      %v2052 = vadd.f32 0.0, %v2051
      %v2053 = vpop.f32.mrb[0].mxu0
      %2054 = vmatprep.mubr.bf16.mxu0 0
      %2055 = vmatmul.mubr.bf16.gmra.mrb[0].mxu0 %v1927
      %v2056 = vpop.f32.mrb[0].mxu0
      %v2057 = vadd.f32 0.0, %v2056
      %v2058 = vpop.f32.mrb[0].mxu0
      %v2059 = vpop.f32.mrb[0].mxu0
      %v2060 = vadd.f32 0.0, %v2059
      %v2061 = vpop.f32.mrb[0].mxu0
      %2062 = vmatprep.mubr.bf16.mxu0 0
      %2063 = vmatmul.mubr.bf16.gmra.mrb[0].mxu0 %v1928
      %v2064 = vpop.f32.mrb[0].mxu0
      %v2065 = vadd.f32 0.0, %v2064
      %v2066 = vpop.f32.mrb[0].mxu0
      %v2067 = vpop.f32.mrb[0].mxu0
      %v2068 = vadd.f32 0.0, %v2067
      %v2069 = vpop.f32.mrb[0].mxu0
      %2070 = vmatprep.mubr.bf16.mxu0 0
      %2071 = vmatmul.mubr.bf16.gmra.mrb[0].mxu0 %v1929
      %v2072 = vpop.f32.mrb[0].mxu0
      %v2073 = vadd.f32 0.0, %v2072
      %v2074 = vpop.f32.mrb[0].mxu0
      %v2075 = vpop.f32.mrb[0].mxu0
      %v2076 = vadd.f32 0.0, %v2075
      %v2077 = vpop.f32.mrb[0].mxu0
      %2078 = vmatprep.mubr.bf16.mxu0 0
      %2079 = vmatmul.mubr.bf16.gmra.mrb[0].mxu0 %v1930
      %v2080 = vpop.f32.mrb[0].mxu0
      %v2081 = vadd.f32 0.0, %v2080
      %v2082 = vpop.f32.mrb[0].mxu0
      %v2083 = vpop.f32.mrb[0].mxu0
      %v2084 = vadd.f32 0.0, %v2083
      %v2085 = vpop.f32.mrb[0].mxu0
      %2086 = vmatprep.mubr.bf16.mxu0 0
      %2087 = vmatmul.mubr.bf16.gmra.mrb[0].mxu0 %v1931
      %v2088 = vpop.f32.mrb[0].mxu0
      %v2089 = vadd.f32 0.0, %v2088
      %v2090 = vpop.f32.mrb[0].mxu0
      %v2091 = vpop.f32.mrb[0].mxu0
      %v2092 = vadd.f32 0.0, %v2091
      %v2093 = vpop.f32.mrb[0].mxu0
      %2094 = vmatprep.mubr.bf16.mxu0 0
      %2095 = vmatmul.mubr.bf16.gmra.mrb[0].mxu0 %v1932
      %v2096 = vpop.f32.mrb[0].mxu0
      %v2097 = vadd.f32 0.0, %v2096
      %v2098 = vpop.f32.mrb[0].mxu0
      %v2099 = vpop.f32.mrb[0].mxu0
      %v2100 = vadd.f32 0.0, %v2099
      %v2101 = vpop.f32.mrb[0].mxu0
      %2102 = vmatprep.mubr.bf16.mxu0 0
      %2103 = vmatmul.mubr.bf16.gmra.mrb[0].mxu0 %v1933
      %v2104 = vpop.f32.mrb[0].mxu0
      %v2105 = vadd.f32 0.0, %v2104
      %v2106 = vpop.f32.mrb[0].mxu0
      %v2107 = vpop.f32.mrb[0].mxu0
      %v2108 = vadd.f32 0.0, %v2107
      %v2109 = vpop.f32.mrb[0].mxu0
      %2110 = vmatprep.mubr.bf16.mxu0 0
      %2111 = vmatmul.mubr.bf16.gmra.mrb[0].mxu0 %v1934
      %v2112 = vpop.f32.mrb[0].mxu0
      %v2113 = vadd.f32 0.0, %v2112
      %v2114 = vpop.f32.mrb[0].mxu0
      %v2115 = vpop.f32.mrb[0].mxu0
      %v2116 = vadd.f32 0.0, %v2115
      %v2117 = vpop.f32.mrb[0].mxu0
      %2118 = vmatprep.mubr.bf16.mxu0 0
      %2119 = vmatmul.mubr.bf16.gmra.mrb[0].mxu0 %v1935
      %v2120 = vpop.f32.mrb[0].mxu0
      %v2121 = vadd.f32 0.0, %v2120
      %v2122 = vpop.f32.mrb[0].mxu0
      %v2123 = vpop.f32.mrb[0].mxu0
      %v2124 = vadd.f32 0.0, %v2123
      %v2125 = vpop.f32.mrb[0].mxu0
      %2126 = vmatprep.mubr.bf16.mxu0 0
      %2127 = vmatmul.mubr.bf16.gmra.mrb[0].mxu0 %v1936
      %v2128 = vpop.f32.mrb[0].mxu0
      %v2129 = vadd.f32 0.0, %v2128
      %v2130 = vpop.f32.mrb[0].mxu0
      %v2131 = vpop.f32.mrb[0].mxu0
      %v2132 = vadd.f32 0.0, %v2131
      %v2133 = vpop.f32.mrb[0].mxu0
      %2134 = vmatprep.mubr.bf16.mxu0 0
      %2135 = vmatmul.mubr.bf16.gmra.mrb[0].mxu0 %v1937
      %v2136 = vpop.f32.mrb[0].mxu0
      %v2137 = vadd.f32 0.0, %v2136
      %v2138 = vpop.f32.mrb[0].mxu0
      %v2139 = vpop.f32.mrb[0].mxu0
      %v2140 = vadd.f32 0.0, %v2139
      %v2141 = vpop.f32.mrb[0].mxu0
      %2142 = vmatprep.mubr.bf16.mxu0 0
      %2143 = vmatmul.mubr.bf16.gmra.mrb[0].mxu0 %v1938
      %v2144 = vpop.f32.mrb[0].mxu0
      %v2145 = vadd.f32 0.0, %v2144
      %v2146 = vpop.f32.mrb[0].mxu0
      %v2147 = vpop.f32.mrb[0].mxu0
      %v2148 = vadd.f32 0.0, %v2147
      %v2149 = vpop.f32.mrb[0].mxu0
      %2150 = vmatprep.mubr.bf16.mxu0 0
      %2151 = vmatmul.mubr.bf16.gmra.mrb[0].mxu0 %v1939
      %v2152 = vpop.f32.mrb[0].mxu0
      %v2153 = vadd.f32 0.0, %v2152
      %v2154 = vpop.f32.mrb[0].mxu0
      %v2155 = vpop.f32.mrb[0].mxu0
      %v2156 = vadd.f32 0.0, %v2155
      %v2157 = vpop.f32.mrb[0].mxu0
      %2158 = vmatprep.mubr.bf16.mxu0 0
      %2159 = vmatmul.mubr.bf16.gmra.mrb[0].mxu0 %v1940
      %v2160 = vpop.f32.mrb[0].mxu0
      %v2161 = vadd.f32 0.0, %v2160
      %v2162 = vpop.f32.mrb[0].mxu0
      %v2163 = vpop.f32.mrb[0].mxu0
      %v2164 = vadd.f32 0.0, %v2163
      %v2165 = vpop.f32.mrb[0].mxu0
      %2166 = vdwg.mxu0
      %v2167 = vadd.f32 %v1861, %v2041
      %v2168 = vadd.f32 %v1862, %v2044
      %v2169 = vadd.f32 %v1863, %v2049
      %v2170 = vadd.f32 %v1864, %v2052
      %v2171 = vadd.f32 %v1865, %v2057
      %v2172 = vadd.f32 %v1866, %v2060
      %v2173 = vadd.f32 %v1867, %v2065
      %v2174 = vadd.f32 %v1868, %v2068
      %v2175 = vadd.f32 %v1869, %v2073
      %v2176 = vadd.f32 %v1870, %v2076
      %v2177 = vadd.f32 %v1871, %v2081
      %v2178 = vadd.f32 %v1872, %v2084
      %v2179 = vadd.f32 %v1873, %v2089
      %v2180 = vadd.f32 %v1874, %v2092
      %v2181 = vadd.f32 %v1875, %v2097
      %v2182 = vadd.f32 %v1876, %v2100
      %v2183 = vadd.f32 %v1877, %v2105
      %v2184 = vadd.f32 %v1878, %v2108
      %v2185 = vadd.f32 %v1879, %v2113
      %v2186 = vadd.f32 %v1880, %v2116
      %v2187 = vadd.f32 %v1881, %v2121
      %v2188 = vadd.f32 %v1882, %v2124
      %v2189 = vadd.f32 %v1883, %v2129
      %v2190 = vadd.f32 %v1884, %v2132
      %v2191 = vadd.f32 %v1885, %v2137
      %v2192 = vadd.f32 %v1886, %v2140
      %v2193 = vadd.f32 %v1887, %v2145
      %v2194 = vadd.f32 %v1888, %v2148
      %v2195 = vadd.f32 %v1889, %v2153
      %v2196 = vadd.f32 %v1890, %v2156
      %v2197 = vadd.f32 %v1891, %v2161
      %v2198 = vadd.f32 %v1892, %v2164
      %s2199 = scalar_lea.vmem [#allocation2], 48
      %v2200 = vld [vmem:[%s2199] sm:$0xff]
      %v2201 = vld [vmem:[%s2199 + $0x8] sm:$0xff]
      %v2202 = vld [vmem:[%s2199 + $0x18] sm:$0xff]
      %v2203 = vld [vmem:[%s2199 + $0x20] sm:$0xff]
      %v2204 = vld [vmem:[%s2199 + $0x30] sm:$0xff]
      %v2205 = vld [vmem:[%s2199 + $0x38] sm:$0xff]
      %v2206 = vld [vmem:[%s2199 + $0x48] sm:$0xff]
      %v2207 = vld [vmem:[%s2199 + $0x50] sm:$0xff]
      %v2208 = vld [vmem:[%s2199 + $0x60] sm:$0xff]
      %v2209 = vld [vmem:[%s2199 + $0x68] sm:$0xff]
      %v2210 = vld [vmem:[%s2199 + $0x78] sm:$0xff]
      %v2211 = vld [vmem:[%s2199 + $0x80] sm:$0xff]
      %v2212 = vld [vmem:[%s2199 + $0x90] sm:$0xff]
      %v2213 = vld [vmem:[%s2199 + $0x98] sm:$0xff]
      %v2214 = vld [vmem:[%s2199 + $0xa8] sm:$0xff]
      %v2215 = vld [vmem:[%s2199 + $0xb0] sm:$0xff]
      %v2216 = vld [vmem:[%s2199 + $0xc0] sm:$0xff]
      %v2217 = vld [vmem:[%s2199 + $0xc8] sm:$0xff]
      %v2218 = vld [vmem:[%s2199 + $0xd8] sm:$0xff]
      %v2219 = vld [vmem:[%s2199 + $0xe0] sm:$0xff]
      %v2220 = vld [vmem:[%s2199 + $0xf0] sm:$0xff]
      %v2221 = vld [vmem:[%s2199 + $0xf8] sm:$0xff]
      %v2222 = vld [vmem:[%s2199 + $0x108] sm:$0xff]
      %v2223 = vld [vmem:[%s2199 + $0x110] sm:$0xff]
      %v2224 = vld [vmem:[%s2199 + $0x120] sm:$0xff]
      %v2225 = vld [vmem:[%s2199 + $0x128] sm:$0xff]
      %v2226 = vld [vmem:[%s2199 + $0x138] sm:$0xff]
      %v2227 = vld [vmem:[%s2199 + $0x140] sm:$0xff]
      %v2228 = vld [vmem:[%s2199 + $0x150] sm:$0xff]
      %v2229 = vld [vmem:[%s2199 + $0x158] sm:$0xff]
      %v2230 = vld [vmem:[%s2199 + $0x168] sm:$0xff]
      %v2231 = vld [vmem:[%s2199 + $0x170] sm:$0xff]
      %v2232 = vpack.c.bf16 %v2201, %v2200
      %v2233 = vpack.c.bf16 %v2203, %v2202
      %v2234 = vpack.c.bf16 %v2205, %v2204
      %v2235 = vpack.c.bf16 %v2207, %v2206
      %v2236 = vpack.c.bf16 %v2209, %v2208
      %v2237 = vpack.c.bf16 %v2211, %v2210
      %v2238 = vpack.c.bf16 %v2213, %v2212
      %v2239 = vpack.c.bf16 %v2215, %v2214
      %v2240 = vpack.c.bf16 %v2217, %v2216
      %v2241 = vpack.c.bf16 %v2219, %v2218
      %v2242 = vpack.c.bf16 %v2221, %v2220
      %v2243 = vpack.c.bf16 %v2223, %v2222
      %v2244 = vpack.c.bf16 %v2225, %v2224
      %v2245 = vpack.c.bf16 %v2227, %v2226
      %v2246 = vpack.c.bf16 %v2229, %v2228
      %v2247 = vpack.c.bf16 %v2231, %v2230
      %s2248 = scalar_lea.vmem %s3, 384
      %v2249 = vld [vmem:[%s2248] sm:$0xf]
      %v2250 = vld [vmem:[%s2248 + $0x4] sm:$0xf]
      %v2251 = vld [vmem:[%s2248 + $0x8] sm:$0xf]
      %v2252 = vld [vmem:[%s2248 + $0xc] sm:$0xf]
      %v2253 = vld [vmem:[%s2248 + $0x10] sm:$0xf]
      %v2254 = vld [vmem:[%s2248 + $0x14] sm:$0xf]
      %v2255 = vld [vmem:[%s2248 + $0x18] sm:$0xf]
      %v2256 = vld [vmem:[%s2248 + $0x1c] sm:$0xf]
      %v2257 = vld [vmem:[%s2248 + $0x20] sm:$0xf]
      %v2258 = vld [vmem:[%s2248 + $0x24] sm:$0xf]
      %v2259 = vld [vmem:[%s2248 + $0x28] sm:$0xf]
      %v2260 = vld [vmem:[%s2248 + $0x2c] sm:$0xf]
      %v2261 = vld [vmem:[%s2248 + $0x30] sm:$0xf]
      %v2262 = vld [vmem:[%s2248 + $0x34] sm:$0xf]
      %v2263 = vld [vmem:[%s2248 + $0x38] sm:$0xf]
      %v2264 = vld [vmem:[%s2248 + $0x3c] sm:$0xf]
      %v2281 = vunpack.c.l.b16 %v2249
      %v2282 = vunpack.c.l.b16 %v2250
      %v2283 = vunpack.c.l.b16 %v2251
      %v2284 = vunpack.c.l.b16 %v2252
      %v2285 = vunpack.c.l.b16 %v2253
      %v2286 = vunpack.c.l.b16 %v2254
      %v2287 = vunpack.c.l.b16 %v2255
      %v2288 = vunpack.c.l.b16 %v2256
      %v2289 = vunpack.c.l.b16 %v2257
      %v2290 = vunpack.c.l.b16 %v2258
      %v2291 = vunpack.c.l.b16 %v2259
      %v2292 = vunpack.c.l.b16 %v2260
      %v2293 = vunpack.c.l.b16 %v2261
      %v2294 = vunpack.c.l.b16 %v2262
      %v2295 = vunpack.c.l.b16 %v2263
      %v2296 = vunpack.c.l.b16 %v2264
      %v2297 = vpack.c.b16 %v2282, %v2281
      %v2298 = vpack.c.b16 %v2284, %v2283
      %v2299 = vpack.c.b16 %v2286, %v2285
      %v2300 = vpack.c.b16 %v2288, %v2287
      %v2301 = vpack.c.b16 %v2290, %v2289
      %v2302 = vpack.c.b16 %v2292, %v2291
      %v2303 = vpack.c.b16 %v2294, %v2293
      %v2304 = vpack.c.b16 %v2296, %v2295
      %2313 = vmatprep.subr.bf16.mxu0 0
      %2314 = vmatpush1.bf16.msra.mxu0 %v2297
      %2315 = vmatprep.subr.bf16.mxu0 0
      %2316 = vmatpush1.bf16.msra.mxu0 %v2298
      %2317 = vmatprep.subr.bf16.mxu0 0
      %2318 = vmatpush1.bf16.msra.mxu0 %v2299
      %2319 = vmatprep.subr.bf16.mxu0 0
      %2320 = vmatpush1.bf16.msra.mxu0 %v2300
      %2321 = vmatprep.subr.bf16.mxu0 0
      %2322 = vmatpush1.bf16.msra.mxu0 %v2301
      %2323 = vmatprep.subr.bf16.mxu0 0
      %2324 = vmatpush1.bf16.msra.mxu0 %v2302
      %2325 = vmatprep.subr.bf16.mxu0 0
      %2326 = vmatpush1.bf16.msra.mxu0 %v2303
      %2327 = vmatprep.subr.bf16.mxu0 0
      %2328 = vmatpush1.bf16.msra.mxu0 %v2304
      %2329 = vmatprep.subr.bf16.mxu0 0
      %2330 = vmatpush1.bf16.msra.mxu0 0
      %2331 = vmatprep.subr.bf16.mxu0 0
      %2332 = vmatpush1.bf16.msra.mxu0 0
      %2333 = vmatprep.subr.bf16.mxu0 0
      %2334 = vmatpush1.bf16.msra.mxu0 0
      %2335 = vmatprep.subr.bf16.mxu0 0
      %2336 = vmatpush1.bf16.msra.mxu0 0
      %2337 = vmatprep.subr.bf16.mxu0 0
      %2338 = vmatpush1.bf16.msra.mxu0 0
      %2339 = vmatprep.subr.bf16.mxu0 0
      %2340 = vmatpush1.bf16.msra.mxu0 0
      %2341 = vmatprep.subr.bf16.mxu0 0
      %2342 = vmatpush1.bf16.msra.mxu0 0
      %2343 = vmatprep.subr.bf16.mxu0 0
      %2344 = vmatpush1.bf16.msra.mxu0 0
      %2345 = vmatprep.mubr.bf16.mxu0 0
      %2346 = vmatmul.mubr.bf16.gmra.mrb[0].mxu0 %v2232
      %v2347 = vpop.f32.mrb[0].mxu0
      %v2348 = vadd.f32 0.0, %v2347
      %v2349 = vpop.f32.mrb[0].mxu0
      %v2350 = vpop.f32.mrb[0].mxu0
      %v2351 = vadd.f32 0.0, %v2350
      %v2352 = vpop.f32.mrb[0].mxu0
      %2353 = vmatprep.mubr.bf16.mxu0 0
      %2354 = vmatmul.mubr.bf16.gmra.mrb[0].mxu0 %v2233
      %v2355 = vpop.f32.mrb[0].mxu0
      %v2356 = vadd.f32 0.0, %v2355
      %v2357 = vpop.f32.mrb[0].mxu0
      %v2358 = vpop.f32.mrb[0].mxu0
      %v2359 = vadd.f32 0.0, %v2358
      %v2360 = vpop.f32.mrb[0].mxu0
      %2361 = vmatprep.mubr.bf16.mxu0 0
      %2362 = vmatmul.mubr.bf16.gmra.mrb[0].mxu0 %v2234
      %v2363 = vpop.f32.mrb[0].mxu0
      %v2364 = vadd.f32 0.0, %v2363
      %v2365 = vpop.f32.mrb[0].mxu0
      %v2366 = vpop.f32.mrb[0].mxu0
      %v2367 = vadd.f32 0.0, %v2366
      %v2368 = vpop.f32.mrb[0].mxu0
      %2369 = vmatprep.mubr.bf16.mxu0 0
      %2370 = vmatmul.mubr.bf16.gmra.mrb[0].mxu0 %v2235
      %v2371 = vpop.f32.mrb[0].mxu0
      %v2372 = vadd.f32 0.0, %v2371
      %v2373 = vpop.f32.mrb[0].mxu0
      %v2374 = vpop.f32.mrb[0].mxu0
      %v2375 = vadd.f32 0.0, %v2374
      %v2376 = vpop.f32.mrb[0].mxu0
      %2377 = vmatprep.mubr.bf16.mxu0 0
      %2378 = vmatmul.mubr.bf16.gmra.mrb[0].mxu0 %v2236
      %v2379 = vpop.f32.mrb[0].mxu0
      %v2380 = vadd.f32 0.0, %v2379
      %v2381 = vpop.f32.mrb[0].mxu0
      %v2382 = vpop.f32.mrb[0].mxu0
      %v2383 = vadd.f32 0.0, %v2382
      %v2384 = vpop.f32.mrb[0].mxu0
      %2385 = vmatprep.mubr.bf16.mxu0 0
      %2386 = vmatmul.mubr.bf16.gmra.mrb[0].mxu0 %v2237
      %v2387 = vpop.f32.mrb[0].mxu0
      %v2388 = vadd.f32 0.0, %v2387
      %v2389 = vpop.f32.mrb[0].mxu0
      %v2390 = vpop.f32.mrb[0].mxu0
      %v2391 = vadd.f32 0.0, %v2390
      %v2392 = vpop.f32.mrb[0].mxu0
      %2393 = vmatprep.mubr.bf16.mxu0 0
      %2394 = vmatmul.mubr.bf16.gmra.mrb[0].mxu0 %v2238
      %v2395 = vpop.f32.mrb[0].mxu0
      %v2396 = vadd.f32 0.0, %v2395
      %v2397 = vpop.f32.mrb[0].mxu0
      %v2398 = vpop.f32.mrb[0].mxu0
      %v2399 = vadd.f32 0.0, %v2398
      %v2400 = vpop.f32.mrb[0].mxu0
      %2401 = vmatprep.mubr.bf16.mxu0 0
      %2402 = vmatmul.mubr.bf16.gmra.mrb[0].mxu0 %v2239
      %v2403 = vpop.f32.mrb[0].mxu0
      %v2404 = vadd.f32 0.0, %v2403
      %v2405 = vpop.f32.mrb[0].mxu0
      %v2406 = vpop.f32.mrb[0].mxu0
      %v2407 = vadd.f32 0.0, %v2406
      %v2408 = vpop.f32.mrb[0].mxu0
      %2409 = vmatprep.mubr.bf16.mxu0 0
      %2410 = vmatmul.mubr.bf16.gmra.mrb[0].mxu0 %v2240
      %v2411 = vpop.f32.mrb[0].mxu0
      %v2412 = vadd.f32 0.0, %v2411
      %v2413 = vpop.f32.mrb[0].mxu0
      %v2414 = vpop.f32.mrb[0].mxu0
      %v2415 = vadd.f32 0.0, %v2414
      %v2416 = vpop.f32.mrb[0].mxu0
      %2417 = vmatprep.mubr.bf16.mxu0 0
      %2418 = vmatmul.mubr.bf16.gmra.mrb[0].mxu0 %v2241
      %v2419 = vpop.f32.mrb[0].mxu0
      %v2420 = vadd.f32 0.0, %v2419
      %v2421 = vpop.f32.mrb[0].mxu0
      %v2422 = vpop.f32.mrb[0].mxu0
      %v2423 = vadd.f32 0.0, %v2422
      %v2424 = vpop.f32.mrb[0].mxu0
      %2425 = vmatprep.mubr.bf16.mxu0 0
      %2426 = vmatmul.mubr.bf16.gmra.mrb[0].mxu0 %v2242
      %v2427 = vpop.f32.mrb[0].mxu0
      %v2428 = vadd.f32 0.0, %v2427
      %v2429 = vpop.f32.mrb[0].mxu0
      %v2430 = vpop.f32.mrb[0].mxu0
      %v2431 = vadd.f32 0.0, %v2430
      %v2432 = vpop.f32.mrb[0].mxu0
      %2433 = vmatprep.mubr.bf16.mxu0 0
      %2434 = vmatmul.mubr.bf16.gmra.mrb[0].mxu0 %v2243
      %v2435 = vpop.f32.mrb[0].mxu0
      %v2436 = vadd.f32 0.0, %v2435
      %v2437 = vpop.f32.mrb[0].mxu0
      %v2438 = vpop.f32.mrb[0].mxu0
      %v2439 = vadd.f32 0.0, %v2438
      %v2440 = vpop.f32.mrb[0].mxu0
      %2441 = vmatprep.mubr.bf16.mxu0 0
      %2442 = vmatmul.mubr.bf16.gmra.mrb[0].mxu0 %v2244
      %v2443 = vpop.f32.mrb[0].mxu0
      %v2444 = vadd.f32 0.0, %v2443
      %v2445 = vpop.f32.mrb[0].mxu0
      %v2446 = vpop.f32.mrb[0].mxu0
      %v2447 = vadd.f32 0.0, %v2446
      %v2448 = vpop.f32.mrb[0].mxu0
      %2449 = vmatprep.mubr.bf16.mxu0 0
      %2450 = vmatmul.mubr.bf16.gmra.mrb[0].mxu0 %v2245
      %v2451 = vpop.f32.mrb[0].mxu0
      %v2452 = vadd.f32 0.0, %v2451
      %v2453 = vpop.f32.mrb[0].mxu0
      %v2454 = vpop.f32.mrb[0].mxu0
      %v2455 = vadd.f32 0.0, %v2454
      %v2456 = vpop.f32.mrb[0].mxu0
      %2457 = vmatprep.mubr.bf16.mxu0 0
      %2458 = vmatmul.mubr.bf16.gmra.mrb[0].mxu0 %v2246
      %v2459 = vpop.f32.mrb[0].mxu0
      %v2460 = vadd.f32 0.0, %v2459
      %v2461 = vpop.f32.mrb[0].mxu0
      %v2462 = vpop.f32.mrb[0].mxu0
      %v2463 = vadd.f32 0.0, %v2462
      %v2464 = vpop.f32.mrb[0].mxu0
      %2465 = vmatprep.mubr.bf16.mxu0 0
      %2466 = vmatmul.mubr.bf16.gmra.mrb[0].mxu0 %v2247
      %v2467 = vpop.f32.mrb[0].mxu0
      %v2468 = vadd.f32 0.0, %v2467
      %v2469 = vpop.f32.mrb[0].mxu0
      %v2470 = vpop.f32.mrb[0].mxu0
      %v2471 = vadd.f32 0.0, %v2470
      %v2472 = vpop.f32.mrb[0].mxu0
      %2473 = vdwg.mxu0
      %v2474 = vadd.f32 %v2167, %v2348
      %v2475 = vadd.f32 %v2168, %v2351
      %v2476 = vadd.f32 %v2169, %v2356
      %v2477 = vadd.f32 %v2170, %v2359
      %v2478 = vadd.f32 %v2171, %v2364
      %v2479 = vadd.f32 %v2172, %v2367
      %v2480 = vadd.f32 %v2173, %v2372
      %v2481 = vadd.f32 %v2174, %v2375
      %v2482 = vadd.f32 %v2175, %v2380
      %v2483 = vadd.f32 %v2176, %v2383
      %v2484 = vadd.f32 %v2177, %v2388
      %v2485 = vadd.f32 %v2178, %v2391
      %v2486 = vadd.f32 %v2179, %v2396
      %v2487 = vadd.f32 %v2180, %v2399
      %v2488 = vadd.f32 %v2181, %v2404
      %v2489 = vadd.f32 %v2182, %v2407
      %v2490 = vadd.f32 %v2183, %v2412
      %v2491 = vadd.f32 %v2184, %v2415
      %v2492 = vadd.f32 %v2185, %v2420
      %v2493 = vadd.f32 %v2186, %v2423
      %v2494 = vadd.f32 %v2187, %v2428
      %v2495 = vadd.f32 %v2188, %v2431
      %v2496 = vadd.f32 %v2189, %v2436
      %v2497 = vadd.f32 %v2190, %v2439
      %v2498 = vadd.f32 %v2191, %v2444
      %v2499 = vadd.f32 %v2192, %v2447
      %v2500 = vadd.f32 %v2193, %v2452
      %v2501 = vadd.f32 %v2194, %v2455
      %v2502 = vadd.f32 %v2195, %v2460
      %v2503 = vadd.f32 %v2196, %v2463
      %v2504 = vadd.f32 %v2197, %v2468
      %v2505 = vadd.f32 %v2198, %v2471
      %v2506 = vld [vmem:[%s2199 + $0x1] sm:$0xff]
      %v2507 = vld [vmem:[%s2199 + $0x9] sm:$0xff]
      %v2508 = vld [vmem:[%s2199 + $0x19] sm:$0xff]
      %v2509 = vld [vmem:[%s2199 + $0x21] sm:$0xff]
      %v2510 = vld [vmem:[%s2199 + $0x31] sm:$0xff]
      %v2511 = vld [vmem:[%s2199 + $0x39] sm:$0xff]
      %v2512 = vld [vmem:[%s2199 + $0x49] sm:$0xff]
      %v2513 = vld [vmem:[%s2199 + $0x51] sm:$0xff]
      %v2514 = vld [vmem:[%s2199 + $0x61] sm:$0xff]
      %v2515 = vld [vmem:[%s2199 + $0x69] sm:$0xff]
      %v2516 = vld [vmem:[%s2199 + $0x79] sm:$0xff]
      %v2517 = vld [vmem:[%s2199 + $0x81] sm:$0xff]
      %v2518 = vld [vmem:[%s2199 + $0x91] sm:$0xff]
      %v2519 = vld [vmem:[%s2199 + $0x99] sm:$0xff]
      %v2520 = vld [vmem:[%s2199 + $0xa9] sm:$0xff]
      %v2521 = vld [vmem:[%s2199 + $0xb1] sm:$0xff]
      %v2522 = vld [vmem:[%s2199 + $0xc1] sm:$0xff]
      %v2523 = vld [vmem:[%s2199 + $0xc9] sm:$0xff]
      %v2524 = vld [vmem:[%s2199 + $0xd9] sm:$0xff]
      %v2525 = vld [vmem:[%s2199 + $0xe1] sm:$0xff]
      %v2526 = vld [vmem:[%s2199 + $0xf1] sm:$0xff]
      %v2527 = vld [vmem:[%s2199 + $0xf9] sm:$0xff]
      %v2528 = vld [vmem:[%s2199 + $0x109] sm:$0xff]
      %v2529 = vld [vmem:[%s2199 + $0x111] sm:$0xff]
      %v2530 = vld [vmem:[%s2199 + $0x121] sm:$0xff]
      %v2531 = vld [vmem:[%s2199 + $0x129] sm:$0xff]
      %v2532 = vld [vmem:[%s2199 + $0x139] sm:$0xff]
      %v2533 = vld [vmem:[%s2199 + $0x141] sm:$0xff]
      %v2534 = vld [vmem:[%s2199 + $0x151] sm:$0xff]
      %v2535 = vld [vmem:[%s2199 + $0x159] sm:$0xff]
      %v2536 = vld [vmem:[%s2199 + $0x169] sm:$0xff]
      %v2537 = vld [vmem:[%s2199 + $0x171] sm:$0xff]
      %v2538 = vpack.c.bf16 %v2507, %v2506
      %v2539 = vpack.c.bf16 %v2509, %v2508
      %v2540 = vpack.c.bf16 %v2511, %v2510
      %v2541 = vpack.c.bf16 %v2513, %v2512
      %v2542 = vpack.c.bf16 %v2515, %v2514
      %v2543 = vpack.c.bf16 %v2517, %v2516
      %v2544 = vpack.c.bf16 %v2519, %v2518
      %v2545 = vpack.c.bf16 %v2521, %v2520
      %v2546 = vpack.c.bf16 %v2523, %v2522
      %v2547 = vpack.c.bf16 %v2525, %v2524
      %v2548 = vpack.c.bf16 %v2527, %v2526
      %v2549 = vpack.c.bf16 %v2529, %v2528
      %v2550 = vpack.c.bf16 %v2531, %v2530
      %v2551 = vpack.c.bf16 %v2533, %v2532
      %v2552 = vpack.c.bf16 %v2535, %v2534
      %v2553 = vpack.c.bf16 %v2537, %v2536
      %s2554 = scalar_lea.vmem %s3, 448
      %v2555 = vld [vmem:[%s2554] sm:$0xf]
      %v2556 = vld [vmem:[%s2554 + $0x4] sm:$0xf]
      %v2557 = vld [vmem:[%s2554 + $0x8] sm:$0xf]
      %v2558 = vld [vmem:[%s2554 + $0xc] sm:$0xf]
      %v2559 = vld [vmem:[%s2554 + $0x10] sm:$0xf]
      %v2560 = vld [vmem:[%s2554 + $0x14] sm:$0xf]
      %v2561 = vld [vmem:[%s2554 + $0x18] sm:$0xf]
      %v2562 = vld [vmem:[%s2554 + $0x1c] sm:$0xf]
      %v2563 = vld [vmem:[%s2554 + $0x20] sm:$0xf]
      %v2564 = vld [vmem:[%s2554 + $0x24] sm:$0xf]
      %v2565 = vld [vmem:[%s2554 + $0x28] sm:$0xf]
      %v2566 = vld [vmem:[%s2554 + $0x2c] sm:$0xf]
      %v2567 = vld [vmem:[%s2554 + $0x30] sm:$0xf]
      %v2568 = vld [vmem:[%s2554 + $0x34] sm:$0xf]
      %v2569 = vld [vmem:[%s2554 + $0x38] sm:$0xf]
      %v2570 = vld [vmem:[%s2554 + $0x3c] sm:$0xf]
      %v2587 = vunpack.c.l.b16 %v2555
      %v2588 = vunpack.c.l.b16 %v2556
      %v2589 = vunpack.c.l.b16 %v2557
      %v2590 = vunpack.c.l.b16 %v2558
      %v2591 = vunpack.c.l.b16 %v2559
      %v2592 = vunpack.c.l.b16 %v2560
      %v2593 = vunpack.c.l.b16 %v2561
      %v2594 = vunpack.c.l.b16 %v2562
      %v2595 = vunpack.c.l.b16 %v2563
      %v2596 = vunpack.c.l.b16 %v2564
      %v2597 = vunpack.c.l.b16 %v2565
      %v2598 = vunpack.c.l.b16 %v2566
      %v2599 = vunpack.c.l.b16 %v2567
      %v2600 = vunpack.c.l.b16 %v2568
      %v2601 = vunpack.c.l.b16 %v2569
      %v2602 = vunpack.c.l.b16 %v2570
      %v2603 = vpack.c.b16 %v2588, %v2587
      %v2604 = vpack.c.b16 %v2590, %v2589
      %v2605 = vpack.c.b16 %v2592, %v2591
      %v2606 = vpack.c.b16 %v2594, %v2593
      %v2607 = vpack.c.b16 %v2596, %v2595
      %v2608 = vpack.c.b16 %v2598, %v2597
      %v2609 = vpack.c.b16 %v2600, %v2599
      %v2610 = vpack.c.b16 %v2602, %v2601
      %2619 = vmatprep.subr.bf16.mxu0 0
      %2620 = vmatpush1.bf16.msra.mxu0 %v2603
      %2621 = vmatprep.subr.bf16.mxu0 0
      %2622 = vmatpush1.bf16.msra.mxu0 %v2604
      %2623 = vmatprep.subr.bf16.mxu0 0
      %2624 = vmatpush1.bf16.msra.mxu0 %v2605
      %2625 = vmatprep.subr.bf16.mxu0 0
      %2626 = vmatpush1.bf16.msra.mxu0 %v2606
      %2627 = vmatprep.subr.bf16.mxu0 0
      %2628 = vmatpush1.bf16.msra.mxu0 %v2607
      %2629 = vmatprep.subr.bf16.mxu0 0
      %2630 = vmatpush1.bf16.msra.mxu0 %v2608
      %2631 = vmatprep.subr.bf16.mxu0 0
      %2632 = vmatpush1.bf16.msra.mxu0 %v2609
      %2633 = vmatprep.subr.bf16.mxu0 0
      %2634 = vmatpush1.bf16.msra.mxu0 %v2610
      %2635 = vmatprep.subr.bf16.mxu0 0
      %2636 = vmatpush1.bf16.msra.mxu0 0
      %2637 = vmatprep.subr.bf16.mxu0 0
      %2638 = vmatpush1.bf16.msra.mxu0 0
      %2639 = vmatprep.subr.bf16.mxu0 0
      %2640 = vmatpush1.bf16.msra.mxu0 0
      %2641 = vmatprep.subr.bf16.mxu0 0
      %2642 = vmatpush1.bf16.msra.mxu0 0
      %2643 = vmatprep.subr.bf16.mxu0 0
      %2644 = vmatpush1.bf16.msra.mxu0 0
      %2645 = vmatprep.subr.bf16.mxu0 0
      %2646 = vmatpush1.bf16.msra.mxu0 0
      %2647 = vmatprep.subr.bf16.mxu0 0
      %2648 = vmatpush1.bf16.msra.mxu0 0
      %2649 = vmatprep.subr.bf16.mxu0 0
      %2650 = vmatpush1.bf16.msra.mxu0 0
      %2651 = vmatprep.mubr.bf16.mxu0 0
      %2652 = vmatmul.mubr.bf16.gmra.mrb[0].mxu0 %v2538
      %v2653 = vpop.f32.mrb[0].mxu0
      %v2654 = vadd.f32 0.0, %v2653
      %v2655 = vpop.f32.mrb[0].mxu0
      %v2656 = vpop.f32.mrb[0].mxu0
      %v2657 = vadd.f32 0.0, %v2656
      %v2658 = vpop.f32.mrb[0].mxu0
      %2659 = vmatprep.mubr.bf16.mxu0 0
      %2660 = vmatmul.mubr.bf16.gmra.mrb[0].mxu0 %v2539
      %v2661 = vpop.f32.mrb[0].mxu0
      %v2662 = vadd.f32 0.0, %v2661
      %v2663 = vpop.f32.mrb[0].mxu0
      %v2664 = vpop.f32.mrb[0].mxu0
      %v2665 = vadd.f32 0.0, %v2664
      %v2666 = vpop.f32.mrb[0].mxu0
      %2667 = vmatprep.mubr.bf16.mxu0 0
      %2668 = vmatmul.mubr.bf16.gmra.mrb[0].mxu0 %v2540
      %v2669 = vpop.f32.mrb[0].mxu0
      %v2670 = vadd.f32 0.0, %v2669
      %v2671 = vpop.f32.mrb[0].mxu0
      %v2672 = vpop.f32.mrb[0].mxu0
      %v2673 = vadd.f32 0.0, %v2672
      %v2674 = vpop.f32.mrb[0].mxu0
      %2675 = vmatprep.mubr.bf16.mxu0 0
      %2676 = vmatmul.mubr.bf16.gmra.mrb[0].mxu0 %v2541
      %v2677 = vpop.f32.mrb[0].mxu0
      %v2678 = vadd.f32 0.0, %v2677
      %v2679 = vpop.f32.mrb[0].mxu0
      %v2680 = vpop.f32.mrb[0].mxu0
      %v2681 = vadd.f32 0.0, %v2680
      %v2682 = vpop.f32.mrb[0].mxu0
      %2683 = vmatprep.mubr.bf16.mxu0 0
      %2684 = vmatmul.mubr.bf16.gmra.mrb[0].mxu0 %v2542
      %v2685 = vpop.f32.mrb[0].mxu0
      %v2686 = vadd.f32 0.0, %v2685
      %v2687 = vpop.f32.mrb[0].mxu0
      %v2688 = vpop.f32.mrb[0].mxu0
      %v2689 = vadd.f32 0.0, %v2688
      %v2690 = vpop.f32.mrb[0].mxu0
      %2691 = vmatprep.mubr.bf16.mxu0 0
      %2692 = vmatmul.mubr.bf16.gmra.mrb[0].mxu0 %v2543
      %v2693 = vpop.f32.mrb[0].mxu0
      %v2694 = vadd.f32 0.0, %v2693
      %v2695 = vpop.f32.mrb[0].mxu0
      %v2696 = vpop.f32.mrb[0].mxu0
      %v2697 = vadd.f32 0.0, %v2696
      %v2698 = vpop.f32.mrb[0].mxu0
      %2699 = vmatprep.mubr.bf16.mxu0 0
      %2700 = vmatmul.mubr.bf16.gmra.mrb[0].mxu0 %v2544
      %v2701 = vpop.f32.mrb[0].mxu0
      %v2702 = vadd.f32 0.0, %v2701
      %v2703 = vpop.f32.mrb[0].mxu0
      %v2704 = vpop.f32.mrb[0].mxu0
      %v2705 = vadd.f32 0.0, %v2704
      %v2706 = vpop.f32.mrb[0].mxu0
      %2707 = vmatprep.mubr.bf16.mxu0 0
      %2708 = vmatmul.mubr.bf16.gmra.mrb[0].mxu0 %v2545
      %v2709 = vpop.f32.mrb[0].mxu0
      %v2710 = vadd.f32 0.0, %v2709
      %v2711 = vpop.f32.mrb[0].mxu0
      %v2712 = vpop.f32.mrb[0].mxu0
      %v2713 = vadd.f32 0.0, %v2712
      %v2714 = vpop.f32.mrb[0].mxu0
      %2715 = vmatprep.mubr.bf16.mxu0 0
      %2716 = vmatmul.mubr.bf16.gmra.mrb[0].mxu0 %v2546
      %v2717 = vpop.f32.mrb[0].mxu0
      %v2718 = vadd.f32 0.0, %v2717
      %v2719 = vpop.f32.mrb[0].mxu0
      %v2720 = vpop.f32.mrb[0].mxu0
      %v2721 = vadd.f32 0.0, %v2720
      %v2722 = vpop.f32.mrb[0].mxu0
      %2723 = vmatprep.mubr.bf16.mxu0 0
      %2724 = vmatmul.mubr.bf16.gmra.mrb[0].mxu0 %v2547
      %v2725 = vpop.f32.mrb[0].mxu0
      %v2726 = vadd.f32 0.0, %v2725
      %v2727 = vpop.f32.mrb[0].mxu0
      %v2728 = vpop.f32.mrb[0].mxu0
      %v2729 = vadd.f32 0.0, %v2728
      %v2730 = vpop.f32.mrb[0].mxu0
      %2731 = vmatprep.mubr.bf16.mxu0 0
      %2732 = vmatmul.mubr.bf16.gmra.mrb[0].mxu0 %v2548
      %v2733 = vpop.f32.mrb[0].mxu0
      %v2734 = vadd.f32 0.0, %v2733
      %v2735 = vpop.f32.mrb[0].mxu0
      %v2736 = vpop.f32.mrb[0].mxu0
      %v2737 = vadd.f32 0.0, %v2736
      %v2738 = vpop.f32.mrb[0].mxu0
      %2739 = vmatprep.mubr.bf16.mxu0 0
      %2740 = vmatmul.mubr.bf16.gmra.mrb[0].mxu0 %v2549
      %v2741 = vpop.f32.mrb[0].mxu0
      %v2742 = vadd.f32 0.0, %v2741
      %v2743 = vpop.f32.mrb[0].mxu0
      %v2744 = vpop.f32.mrb[0].mxu0
      %v2745 = vadd.f32 0.0, %v2744
      %v2746 = vpop.f32.mrb[0].mxu0
      %2747 = vmatprep.mubr.bf16.mxu0 0
      %2748 = vmatmul.mubr.bf16.gmra.mrb[0].mxu0 %v2550
      %v2749 = vpop.f32.mrb[0].mxu0
      %v2750 = vadd.f32 0.0, %v2749
      %v2751 = vpop.f32.mrb[0].mxu0
      %v2752 = vpop.f32.mrb[0].mxu0
      %v2753 = vadd.f32 0.0, %v2752
      %v2754 = vpop.f32.mrb[0].mxu0
      %2755 = vmatprep.mubr.bf16.mxu0 0
      %2756 = vmatmul.mubr.bf16.gmra.mrb[0].mxu0 %v2551
      %v2757 = vpop.f32.mrb[0].mxu0
      %v2758 = vadd.f32 0.0, %v2757
      %v2759 = vpop.f32.mrb[0].mxu0
      %v2760 = vpop.f32.mrb[0].mxu0
      %v2761 = vadd.f32 0.0, %v2760
      %v2762 = vpop.f32.mrb[0].mxu0
      %2763 = vmatprep.mubr.bf16.mxu0 0
      %2764 = vmatmul.mubr.bf16.gmra.mrb[0].mxu0 %v2552
      %v2765 = vpop.f32.mrb[0].mxu0
      %v2766 = vadd.f32 0.0, %v2765
      %v2767 = vpop.f32.mrb[0].mxu0
      %v2768 = vpop.f32.mrb[0].mxu0
      %v2769 = vadd.f32 0.0, %v2768
      %v2770 = vpop.f32.mrb[0].mxu0
      %2771 = vmatprep.mubr.bf16.mxu0 0
      %2772 = vmatmul.mubr.bf16.gmra.mrb[0].mxu0 %v2553
      %v2773 = vpop.f32.mrb[0].mxu0
      %v2774 = vadd.f32 0.0, %v2773
      %v2775 = vpop.f32.mrb[0].mxu0
      %v2776 = vpop.f32.mrb[0].mxu0
      %v2777 = vadd.f32 0.0, %v2776
      %v2778 = vpop.f32.mrb[0].mxu0
      %2779 = vdwg.mxu0
      %v2780 = vadd.f32 %v2474, %v2654
      %v2781 = vadd.f32 %v2475, %v2657
      %v2782 = vadd.f32 %v2476, %v2662
      %v2783 = vadd.f32 %v2477, %v2665
      %v2784 = vadd.f32 %v2478, %v2670
      %v2785 = vadd.f32 %v2479, %v2673
      %v2786 = vadd.f32 %v2480, %v2678
      %v2787 = vadd.f32 %v2481, %v2681
      %v2788 = vadd.f32 %v2482, %v2686
      %v2789 = vadd.f32 %v2483, %v2689
      %v2790 = vadd.f32 %v2484, %v2694
      %v2791 = vadd.f32 %v2485, %v2697
      %v2792 = vadd.f32 %v2486, %v2702
      %v2793 = vadd.f32 %v2487, %v2705
      %v2794 = vadd.f32 %v2488, %v2710
      %v2795 = vadd.f32 %v2489, %v2713
      %v2796 = vadd.f32 %v2490, %v2718
      %v2797 = vadd.f32 %v2491, %v2721
      %v2798 = vadd.f32 %v2492, %v2726
      %v2799 = vadd.f32 %v2493, %v2729
      %v2800 = vadd.f32 %v2494, %v2734
      %v2801 = vadd.f32 %v2495, %v2737
      %v2802 = vadd.f32 %v2496, %v2742
      %v2803 = vadd.f32 %v2497, %v2745
      %v2804 = vadd.f32 %v2498, %v2750
      %v2805 = vadd.f32 %v2499, %v2753
      %v2806 = vadd.f32 %v2500, %v2758
      %v2807 = vadd.f32 %v2501, %v2761
      %v2808 = vadd.f32 %v2502, %v2766
      %v2809 = vadd.f32 %v2503, %v2769
      %v2810 = vadd.f32 %v2504, %v2774
      %v2811 = vadd.f32 %v2505, %v2777
      %v2812 = vld [vmem:[%s2199 + $0x2] sm:$0xff]
      %v2813 = vld [vmem:[%s2199 + $0xa] sm:$0xff]
      %v2814 = vld [vmem:[%s2199 + $0x1a] sm:$0xff]
      %v2815 = vld [vmem:[%s2199 + $0x22] sm:$0xff]
      %v2816 = vld [vmem:[%s2199 + $0x32] sm:$0xff]
      %v2817 = vld [vmem:[%s2199 + $0x3a] sm:$0xff]
      %v2818 = vld [vmem:[%s2199 + $0x4a] sm:$0xff]
      %v2819 = vld [vmem:[%s2199 + $0x52] sm:$0xff]
      %v2820 = vld [vmem:[%s2199 + $0x62] sm:$0xff]
      %v2821 = vld [vmem:[%s2199 + $0x6a] sm:$0xff]
      %v2822 = vld [vmem:[%s2199 + $0x7a] sm:$0xff]
      %v2823 = vld [vmem:[%s2199 + $0x82] sm:$0xff]
      %v2824 = vld [vmem:[%s2199 + $0x92] sm:$0xff]
      %v2825 = vld [vmem:[%s2199 + $0x9a] sm:$0xff]
      %v2826 = vld [vmem:[%s2199 + $0xaa] sm:$0xff]
      %v2827 = vld [vmem:[%s2199 + $0xb2] sm:$0xff]
      %v2828 = vld [vmem:[%s2199 + $0xc2] sm:$0xff]
      %v2829 = vld [vmem:[%s2199 + $0xca] sm:$0xff]
      %v2830 = vld [vmem:[%s2199 + $0xda] sm:$0xff]
      %v2831 = vld [vmem:[%s2199 + $0xe2] sm:$0xff]
      %v2832 = vld [vmem:[%s2199 + $0xf2] sm:$0xff]
      %v2833 = vld [vmem:[%s2199 + $0xfa] sm:$0xff]
      %v2834 = vld [vmem:[%s2199 + $0x10a] sm:$0xff]
      %v2835 = vld [vmem:[%s2199 + $0x112] sm:$0xff]
      %v2836 = vld [vmem:[%s2199 + $0x122] sm:$0xff]
      %v2837 = vld [vmem:[%s2199 + $0x12a] sm:$0xff]
      %v2838 = vld [vmem:[%s2199 + $0x13a] sm:$0xff]
      %v2839 = vld [vmem:[%s2199 + $0x142] sm:$0xff]
      %v2840 = vld [vmem:[%s2199 + $0x152] sm:$0xff]
      %v2841 = vld [vmem:[%s2199 + $0x15a] sm:$0xff]
      %v2842 = vld [vmem:[%s2199 + $0x16a] sm:$0xff]
      %v2843 = vld [vmem:[%s2199 + $0x172] sm:$0xff]
      %v2844 = vpack.c.bf16 %v2813, %v2812
      %v2845 = vpack.c.bf16 %v2815, %v2814
      %v2846 = vpack.c.bf16 %v2817, %v2816
      %v2847 = vpack.c.bf16 %v2819, %v2818
      %v2848 = vpack.c.bf16 %v2821, %v2820
      %v2849 = vpack.c.bf16 %v2823, %v2822
      %v2850 = vpack.c.bf16 %v2825, %v2824
      %v2851 = vpack.c.bf16 %v2827, %v2826
      %v2852 = vpack.c.bf16 %v2829, %v2828
      %v2853 = vpack.c.bf16 %v2831, %v2830
      %v2854 = vpack.c.bf16 %v2833, %v2832
      %v2855 = vpack.c.bf16 %v2835, %v2834
      %v2856 = vpack.c.bf16 %v2837, %v2836
      %v2857 = vpack.c.bf16 %v2839, %v2838
      %v2858 = vpack.c.bf16 %v2841, %v2840
      %v2859 = vpack.c.bf16 %v2843, %v2842
      %s2860 = scalar_lea.vmem %s3, 512
      %v2861 = vld [vmem:[%s2860] sm:$0xf]
      %v2862 = vld [vmem:[%s2860 + $0x4] sm:$0xf]
      %v2863 = vld [vmem:[%s2860 + $0x8] sm:$0xf]
      %v2864 = vld [vmem:[%s2860 + $0xc] sm:$0xf]
      %v2865 = vld [vmem:[%s2860 + $0x10] sm:$0xf]
      %v2866 = vld [vmem:[%s2860 + $0x14] sm:$0xf]
      %v2867 = vld [vmem:[%s2860 + $0x18] sm:$0xf]
      %v2868 = vld [vmem:[%s2860 + $0x1c] sm:$0xf]
      %v2869 = vld [vmem:[%s2860 + $0x20] sm:$0xf]
      %v2870 = vld [vmem:[%s2860 + $0x24] sm:$0xf]
      %v2871 = vld [vmem:[%s2860 + $0x28] sm:$0xf]
      %v2872 = vld [vmem:[%s2860 + $0x2c] sm:$0xf]
      %v2873 = vld [vmem:[%s2860 + $0x30] sm:$0xf]
      %v2874 = vld [vmem:[%s2860 + $0x34] sm:$0xf]
      %v2875 = vld [vmem:[%s2860 + $0x38] sm:$0xf]
      %v2876 = vld [vmem:[%s2860 + $0x3c] sm:$0xf]
      %v2893 = vunpack.c.l.b16 %v2861
      %v2894 = vunpack.c.l.b16 %v2862
      %v2895 = vunpack.c.l.b16 %v2863
      %v2896 = vunpack.c.l.b16 %v2864
      %v2897 = vunpack.c.l.b16 %v2865
      %v2898 = vunpack.c.l.b16 %v2866
      %v2899 = vunpack.c.l.b16 %v2867
      %v2900 = vunpack.c.l.b16 %v2868
      %v2901 = vunpack.c.l.b16 %v2869
      %v2902 = vunpack.c.l.b16 %v2870
      %v2903 = vunpack.c.l.b16 %v2871
      %v2904 = vunpack.c.l.b16 %v2872
      %v2905 = vunpack.c.l.b16 %v2873
      %v2906 = vunpack.c.l.b16 %v2874
      %v2907 = vunpack.c.l.b16 %v2875
      %v2908 = vunpack.c.l.b16 %v2876
      %v2909 = vpack.c.b16 %v2894, %v2893
      %v2910 = vpack.c.b16 %v2896, %v2895
      %v2911 = vpack.c.b16 %v2898, %v2897
      %v2912 = vpack.c.b16 %v2900, %v2899
      %v2913 = vpack.c.b16 %v2902, %v2901
      %v2914 = vpack.c.b16 %v2904, %v2903
      %v2915 = vpack.c.b16 %v2906, %v2905
      %v2916 = vpack.c.b16 %v2908, %v2907
      %2925 = vmatprep.subr.bf16.mxu0 0
      %2926 = vmatpush1.bf16.msra.mxu0 %v2909
      %2927 = vmatprep.subr.bf16.mxu0 0
      %2928 = vmatpush1.bf16.msra.mxu0 %v2910
      %2929 = vmatprep.subr.bf16.mxu0 0
      %2930 = vmatpush1.bf16.msra.mxu0 %v2911
      %2931 = vmatprep.subr.bf16.mxu0 0
      %2932 = vmatpush1.bf16.msra.mxu0 %v2912
      %2933 = vmatprep.subr.bf16.mxu0 0
      %2934 = vmatpush1.bf16.msra.mxu0 %v2913
      %2935 = vmatprep.subr.bf16.mxu0 0
      %2936 = vmatpush1.bf16.msra.mxu0 %v2914
      %2937 = vmatprep.subr.bf16.mxu0 0
      %2938 = vmatpush1.bf16.msra.mxu0 %v2915
      %2939 = vmatprep.subr.bf16.mxu0 0
      %2940 = vmatpush1.bf16.msra.mxu0 %v2916
      %2941 = vmatprep.subr.bf16.mxu0 0
      %2942 = vmatpush1.bf16.msra.mxu0 0
      %2943 = vmatprep.subr.bf16.mxu0 0
      %2944 = vmatpush1.bf16.msra.mxu0 0
      %2945 = vmatprep.subr.bf16.mxu0 0
      %2946 = vmatpush1.bf16.msra.mxu0 0
      %2947 = vmatprep.subr.bf16.mxu0 0
      %2948 = vmatpush1.bf16.msra.mxu0 0
      %2949 = vmatprep.subr.bf16.mxu0 0
      %2950 = vmatpush1.bf16.msra.mxu0 0
      %2951 = vmatprep.subr.bf16.mxu0 0
      %2952 = vmatpush1.bf16.msra.mxu0 0
      %2953 = vmatprep.subr.bf16.mxu0 0
      %2954 = vmatpush1.bf16.msra.mxu0 0
      %2955 = vmatprep.subr.bf16.mxu0 0
      %2956 = vmatpush1.bf16.msra.mxu0 0
      %2957 = vmatprep.mubr.bf16.mxu0 0
      %2958 = vmatmul.mubr.bf16.gmra.mrb[0].mxu0 %v2844
      %v2959 = vpop.f32.mrb[0].mxu0
      %v2960 = vadd.f32 0.0, %v2959
      %v2961 = vpop.f32.mrb[0].mxu0
      %v2962 = vpop.f32.mrb[0].mxu0
      %v2963 = vadd.f32 0.0, %v2962
      %v2964 = vpop.f32.mrb[0].mxu0
      %2965 = vmatprep.mubr.bf16.mxu0 0
      %2966 = vmatmul.mubr.bf16.gmra.mrb[0].mxu0 %v2845
      %v2967 = vpop.f32.mrb[0].mxu0
      %v2968 = vadd.f32 0.0, %v2967
      %v2969 = vpop.f32.mrb[0].mxu0
      %v2970 = vpop.f32.mrb[0].mxu0
      %v2971 = vadd.f32 0.0, %v2970
      %v2972 = vpop.f32.mrb[0].mxu0
      %2973 = vmatprep.mubr.bf16.mxu0 0
      %2974 = vmatmul.mubr.bf16.gmra.mrb[0].mxu0 %v2846
      %v2975 = vpop.f32.mrb[0].mxu0
      %v2976 = vadd.f32 0.0, %v2975
      %v2977 = vpop.f32.mrb[0].mxu0
      %v2978 = vpop.f32.mrb[0].mxu0
      %v2979 = vadd.f32 0.0, %v2978
      %v2980 = vpop.f32.mrb[0].mxu0
      %2981 = vmatprep.mubr.bf16.mxu0 0
      %2982 = vmatmul.mubr.bf16.gmra.mrb[0].mxu0 %v2847
      %v2983 = vpop.f32.mrb[0].mxu0
      %v2984 = vadd.f32 0.0, %v2983
      %v2985 = vpop.f32.mrb[0].mxu0
      %v2986 = vpop.f32.mrb[0].mxu0
      %v2987 = vadd.f32 0.0, %v2986
      %v2988 = vpop.f32.mrb[0].mxu0
      %2989 = vmatprep.mubr.bf16.mxu0 0
      %2990 = vmatmul.mubr.bf16.gmra.mrb[0].mxu0 %v2848
      %v2991 = vpop.f32.mrb[0].mxu0
      %v2992 = vadd.f32 0.0, %v2991
      %v2993 = vpop.f32.mrb[0].mxu0
      %v2994 = vpop.f32.mrb[0].mxu0
      %v2995 = vadd.f32 0.0, %v2994
      %v2996 = vpop.f32.mrb[0].mxu0
      %2997 = vmatprep.mubr.bf16.mxu0 0
      %2998 = vmatmul.mubr.bf16.gmra.mrb[0].mxu0 %v2849
      %v2999 = vpop.f32.mrb[0].mxu0
      %v3000 = vadd.f32 0.0, %v2999
      %v3001 = vpop.f32.mrb[0].mxu0
      %v3002 = vpop.f32.mrb[0].mxu0
      %v3003 = vadd.f32 0.0, %v3002
      %v3004 = vpop.f32.mrb[0].mxu0
      %3005 = vmatprep.mubr.bf16.mxu0 0
      %3006 = vmatmul.mubr.bf16.gmra.mrb[0].mxu0 %v2850
      %v3007 = vpop.f32.mrb[0].mxu0
      %v3008 = vadd.f32 0.0, %v3007
      %v3009 = vpop.f32.mrb[0].mxu0
      %v3010 = vpop.f32.mrb[0].mxu0
      %v3011 = vadd.f32 0.0, %v3010
      %v3012 = vpop.f32.mrb[0].mxu0
      %3013 = vmatprep.mubr.bf16.mxu0 0
      %3014 = vmatmul.mubr.bf16.gmra.mrb[0].mxu0 %v2851
      %v3015 = vpop.f32.mrb[0].mxu0
      %v3016 = vadd.f32 0.0, %v3015
      %v3017 = vpop.f32.mrb[0].mxu0
      %v3018 = vpop.f32.mrb[0].mxu0
      %v3019 = vadd.f32 0.0, %v3018
      %v3020 = vpop.f32.mrb[0].mxu0
      %3021 = vmatprep.mubr.bf16.mxu0 0
      %3022 = vmatmul.mubr.bf16.gmra.mrb[0].mxu0 %v2852
      %v3023 = vpop.f32.mrb[0].mxu0
      %v3024 = vadd.f32 0.0, %v3023
      %v3025 = vpop.f32.mrb[0].mxu0
      %v3026 = vpop.f32.mrb[0].mxu0
      %v3027 = vadd.f32 0.0, %v3026
      %v3028 = vpop.f32.mrb[0].mxu0
      %3029 = vmatprep.mubr.bf16.mxu0 0
      %3030 = vmatmul.mubr.bf16.gmra.mrb[0].mxu0 %v2853
      %v3031 = vpop.f32.mrb[0].mxu0
      %v3032 = vadd.f32 0.0, %v3031
      %v3033 = vpop.f32.mrb[0].mxu0
      %v3034 = vpop.f32.mrb[0].mxu0
      %v3035 = vadd.f32 0.0, %v3034
      %v3036 = vpop.f32.mrb[0].mxu0
      %3037 = vmatprep.mubr.bf16.mxu0 0
      %3038 = vmatmul.mubr.bf16.gmra.mrb[0].mxu0 %v2854
      %v3039 = vpop.f32.mrb[0].mxu0
      %v3040 = vadd.f32 0.0, %v3039
      %v3041 = vpop.f32.mrb[0].mxu0
      %v3042 = vpop.f32.mrb[0].mxu0
      %v3043 = vadd.f32 0.0, %v3042
      %v3044 = vpop.f32.mrb[0].mxu0
      %3045 = vmatprep.mubr.bf16.mxu0 0
      %3046 = vmatmul.mubr.bf16.gmra.mrb[0].mxu0 %v2855
      %v3047 = vpop.f32.mrb[0].mxu0
      %v3048 = vadd.f32 0.0, %v3047
      %v3049 = vpop.f32.mrb[0].mxu0
      %v3050 = vpop.f32.mrb[0].mxu0
      %v3051 = vadd.f32 0.0, %v3050
      %v3052 = vpop.f32.mrb[0].mxu0
      %3053 = vmatprep.mubr.bf16.mxu0 0
      %3054 = vmatmul.mubr.bf16.gmra.mrb[0].mxu0 %v2856
      %v3055 = vpop.f32.mrb[0].mxu0
      %v3056 = vadd.f32 0.0, %v3055
      %v3057 = vpop.f32.mrb[0].mxu0
      %v3058 = vpop.f32.mrb[0].mxu0
      %v3059 = vadd.f32 0.0, %v3058
      %v3060 = vpop.f32.mrb[0].mxu0
      %3061 = vmatprep.mubr.bf16.mxu0 0
      %3062 = vmatmul.mubr.bf16.gmra.mrb[0].mxu0 %v2857
      %v3063 = vpop.f32.mrb[0].mxu0
      %v3064 = vadd.f32 0.0, %v3063
      %v3065 = vpop.f32.mrb[0].mxu0
      %v3066 = vpop.f32.mrb[0].mxu0
      %v3067 = vadd.f32 0.0, %v3066
      %v3068 = vpop.f32.mrb[0].mxu0
      %3069 = vmatprep.mubr.bf16.mxu0 0
      %3070 = vmatmul.mubr.bf16.gmra.mrb[0].mxu0 %v2858
      %v3071 = vpop.f32.mrb[0].mxu0
      %v3072 = vadd.f32 0.0, %v3071
      %v3073 = vpop.f32.mrb[0].mxu0
      %v3074 = vpop.f32.mrb[0].mxu0
      %v3075 = vadd.f32 0.0, %v3074
      %v3076 = vpop.f32.mrb[0].mxu0
      %3077 = vmatprep.mubr.bf16.mxu0 0
      %3078 = vmatmul.mubr.bf16.gmra.mrb[0].mxu0 %v2859
      %v3079 = vpop.f32.mrb[0].mxu0
      %v3080 = vadd.f32 0.0, %v3079
      %v3081 = vpop.f32.mrb[0].mxu0
      %v3082 = vpop.f32.mrb[0].mxu0
      %v3083 = vadd.f32 0.0, %v3082
      %v3084 = vpop.f32.mrb[0].mxu0
      %3085 = vdwg.mxu0
      %v3086 = vadd.f32 %v2780, %v2960
      %v3087 = vadd.f32 %v2781, %v2963
      %v3088 = vadd.f32 %v2782, %v2968
      %v3089 = vadd.f32 %v2783, %v2971
      %v3090 = vadd.f32 %v2784, %v2976
      %v3091 = vadd.f32 %v2785, %v2979
      %v3092 = vadd.f32 %v2786, %v2984
      %v3093 = vadd.f32 %v2787, %v2987
      %v3094 = vadd.f32 %v2788, %v2992
      %v3095 = vadd.f32 %v2789, %v2995
      %v3096 = vadd.f32 %v2790, %v3000
      %v3097 = vadd.f32 %v2791, %v3003
      %v3098 = vadd.f32 %v2792, %v3008
      %v3099 = vadd.f32 %v2793, %v3011
      %v3100 = vadd.f32 %v2794, %v3016
      %v3101 = vadd.f32 %v2795, %v3019
      %v3102 = vadd.f32 %v2796, %v3024
      %v3103 = vadd.f32 %v2797, %v3027
      %v3104 = vadd.f32 %v2798, %v3032
      %v3105 = vadd.f32 %v2799, %v3035
      %v3106 = vadd.f32 %v2800, %v3040
      %v3107 = vadd.f32 %v2801, %v3043
      %v3108 = vadd.f32 %v2802, %v3048
      %v3109 = vadd.f32 %v2803, %v3051
      %v3110 = vadd.f32 %v2804, %v3056
      %v3111 = vadd.f32 %v2805, %v3059
      %v3112 = vadd.f32 %v2806, %v3064
      %v3113 = vadd.f32 %v2807, %v3067
      %v3114 = vadd.f32 %v2808, %v3072
      %v3115 = vadd.f32 %v2809, %v3075
      %v3116 = vadd.f32 %v2810, %v3080
      %v3117 = vadd.f32 %v2811, %v3083
      %vm3118 = vcmask 261120
      %3119 = vst.msk [vmem:[%s197] sm:$0xff] %vm3118, %v3086
      %3120 = vst.msk [vmem:[%s197 + $0x8] sm:$0xff] %vm3118, %v3087
      %3121 = vst.msk [vmem:[%s197 + $0x10] sm:$0xff] %vm3118, %v3088
      %3122 = vst.msk [vmem:[%s197 + $0x18] sm:$0xff] %vm3118, %v3089
      %3123 = vst.msk [vmem:[%s197 + $0x20] sm:$0xff] %vm3118, %v3090
      %3124 = vst.msk [vmem:[%s197 + $0x28] sm:$0xff] %vm3118, %v3091
      %3125 = vst.msk [vmem:[%s197 + $0x30] sm:$0xff] %vm3118, %v3092
      %3126 = vst.msk [vmem:[%s197 + $0x38] sm:$0xff] %vm3118, %v3093
      %3127 = vst.msk [vmem:[%s197 + $0x40] sm:$0xff] %vm3118, %v3094
      %3128 = vst.msk [vmem:[%s197 + $0x48] sm:$0xff] %vm3118, %v3095
      %3129 = vst.msk [vmem:[%s197 + $0x50] sm:$0xff] %vm3118, %v3096
      %3130 = vst.msk [vmem:[%s197 + $0x58] sm:$0xff] %vm3118, %v3097
      %3131 = vst.msk [vmem:[%s197 + $0x60] sm:$0xff] %vm3118, %v3098
      %3132 = vst.msk [vmem:[%s197 + $0x68] sm:$0xff] %vm3118, %v3099
      %3133 = vst.msk [vmem:[%s197 + $0x70] sm:$0xff] %vm3118, %v3100
      %3134 = vst.msk [vmem:[%s197 + $0x78] sm:$0xff] %vm3118, %v3101
      %3135 = vst.msk [vmem:[%s197 + $0x80] sm:$0xff] %vm3118, %v3102
      %3136 = vst.msk [vmem:[%s197 + $0x88] sm:$0xff] %vm3118, %v3103
      %3137 = vst.msk [vmem:[%s197 + $0x90] sm:$0xff] %vm3118, %v3104
      %3138 = vst.msk [vmem:[%s197 + $0x98] sm:$0xff] %vm3118, %v3105
      %3139 = vst.msk [vmem:[%s197 + $0xa0] sm:$0xff] %vm3118, %v3106
      %3140 = vst.msk [vmem:[%s197 + $0xa8] sm:$0xff] %vm3118, %v3107
      %3141 = vst.msk [vmem:[%s197 + $0xb0] sm:$0xff] %vm3118, %v3108
      %3142 = vst.msk [vmem:[%s197 + $0xb8] sm:$0xff] %vm3118, %v3109
      %3143 = vst.msk [vmem:[%s197 + $0xc0] sm:$0xff] %vm3118, %v3110
      %3144 = vst.msk [vmem:[%s197 + $0xc8] sm:$0xff] %vm3118, %v3111
      %3145 = vst.msk [vmem:[%s197 + $0xd0] sm:$0xff] %vm3118, %v3112
      %3146 = vst.msk [vmem:[%s197 + $0xd8] sm:$0xff] %vm3118, %v3113
      %3147 = vst.msk [vmem:[%s197 + $0xe0] sm:$0xff] %vm3118, %v3114
      %3148 = vst.msk [vmem:[%s197 + $0xe8] sm:$0xff] %vm3118, %v3115
      %3149 = vst.msk [vmem:[%s197 + $0xf0] sm:$0xff] %vm3118, %v3116
      %3150 = vst.msk [vmem:[%s197 + $0xf8] sm:$0xff] %vm3118, %v3117
      %p3151 = scmp.lt.s32.totalorder %s15, 1
      %s3152 = scalar_select %p3151, %s15, 1
      %s3153 = smul.addr %s3152, 32
      %s3154 = smul.addr %s3153, 8
      %s3155 = scalar_lea.vmem %s4, %s3154
      // Predicated region
      $region37: #{bottleneck_forward.5} parent=35 // pred_check
        %p3156 = pneg %p122
      $region38: #{bottleneck_forward.5} parent=35 // pred_check_branch
        %3158 = sbr.rel (%p3156) target = $region40
      $region39: #{bottleneck_forward.5} parent=35 // pred_region
        _
      $region40: #{bottleneck_forward.5} parent=35 // pred_fallthru
        _
    $region36: #{bottleneck_forward.5} parent=5 // pred_fallthru
      _
    %p3159 = scmp.le.s32.totalorder 2, %s10
    // Predicated region
    $region41: #{bottleneck_forward.5} parent=5 // pred_check
      %p3160 = pneg %p3159
    $region42: #{bottleneck_forward.5} parent=5 // pred_check_branch
      %3162 = sbr.rel (%p3160) target = $region44
    $region43: #{bottleneck_forward.5} parent=5 // pred_region
      %s3163 = ssub.s32 %s10, 2
      // Predicated region
      $region45: #{bottleneck_forward.5} parent=43 // pred_check
        %p3164 = pneg %p128
      $region46: #{bottleneck_forward.5} parent=43 // pred_check_branch
        %3166 = sbr.rel (%p3164) target = $region48
      $region47: #{bottleneck_forward.5} parent=43 // pred_region
        %p3167 = scmp.lt.s32.totalorder %s16, 1
        %s3168 = scalar_select %p3167, %s16, 1
        %s3169 = smul.addr %s3168, 32
        %s3170 = smul.addr %s3169, 8
        %s3171 = scalar_lea.vmem %s4, %s3170
      $region48: #{bottleneck_forward.5} parent=43 // pred_fallthru
        _
    $region44: #{bottleneck_forward.5} parent=5 // pred_fallthru
      _
  $region6: #{bottleneck_forward.5} parent=0 // loop_footer
    %s14 = sadd.s32 1, %s10
  $region7: #{bottleneck_forward.5} parent=0 // loop_footer_branch
    %9 = sbr.rel target = $region3
  $region8: #{bottleneck_forward.5} parent=0 // loop_exit
    _

</llo_original>
